<compile_context>
chip_gen: v7x
topology: tpu7x:2x2x1
jax: 0.10.0
libtpu: 0.0.40
codegen_flags: <defaults>
</compile_context>

<pallas_src>
import jax
import jax.numpy as jnp
from jax.experimental import pallas as pl
from jax.experimental.pallas import tpu as pltpu

F32 = jnp.float32
VMEM = pltpu.MemorySpace.VMEM


# ----------------------------------------------------------------------------
# Fused VisualEncoder kernel (built per static shape / kernel-size config).
#
# Inputs (all f32, VMEM):
#   x_pack   (T, B, 2D)    time-major [x_t | x_{T-1-t}] for the fused GRU proj
#   videos   (B, T, D)     raw frame features (attention branch)
#   mask3    (B, T, 1)     1.0 for valid frames, 0.0 for padding
#   org      (B, D)        videos_origin
#   wih_blk  (2D, 6H)      block-diag input proj, gates [r_f|r_b|z_f|z_b|n_f|n_b]
#   bi       (1, 6H)       folded biases (b_i* + b_h* for r,z; b_in for n)
#   whh_blk  (2H, 6H)      block-diag recurrent weights, same gate layout
#   bhn      (1, 2H)       [b_hn_f | b_hn_b]
#   convw    (ws_max, C, n_conv*K)   per-tap weights packed across kernel sizes
#   convb    (1, n_conv*K)
#   att_w1   (D, D//4), att_w2m (D//4, 1)   (column-mean folded)
#   map_w_gru (2H, M), map_w_con_i (K, M)*n_conv, map_w_org (D, M),
#   map_w_att (D, M), map_b (1, M)
# Output:
#   out      (B, M)
# Scratch:
#   gpad     (B, T + 2*pmax, 2H)   masked GRU output, zero-padded in time
# ----------------------------------------------------------------------------
def _make_encoder_kernel(B, T, D, H, K, kernel_sizes):
    C = 2 * H
    ws_max = max(kernel_sizes)
    pmax = ws_max - 1
    n_conv = len(kernel_sizes)
    NK = n_conv * K
    Tout = T + pmax

    def kernel(*refs):
        (xp_ref, vid_ref, mask_ref, org_ref,
         wih_ref, bi_ref, whh_ref, bhn_ref,
         convw_ref, convb_ref, attw1_ref, attw2_ref) = refs[0:12]
        mw_gru_ref = refs[12]
        mw_con_refs = refs[13:13 + n_conv]
        mw_org_ref = refs[13 + n_conv]
        mw_att_ref = refs[14 + n_conv]
        mb_ref = refs[15 + n_conv]
        out_ref = refs[16 + n_conv]
        gpad_scr = refs[17 + n_conv]

        m = mask_ref[...]                                   # (B, T, 1)

        # ---- bidirectional GRU (both directions fused per step) ------------
        xp = xp_ref[...]                                    # (T, B, 2D)
        gi = jnp.dot(xp.reshape(T * B, 2 * D), wih_ref[...],
                     preferred_element_type=F32) + bi_ref[...]
        gi = gi.reshape(T, B, 6 * H)                        # time-major

        whh = whh_ref[...]
        bhn = bhn_ref[...]

        hcat = jnp.zeros((B, 2 * H), F32)                   # [hf | hb]
        hf_rows = [None] * T                                # fwd output at time t
        hb_rows = [None] * T                                # bwd output at time t
        # T is small & static: unroll; fwd+bwd share one (B,2H)x(2H,6H) push.
        for s in range(T):
            gh = jnp.dot(hcat, whh, preferred_element_type=F32)     # (B, 6H)
            gi_s = gi[s]                                             # (B, 6H)
            r = jax.nn.sigmoid(gi_s[:, 0:2 * H] + gh[:, 0:2 * H])
            z = jax.nn.sigmoid(gi_s[:, 2 * H:4 * H] + gh[:, 2 * H:4 * H])
            n = jnp.tanh(gi_s[:, 4 * H:6 * H] + r * (gh[:, 4 * H:6 * H] + bhn))
            hcat = (1.0 - z) * n + z * hcat
            hf_rows[s] = hcat[:, 0:H]                 # fwd hidden at time s
            hb_rows[T - 1 - s] = hcat[:, H:2 * H]     # bwd hidden at time T-1-s

        # ---- masked outputs: mean from registers, ONE store for the conv ---
        gsum_f = jnp.zeros((B, H), F32)
        gsum_b = jnp.zeros((B, H), F32)
        hf_m = [None] * T
        hb_m = [None] * T
        for t in range(T):
            m_t = m[:, t, :]                                 # (B, 1)
            f_t = hf_rows[t] * m_t
            b_t = hb_rows[t] * m_t
            hf_m[t] = f_t
            hb_m[t] = b_t
            gsum_f = gsum_f + f_t
            gsum_b = gsum_b + b_t

        cnt = jnp.sum(m, axis=1)                             # (B, 1)
        inv_cnt = pl.reciprocal(jnp.maximum(cnt, 1.0), approx=True)
        gru_out = jnp.concatenate([gsum_f, gsum_b], axis=1) * inv_cnt   # (B, 2H)

        # zero only the temporal padding bands; single lane-dense store of the
        # stacked masked GRU output.
        if pmax > 0:
            zband = jnp.zeros((B, pmax, C), F32)
            gpad_scr[:, 0:pmax, :] = zband
            gpad_scr[:, pmax + T:pmax + T + pmax, :] = zband
        g = jnp.concatenate([jnp.stack(hf_m, axis=1),
                             jnp.stack(hb_m, axis=1)], axis=2)        # (B, T, 2H)
        gpad_scr[:, pmax:pmax + T, :] = g

        # ---- conv -> relu -> max-pool, all kernel sizes packed on lanes -----
        convw = convw_ref[...]                               # (ws_max, C, NK)
        acc = jnp.zeros((B * Tout, NK), F32)
        for j in range(ws_max):                              # static taps
            win = gpad_scr[:, j:j + Tout, :]                 # (B, Tout, C)
            acc = acc + jnp.dot(win.reshape(B * Tout, C), convw[j],
                                preferred_element_type=F32)
        acc = (acc + convb_ref[...]).reshape(B, Tout, NK)

        con_feats = []
        for i, ws in enumerate(kernel_sizes):
            lo = pmax - ws + 1                               # valid output window
            sub = acc[:, lo:pmax + T, i * K:(i + 1) * K]     # (B, T+ws-1, K)
            sub = jnp.maximum(sub, 0.0)                      # ReLU
            con_feats.append(jnp.max(sub, axis=1))           # (B, K)

        # ---- self-attention over the original frame features ----------------
        x = vid_ref[...]                                     # (B, T, D)
        xf = x.reshape(B * T, D)
        h1 = jnp.tanh(jnp.dot(xf, attw1_ref[...], preferred_element_type=F32))
        a = jnp.dot(h1, attw2_ref[...], preferred_element_type=F32)  # (B*T, 1)
        s_att = a.reshape(B, T, 1)
        neg = jnp.float32(-1e30)
        sm = jnp.where(m > 0, s_att, neg)
        smax = jnp.max(sm, axis=1, keepdims=True)            # (B, 1, 1)
        e = jnp.exp(sm - smax) * m
        denom = jnp.sum(e, axis=1, keepdims=True)
        wgt = e * pl.reciprocal(jnp.maximum(denom, jnp.float32(1e-30)),
                                approx=True)
        # (weight * x).mean(dim=1) in the PyTorch reference -> extra 1/T.
        att_out = jnp.sum(wgt * x, axis=1) * jnp.float32(1.0 / T)    # (B, D)

        # ---- concate == 'full' + visual_mapping (MFC) + l2norm --------------
        # map_w split by row-blocks at init: accumulate partial MXU products
        # instead of concatenating features at unaligned lane offsets.
        y = jnp.dot(gru_out, mw_gru_ref[...], preferred_element_type=F32)
        for i in range(n_conv):
            y = y + jnp.dot(con_feats[i], mw_con_refs[i][...],
                            preferred_element_type=F32)
        y = y + jnp.dot(org_ref[...], mw_org_ref[...],
                        preferred_element_type=F32)
        y = y + jnp.dot(att_out, mw_att_ref[...],
                        preferred_element_type=F32)
        y = jnp.maximum(y + mb_ref[...], 0.0)                # ReLU (dropout=id)
        nrm2 = jnp.sum(y * y, axis=1, keepdims=True)
        out_ref[...] = y * jax.lax.rsqrt(jnp.maximum(nrm2, jnp.float32(1e-12)))

    return kernel


# ----------------------------------------------------------------------------
# Python wrapper = VisualEncoder.forward (concate='full', visual_norm=True)
# ----------------------------------------------------------------------------
def visual_encoder_forward(videos, videos_origin, lengths, videos_mask, params):
    del lengths  # lengths are encoded in videos_mask (mask[b, t] = t < len[b])
    B, T, D = videos.shape
    H = params["whh_blk"].shape[0] // 2
    C = 2 * H
    K = params["kernel_num"]
    kernel_sizes = params["kernel_sizes"]
    pmax = max(kernel_sizes) - 1
    map_out = params["map_b"].shape[1]

    mask3 = videos_mask[:, :, None].astype(F32)              # (B, T, 1)
    # Time-major packed GRU input: [x_t | x_{T-1-t}] -> free per-step slicing.
    x_tm = jnp.transpose(videos, (1, 0, 2))                  # (T, B, D)
    x_pack = jnp.concatenate([x_tm, x_tm[::-1]], axis=2)     # (T, B, 2D)

    args = [x_pack, videos, mask3, videos_origin,
            params["wih_blk"], params["bi"], params["whh_blk"], params["bhn"],
            params["convw"], params["convb"],
            params["att_w1"], params["att_w2m"],
            params["map_w_gru"], *params["map_w_con"],
            params["map_w_org"], params["map_w_att"], params["map_b"]]

    kernel = _make_encoder_kernel(B, T, D, H, K, kernel_sizes)

    out = pl.pallas_call(
        kernel,
        out_shape=jax.ShapeDtypeStruct((B, map_out), F32),
        in_specs=[pl.BlockSpec(memory_space=VMEM)] * len(args),
        out_specs=pl.BlockSpec(memory_space=VMEM),
        scratch_shapes=[pltpu.VMEM((B, T + 2 * pmax, C), F32)],
        compiler_params=pltpu.CompilerParams(
            vmem_limit_bytes=32 * 1024 * 1024),
    )(*args)
    return out


# ----------------------------------------------------------------------------
# Deterministic parameter init (synthetic; mirrors PyTorch init flavors) with
# all packing done at init time:
#   * GRU: block-diagonal input/recurrent weights, gates interleaved
#     [r_f|r_b|z_f|z_b|n_f|n_b]; r/z biases folded, b_hn kept separate.
#   * Conv: per-tap weights packed across kernel sizes on the output dim
#     (taps >= ws zero-filled for the smaller sizes).
#   * Attention: column-mean folded into att_w2.
#   * MFC: map_w split by feature row-blocks (gru / conv_i / org / att).
# ----------------------------------------------------------------------------
def _uniform(key, shape, scale):
    return jax.random.uniform(key, shape, F32, -scale, scale)


def init_params(key, D, H, kernel_num, kernel_sizes, map_out):
    C = 2 * H
    n_conv = len(kernel_sizes)
    ws_max = max(kernel_sizes)
    keys = jax.random.split(key, 32)
    ki = iter(range(32))
    gru_scale = 1.0 / (H ** 0.5)

    def gru_dir():
        wih = _uniform(keys[next(ki)], (D, 3 * H), gru_scale)   # [r|z|n]
        whh = _uniform(keys[next(ki)], (H, 3 * H), gru_scale)
        bih = _uniform(keys[next(ki)], (1, 3 * H), gru_scale)
        bhh = _uniform(keys[next(ki)], (1, 3 * H), gru_scale)
        return wih, whh, bih, bhh

    wih_f, whh_f, bih_f, bhh_f = gru_dir()
    wih_b, whh_b, bih_b, bhh_b = gru_dir()

    # Block-diagonal packing, gate order [r_f | r_b | z_f | z_b | n_f | n_b].
    wih_blk = jnp.zeros((2 * D, 6 * H), F32)
    whh_blk = jnp.zeros((2 * H, 6 * H), F32)
    for g in range(3):
        wih_blk = wih_blk.at[0:D, (2 * g) * H:(2 * g + 1) * H].set(
            wih_f[:, g * H:(g + 1) * H])
        wih_blk = wih_blk.at[D:2 * D, (2 * g + 1) * H:(2 * g + 2) * H].set(
            wih_b[:, g * H:(g + 1) * H])
        whh_blk = whh_blk.at[0:H, (2 * g) * H:(2 * g + 1) * H].set(
            whh_f[:, g * H:(g + 1) * H])
        whh_blk = whh_blk.at[H:2 * H, (2 * g + 1) * H:(2 * g + 2) * H].set(
            whh_b[:, g * H:(g + 1) * H])

    bi_cols = []
    for g in range(3):
        bf = bih_f[:, g * H:(g + 1) * H]
        bb = bih_b[:, g * H:(g + 1) * H]
        if g < 2:  # fold b_h{r,z} into the input-side bias
            bf = bf + bhh_f[:, g * H:(g + 1) * H]
            bb = bb + bhh_b[:, g * H:(g + 1) * H]
        bi_cols += [bf, bb]
    bi = jnp.concatenate(bi_cols, axis=1)                        # (1, 6H)
    bhn = jnp.concatenate([bhh_f[:, 2 * H:], bhh_b[:, 2 * H:]], axis=1)  # (1, 2H)

    # Conv weights packed across kernel sizes on the output dim.
    convw = jnp.zeros((ws_max, C, n_conv * kernel_num), F32)
    convb_cols = []
    for i, ws in enumerate(kernel_sizes):
        s = 1.0 / ((ws * C) ** 0.5)
        w = _uniform(keys[next(ki)], (ws, C, kernel_num), s)
        b = _uniform(keys[next(ki)], (1, kernel_num), s)
        convw = convw.at[0:ws, :, i * kernel_num:(i + 1) * kernel_num].set(w)
        convb_cols.append(b)
    convb = jnp.concatenate(convb_cols, axis=1)                  # (1, n_conv*K)

    c1 = D // 4
    att_w1 = _uniform(keys[next(ki)], (D, c1), (6.0 / (D + c1)) ** 0.5)
    att_w2 = _uniform(keys[next(ki)], (c1, 3), (6.0 / (c1 + 3)) ** 0.5)
    att_w2m = jnp.mean(att_w2, axis=1, keepdims=True)            # (c1, 1)

    f_in = 2 * H + kernel_num * n_conv + D + D
    map_w = _uniform(keys[next(ki)], (f_in, map_out),
                     (6.0 / (f_in + map_out)) ** 0.5)
    off = 0
    map_w_gru = map_w[off:off + 2 * H]; off += 2 * H
    map_w_con = []
    for _ in range(n_conv):
        map_w_con.append(map_w[off:off + kernel_num]); off += kernel_num
    map_w_org = map_w[off:off + D]; off += D
    map_w_att = map_w[off:off + D]
    map_b = jnp.zeros((1, map_out), F32)

    return dict(wih_blk=wih_blk, bi=bi, whh_blk=whh_blk, bhn=bhn,
                convw=convw, convb=convb,
                kernel_sizes=tuple(kernel_sizes), kernel_num=kernel_num,
                att_w1=att_w1, att_w2m=att_w2m,
                map_w_gru=map_w_gru, map_w_con=map_w_con,
                map_w_org=map_w_org, map_w_att=map_w_att, map_b=map_b)


if __name__ == "__main__":
    # opt: visual_feat_dim=16, visual_rnn_size=8, visual_kernel_num=4,
    #      visual_kernel_sizes=(2,3), visual_mapping_size=[56, 32],
    #      dropout=0.2 (eval-mode identity), concate='full', visual_norm=True
    B, T, D, H = 2, 8, 16, 8
    kernel_num, kernel_sizes, map_out = 4, (2, 3), 32

    key = jax.random.PRNGKey(0)
    k_vid, k_par = jax.random.split(key, 2)

    videos = jax.random.normal(k_vid, (B, T, D), F32)
    lengths = jnp.array([T, 5], jnp.int32)
    videos_mask = (jnp.arange(T)[None, :] < lengths[:, None]).astype(F32)
    videos_origin = (jnp.sum(videos * videos_mask[:, :, None], axis=1)
                     / lengths[:, None].astype(F32))

    params = init_params(k_par, D, H, kernel_num, kernel_sizes, map_out)

    out = visual_encoder_forward(videos, videos_origin, lengths, videos_mask,
                                 params)
    out = jax.block_until_ready(out)

    assert out.shape == (B, map_out)
    assert bool(jnp.all(jnp.isfinite(out)))
    # TODO(synk): nn.Dropout layers are inference-mode identities here.
    print("KERNEL_OK")
</pallas_src>

<mosaic_0001>
module attributes {stable_mosaic.version = 11 : i64} {
  func.func @kernel(%arg0: memref<8x2x32xf32, #tpu.memory_space<vmem>>, %arg1: memref<2x8x16xf32, #tpu.memory_space<vmem>>, %arg2: memref<2x8x1xf32, #tpu.memory_space<vmem>>, %arg3: memref<2x16xf32, #tpu.memory_space<vmem>>, %arg4: memref<32x48xf32, #tpu.memory_space<vmem>>, %arg5: memref<1x48xf32, #tpu.memory_space<vmem>>, %arg6: memref<16x48xf32, #tpu.memory_space<vmem>>, %arg7: memref<1x16xf32, #tpu.memory_space<vmem>>, %arg8: memref<3x16x8xf32, #tpu.memory_space<vmem>>, %arg9: memref<1x8xf32, #tpu.memory_space<vmem>>, %arg10: memref<16x4xf32, #tpu.memory_space<vmem>>, %arg11: memref<4x1xf32, #tpu.memory_space<vmem>>, %arg12: memref<16x32xf32, #tpu.memory_space<vmem>>, %arg13: memref<4x32xf32, #tpu.memory_space<vmem>>, %arg14: memref<4x32xf32, #tpu.memory_space<vmem>>, %arg15: memref<16x32xf32, #tpu.memory_space<vmem>>, %arg16: memref<16x32xf32, #tpu.memory_space<vmem>>, %arg17: memref<1x32xf32, #tpu.memory_space<vmem>>, %arg18: memref<2x32xf32, #tpu.memory_space<vmem>>, %arg19: memref<2x12x16xf32, #tpu.memory_space<vmem>>) attributes {dimension_semantics = [], scalar_prefetch = 0 : i64, scratch_operands = 1 : i64, tpu.core_type = #tpu.core_type<tc>} {
    %c0 = arith.constant 0 : index
    %c0_0 = arith.constant 0 : index
    %c0_1 = arith.constant 0 : index
    %0 = vector.load %arg2[%c0, %c0_0, %c0_1] : memref<2x8x1xf32, #tpu.memory_space<vmem>>, vector<2x8x1xf32>
    %c0_2 = arith.constant 0 : index
    %c0_3 = arith.constant 0 : index
    %c0_4 = arith.constant 0 : index
    %1 = vector.load %arg0[%c0_2, %c0_3, %c0_4] : memref<8x2x32xf32, #tpu.memory_space<vmem>>, vector<8x2x32xf32>
    %2 = vector.shape_cast %1 : vector<8x2x32xf32> to vector<16x32xf32>
    %c0_5 = arith.constant 0 : index
    %c0_6 = arith.constant 0 : index
    %3 = vector.load %arg4[%c0_5, %c0_6] : memref<32x48xf32, #tpu.memory_space<vmem>>, vector<32x48xf32>
    %cst = arith.constant dense<0.000000e+00> : vector<16x48xf32>
    %4 = tpu.matmul %2, %3, %cst {dimension_numbers = #tpu.dot_dimension_numbers<[1], [0], [0], [1], [0, 0, 1, 1], [], []>} : vector<16x32xf32>, vector<32x48xf32>, vector<16x48xf32> -> vector<16x48xf32>
    %c0_7 = arith.constant 0 : index
    %c0_8 = arith.constant 0 : index
    %5 = vector.load %arg5[%c0_7, %c0_8] : memref<1x48xf32, #tpu.memory_space<vmem>>, vector<1x48xf32>
    %6 = vector.broadcast %5 : vector<1x48xf32> to vector<16x48xf32>
    %7 = arith.addf %4, %6 : vector<16x48xf32>
    %8 = vector.shape_cast %7 : vector<16x48xf32> to vector<8x2x48xf32>
    %c0_9 = arith.constant 0 : index
    %c0_10 = arith.constant 0 : index
    %9 = vector.load %arg6[%c0_9, %c0_10] : memref<16x48xf32, #tpu.memory_space<vmem>>, vector<16x48xf32>
    %c0_11 = arith.constant 0 : index
    %c0_12 = arith.constant 0 : index
    %10 = vector.load %arg7[%c0_11, %c0_12] : memref<1x16xf32, #tpu.memory_space<vmem>>, vector<1x16xf32>
    %cst_13 = arith.constant 0.000000e+00 : f32
    %11 = vector.broadcast %cst_13 : f32 to vector<2x16xf32>
    %cst_14 = arith.constant dense<0.000000e+00> : vector<2x48xf32>
    %12 = tpu.matmul %11, %9, %cst_14 {dimension_numbers = #tpu.dot_dimension_numbers<[1], [0], [0], [1], [0, 0, 1, 1], [], []>} : vector<2x16xf32>, vector<16x48xf32>, vector<2x48xf32> -> vector<2x48xf32>
    %13 = vector.extract_strided_slice %8 {offsets = [0, 0, 0], sizes = [1, 2, 48], strides = [1, 1, 1]} : vector<8x2x48xf32> to vector<1x2x48xf32>
    %14 = vector.shape_cast %13 : vector<1x2x48xf32> to vector<2x48xf32>
    %15 = vector.extract_strided_slice %14 {offsets = [0, 0], sizes = [2, 16], strides = [1, 1]} : vector<2x48xf32> to vector<2x16xf32>
    %16 = vector.extract_strided_slice %12 {offsets = [0, 0], sizes = [2, 16], strides = [1, 1]} : vector<2x48xf32> to vector<2x16xf32>
    %17 = arith.addf %15, %16 : vector<2x16xf32>
    %18 = arith.negf %17 : vector<2x16xf32>
    %19 = math.exp %18 : vector<2x16xf32>
    %cst_15 = arith.constant 1.000000e+00 : f32
    %20 = vector.broadcast %cst_15 : f32 to vector<2x16xf32>
    %21 = arith.addf %20, %19 : vector<2x16xf32>
    %22 = arith.divf %20, %21 : vector<2x16xf32>
    %23 = vector.extract_strided_slice %14 {offsets = [0, 16], sizes = [2, 16], strides = [1, 1]} : vector<2x48xf32> to vector<2x16xf32>
    %24 = vector.extract_strided_slice %12 {offsets = [0, 16], sizes = [2, 16], strides = [1, 1]} : vector<2x48xf32> to vector<2x16xf32>
    %25 = arith.addf %23, %24 : vector<2x16xf32>
    %26 = arith.negf %25 : vector<2x16xf32>
    %27 = math.exp %26 : vector<2x16xf32>
    %cst_16 = arith.constant 1.000000e+00 : f32
    %28 = vector.broadcast %cst_16 : f32 to vector<2x16xf32>
    %29 = arith.addf %28, %27 : vector<2x16xf32>
    %30 = arith.divf %28, %29 : vector<2x16xf32>
    %31 = vector.extract_strided_slice %14 {offsets = [0, 32], sizes = [2, 16], strides = [1, 1]} : vector<2x48xf32> to vector<2x16xf32>
    %32 = vector.extract_strided_slice %12 {offsets = [0, 32], sizes = [2, 16], strides = [1, 1]} : vector<2x48xf32> to vector<2x16xf32>
    %33 = vector.broadcast %10 : vector<1x16xf32> to vector<2x16xf32>
    %34 = arith.addf %32, %33 : vector<2x16xf32>
    %35 = arith.mulf %22, %34 : vector<2x16xf32>
    %36 = arith.addf %31, %35 : vector<2x16xf32>
    %37 = math.tanh %36 : vector<2x16xf32>
    %cst_17 = arith.constant 1.000000e+00 : f32
    %38 = vector.broadcast %cst_17 : f32 to vector<2x16xf32>
    %39 = arith.subf %38, %30 : vector<2x16xf32>
    %40 = arith.mulf %39, %37 : vector<2x16xf32>
    %41 = arith.mulf %30, %11 : vector<2x16xf32>
    %42 = arith.addf %40, %41 : vector<2x16xf32>
    %43 = vector.extract_strided_slice %42 {offsets = [0, 0], sizes = [2, 8], strides = [1, 1]} : vector<2x16xf32> to vector<2x8xf32>
    %44 = vector.extract_strided_slice %42 {offsets = [0, 8], sizes = [2, 8], strides = [1, 1]} : vector<2x16xf32> to vector<2x8xf32>
    %cst_18 = arith.constant dense<0.000000e+00> : vector<2x48xf32>
    %45 = tpu.matmul %42, %9, %cst_18 {dimension_numbers = #tpu.dot_dimension_numbers<[1], [0], [0], [1], [0, 0, 1, 1], [], []>} : vector<2x16xf32>, vector<16x48xf32>, vector<2x48xf32> -> vector<2x48xf32>
    %46 = vector.extract_strided_slice %8 {offsets = [1, 0, 0], sizes = [1, 2, 48], strides = [1, 1, 1]} : vector<8x2x48xf32> to vector<1x2x48xf32>
    %47 = vector.shape_cast %46 : vector<1x2x48xf32> to vector<2x48xf32>
    %48 = vector.extract_strided_slice %47 {offsets = [0, 0], sizes = [2, 16], strides = [1, 1]} : vector<2x48xf32> to vector<2x16xf32>
    %49 = vector.extract_strided_slice %45 {offsets = [0, 0], sizes = [2, 16], strides = [1, 1]} : vector<2x48xf32> to vector<2x16xf32>
    %50 = arith.addf %48, %49 : vector<2x16xf32>
    %51 = arith.negf %50 : vector<2x16xf32>
    %52 = math.exp %51 : vector<2x16xf32>
    %cst_19 = arith.constant 1.000000e+00 : f32
    %53 = vector.broadcast %cst_19 : f32 to vector<2x16xf32>
    %54 = arith.addf %53, %52 : vector<2x16xf32>
    %55 = arith.divf %53, %54 : vector<2x16xf32>
    %56 = vector.extract_strided_slice %47 {offsets = [0, 16], sizes = [2, 16], strides = [1, 1]} : vector<2x48xf32> to vector<2x16xf32>
    %57 = vector.extract_strided_slice %45 {offsets = [0, 16], sizes = [2, 16], strides = [1, 1]} : vector<2x48xf32> to vector<2x16xf32>
    %58 = arith.addf %56, %57 : vector<2x16xf32>
    %59 = arith.negf %58 : vector<2x16xf32>
    %60 = math.exp %59 : vector<2x16xf32>
    %cst_20 = arith.constant 1.000000e+00 : f32
    %61 = vector.broadcast %cst_20 : f32 to vector<2x16xf32>
    %62 = arith.addf %61, %60 : vector<2x16xf32>
    %63 = arith.divf %61, %62 : vector<2x16xf32>
    %64 = vector.extract_strided_slice %47 {offsets = [0, 32], sizes = [2, 16], strides = [1, 1]} : vector<2x48xf32> to vector<2x16xf32>
    %65 = vector.extract_strided_slice %45 {offsets = [0, 32], sizes = [2, 16], strides = [1, 1]} : vector<2x48xf32> to vector<2x16xf32>
    %66 = vector.broadcast %10 : vector<1x16xf32> to vector<2x16xf32>
    %67 = arith.addf %65, %66 : vector<2x16xf32>
    %68 = arith.mulf %55, %67 : vector<2x16xf32>
    %69 = arith.addf %64, %68 : vector<2x16xf32>
    %70 = math.tanh %69 : vector<2x16xf32>
    %cst_21 = arith.constant 1.000000e+00 : f32
    %71 = vector.broadcast %cst_21 : f32 to vector<2x16xf32>
    %72 = arith.subf %71, %63 : vector<2x16xf32>
    %73 = arith.mulf %72, %70 : vector<2x16xf32>
    %74 = arith.mulf %63, %42 : vector<2x16xf32>
    %75 = arith.addf %73, %74 : vector<2x16xf32>
    %76 = vector.extract_strided_slice %75 {offsets = [0, 0], sizes = [2, 8], strides = [1, 1]} : vector<2x16xf32> to vector<2x8xf32>
    %77 = vector.extract_strided_slice %75 {offsets = [0, 8], sizes = [2, 8], strides = [1, 1]} : vector<2x16xf32> to vector<2x8xf32>
    %cst_22 = arith.constant dense<0.000000e+00> : vector<2x48xf32>
    %78 = tpu.matmul %75, %9, %cst_22 {dimension_numbers = #tpu.dot_dimension_numbers<[1], [0], [0], [1], [0, 0, 1, 1], [], []>} : vector<2x16xf32>, vector<16x48xf32>, vector<2x48xf32> -> vector<2x48xf32>
    %79 = vector.extract_strided_slice %8 {offsets = [2, 0, 0], sizes = [1, 2, 48], strides = [1, 1, 1]} : vector<8x2x48xf32> to vector<1x2x48xf32>
    %80 = vector.shape_cast %79 : vector<1x2x48xf32> to vector<2x48xf32>
    %81 = vector.extract_strided_slice %80 {offsets = [0, 0], sizes = [2, 16], strides = [1, 1]} : vector<2x48xf32> to vector<2x16xf32>
    %82 = vector.extract_strided_slice %78 {offsets = [0, 0], sizes = [2, 16], strides = [1, 1]} : vector<2x48xf32> to vector<2x16xf32>
    %83 = arith.addf %81, %82 : vector<2x16xf32>
    %84 = arith.negf %83 : vector<2x16xf32>
    %85 = math.exp %84 : vector<2x16xf32>
    %cst_23 = arith.constant 1.000000e+00 : f32
    %86 = vector.broadcast %cst_23 : f32 to vector<2x16xf32>
    %87 = arith.addf %86, %85 : vector<2x16xf32>
    %88 = arith.divf %86, %87 : vector<2x16xf32>
    %89 = vector.extract_strided_slice %80 {offsets = [0, 16], sizes = [2, 16], strides = [1, 1]} : vector<2x48xf32> to vector<2x16xf32>
    %90 = vector.extract_strided_slice %78 {offsets = [0, 16], sizes = [2, 16], strides = [1, 1]} : vector<2x48xf32> to vector<2x16xf32>
    %91 = arith.addf %89, %90 : vector<2x16xf32>
    %92 = arith.negf %91 : vector<2x16xf32>
    %93 = math.exp %92 : vector<2x16xf32>
    %cst_24 = arith.constant 1.000000e+00 : f32
    %94 = vector.broadcast %cst_24 : f32 to vector<2x16xf32>
    %95 = arith.addf %94, %93 : vector<2x16xf32>
    %96 = arith.divf %94, %95 : vector<2x16xf32>
    %97 = vector.extract_strided_slice %80 {offsets = [0, 32], sizes = [2, 16], strides = [1, 1]} : vector<2x48xf32> to vector<2x16xf32>
    %98 = vector.extract_strided_slice %78 {offsets = [0, 32], sizes = [2, 16], strides = [1, 1]} : vector<2x48xf32> to vector<2x16xf32>
    %99 = vector.broadcast %10 : vector<1x16xf32> to vector<2x16xf32>
    %100 = arith.addf %98, %99 : vector<2x16xf32>
    %101 = arith.mulf %88, %100 : vector<2x16xf32>
    %102 = arith.addf %97, %101 : vector<2x16xf32>
    %103 = math.tanh %102 : vector<2x16xf32>
    %cst_25 = arith.constant 1.000000e+00 : f32
    %104 = vector.broadcast %cst_25 : f32 to vector<2x16xf32>
    %105 = arith.subf %104, %96 : vector<2x16xf32>
    %106 = arith.mulf %105, %103 : vector<2x16xf32>
    %107 = arith.mulf %96, %75 : vector<2x16xf32>
    %108 = arith.addf %106, %107 : vector<2x16xf32>
    %109 = vector.extract_strided_slice %108 {offsets = [0, 0], sizes = [2, 8], strides = [1, 1]} : vector<2x16xf32> to vector<2x8xf32>
    %110 = vector.extract_strided_slice %108 {offsets = [0, 8], sizes = [2, 8], strides = [1, 1]} : vector<2x16xf32> to vector<2x8xf32>
    %cst_26 = arith.constant dense<0.000000e+00> : vector<2x48xf32>
    %111 = tpu.matmul %108, %9, %cst_26 {dimension_numbers = #tpu.dot_dimension_numbers<[1], [0], [0], [1], [0, 0, 1, 1], [], []>} : vector<2x16xf32>, vector<16x48xf32>, vector<2x48xf32> -> vector<2x48xf32>
    %112 = vector.extract_strided_slice %8 {offsets = [3, 0, 0], sizes = [1, 2, 48], strides = [1, 1, 1]} : vector<8x2x48xf32> to vector<1x2x48xf32>
    %113 = vector.shape_cast %112 : vector<1x2x48xf32> to vector<2x48xf32>
    %114 = vector.extract_strided_slice %113 {offsets = [0, 0], sizes = [2, 16], strides = [1, 1]} : vector<2x48xf32> to vector<2x16xf32>
    %115 = vector.extract_strided_slice %111 {offsets = [0, 0], sizes = [2, 16], strides = [1, 1]} : vector<2x48xf32> to vector<2x16xf32>
    %116 = arith.addf %114, %115 : vector<2x16xf32>
    %117 = arith.negf %116 : vector<2x16xf32>
    %118 = math.exp %117 : vector<2x16xf32>
    %cst_27 = arith.constant 1.000000e+00 : f32
    %119 = vector.broadcast %cst_27 : f32 to vector<2x16xf32>
    %120 = arith.addf %119, %118 : vector<2x16xf32>
    %121 = arith.divf %119, %120 : vector<2x16xf32>
    %122 = vector.extract_strided_slice %113 {offsets = [0, 16], sizes = [2, 16], strides = [1, 1]} : vector<2x48xf32> to vector<2x16xf32>
    %123 = vector.extract_strided_slice %111 {offsets = [0, 16], sizes = [2, 16], strides = [1, 1]} : vector<2x48xf32> to vector<2x16xf32>
    %124 = arith.addf %122, %123 : vector<2x16xf32>
    %125 = arith.negf %124 : vector<2x16xf32>
    %126 = math.exp %125 : vector<2x16xf32>
    %cst_28 = arith.constant 1.000000e+00 : f32
    %127 = vector.broadcast %cst_28 : f32 to vector<2x16xf32>
    %128 = arith.addf %127, %126 : vector<2x16xf32>
    %129 = arith.divf %127, %128 : vector<2x16xf32>
    %130 = vector.extract_strided_slice %113 {offsets = [0, 32], sizes = [2, 16], strides = [1, 1]} : vector<2x48xf32> to vector<2x16xf32>
    %131 = vector.extract_strided_slice %111 {offsets = [0, 32], sizes = [2, 16], strides = [1, 1]} : vector<2x48xf32> to vector<2x16xf32>
    %132 = vector.broadcast %10 : vector<1x16xf32> to vector<2x16xf32>
    %133 = arith.addf %131, %132 : vector<2x16xf32>
    %134 = arith.mulf %121, %133 : vector<2x16xf32>
    %135 = arith.addf %130, %134 : vector<2x16xf32>
    %136 = math.tanh %135 : vector<2x16xf32>
    %cst_29 = arith.constant 1.000000e+00 : f32
    %137 = vector.broadcast %cst_29 : f32 to vector<2x16xf32>
    %138 = arith.subf %137, %129 : vector<2x16xf32>
    %139 = arith.mulf %138, %136 : vector<2x16xf32>
    %140 = arith.mulf %129, %108 : vector<2x16xf32>
    %141 = arith.addf %139, %140 : vector<2x16xf32>
    %142 = vector.extract_strided_slice %141 {offsets = [0, 0], sizes = [2, 8], strides = [1, 1]} : vector<2x16xf32> to vector<2x8xf32>
    %143 = vector.extract_strided_slice %141 {offsets = [0, 8], sizes = [2, 8], strides = [1, 1]} : vector<2x16xf32> to vector<2x8xf32>
    %cst_30 = arith.constant dense<0.000000e+00> : vector<2x48xf32>
    %144 = tpu.matmul %141, %9, %cst_30 {dimension_numbers = #tpu.dot_dimension_numbers<[1], [0], [0], [1], [0, 0, 1, 1], [], []>} : vector<2x16xf32>, vector<16x48xf32>, vector<2x48xf32> -> vector<2x48xf32>
    %145 = vector.extract_strided_slice %8 {offsets = [4, 0, 0], sizes = [1, 2, 48], strides = [1, 1, 1]} : vector<8x2x48xf32> to vector<1x2x48xf32>
    %146 = vector.shape_cast %145 : vector<1x2x48xf32> to vector<2x48xf32>
    %147 = vector.extract_strided_slice %146 {offsets = [0, 0], sizes = [2, 16], strides = [1, 1]} : vector<2x48xf32> to vector<2x16xf32>
    %148 = vector.extract_strided_slice %144 {offsets = [0, 0], sizes = [2, 16], strides = [1, 1]} : vector<2x48xf32> to vector<2x16xf32>
    %149 = arith.addf %147, %148 : vector<2x16xf32>
    %150 = arith.negf %149 : vector<2x16xf32>
    %151 = math.exp %150 : vector<2x16xf32>
    %cst_31 = arith.constant 1.000000e+00 : f32
    %152 = vector.broadcast %cst_31 : f32 to vector<2x16xf32>
    %153 = arith.addf %152, %151 : vector<2x16xf32>
    %154 = arith.divf %152, %153 : vector<2x16xf32>
    %155 = vector.extract_strided_slice %146 {offsets = [0, 16], sizes = [2, 16], strides = [1, 1]} : vector<2x48xf32> to vector<2x16xf32>
    %156 = vector.extract_strided_slice %144 {offsets = [0, 16], sizes = [2, 16], strides = [1, 1]} : vector<2x48xf32> to vector<2x16xf32>
    %157 = arith.addf %155, %156 : vector<2x16xf32>
    %158 = arith.negf %157 : vector<2x16xf32>
    %159 = math.exp %158 : vector<2x16xf32>
    %cst_32 = arith.constant 1.000000e+00 : f32
    %160 = vector.broadcast %cst_32 : f32 to vector<2x16xf32>
    %161 = arith.addf %160, %159 : vector<2x16xf32>
    %162 = arith.divf %160, %161 : vector<2x16xf32>
    %163 = vector.extract_strided_slice %146 {offsets = [0, 32], sizes = [2, 16], strides = [1, 1]} : vector<2x48xf32> to vector<2x16xf32>
    %164 = vector.extract_strided_slice %144 {offsets = [0, 32], sizes = [2, 16], strides = [1, 1]} : vector<2x48xf32> to vector<2x16xf32>
    %165 = vector.broadcast %10 : vector<1x16xf32> to vector<2x16xf32>
    %166 = arith.addf %164, %165 : vector<2x16xf32>
    %167 = arith.mulf %154, %166 : vector<2x16xf32>
    %168 = arith.addf %163, %167 : vector<2x16xf32>
    %169 = math.tanh %168 : vector<2x16xf32>
    %cst_33 = arith.constant 1.000000e+00 : f32
    %170 = vector.broadcast %cst_33 : f32 to vector<2x16xf32>
    %171 = arith.subf %170, %162 : vector<2x16xf32>
    %172 = arith.mulf %171, %169 : vector<2x16xf32>
    %173 = arith.mulf %162, %141 : vector<2x16xf32>
    %174 = arith.addf %172, %173 : vector<2x16xf32>
    %175 = vector.extract_strided_slice %174 {offsets = [0, 0], sizes = [2, 8], strides = [1, 1]} : vector<2x16xf32> to vector<2x8xf32>
    %176 = vector.extract_strided_slice %174 {offsets = [0, 8], sizes = [2, 8], strides = [1, 1]} : vector<2x16xf32> to vector<2x8xf32>
    %cst_34 = arith.constant dense<0.000000e+00> : vector<2x48xf32>
    %177 = tpu.matmul %174, %9, %cst_34 {dimension_numbers = #tpu.dot_dimension_numbers<[1], [0], [0], [1], [0, 0, 1, 1], [], []>} : vector<2x16xf32>, vector<16x48xf32>, vector<2x48xf32> -> vector<2x48xf32>
    %178 = vector.extract_strided_slice %8 {offsets = [5, 0, 0], sizes = [1, 2, 48], strides = [1, 1, 1]} : vector<8x2x48xf32> to vector<1x2x48xf32>
    %179 = vector.shape_cast %178 : vector<1x2x48xf32> to vector<2x48xf32>
    %180 = vector.extract_strided_slice %179 {offsets = [0, 0], sizes = [2, 16], strides = [1, 1]} : vector<2x48xf32> to vector<2x16xf32>
    %181 = vector.extract_strided_slice %177 {offsets = [0, 0], sizes = [2, 16], strides = [1, 1]} : vector<2x48xf32> to vector<2x16xf32>
    %182 = arith.addf %180, %181 : vector<2x16xf32>
    %183 = arith.negf %182 : vector<2x16xf32>
    %184 = math.exp %183 : vector<2x16xf32>
    %cst_35 = arith.constant 1.000000e+00 : f32
    %185 = vector.broadcast %cst_35 : f32 to vector<2x16xf32>
    %186 = arith.addf %185, %184 : vector<2x16xf32>
    %187 = arith.divf %185, %186 : vector<2x16xf32>
    %188 = vector.extract_strided_slice %179 {offsets = [0, 16], sizes = [2, 16], strides = [1, 1]} : vector<2x48xf32> to vector<2x16xf32>
    %189 = vector.extract_strided_slice %177 {offsets = [0, 16], sizes = [2, 16], strides = [1, 1]} : vector<2x48xf32> to vector<2x16xf32>
    %190 = arith.addf %188, %189 : vector<2x16xf32>
    %191 = arith.negf %190 : vector<2x16xf32>
    %192 = math.exp %191 : vector<2x16xf32>
    %cst_36 = arith.constant 1.000000e+00 : f32
    %193 = vector.broadcast %cst_36 : f32 to vector<2x16xf32>
    %194 = arith.addf %193, %192 : vector<2x16xf32>
    %195 = arith.divf %193, %194 : vector<2x16xf32>
    %196 = vector.extract_strided_slice %179 {offsets = [0, 32], sizes = [2, 16], strides = [1, 1]} : vector<2x48xf32> to vector<2x16xf32>
    %197 = vector.extract_strided_slice %177 {offsets = [0, 32], sizes = [2, 16], strides = [1, 1]} : vector<2x48xf32> to vector<2x16xf32>
    %198 = vector.broadcast %10 : vector<1x16xf32> to vector<2x16xf32>
    %199 = arith.addf %197, %198 : vector<2x16xf32>
    %200 = arith.mulf %187, %199 : vector<2x16xf32>
    %201 = arith.addf %196, %200 : vector<2x16xf32>
    %202 = math.tanh %201 : vector<2x16xf32>
    %cst_37 = arith.constant 1.000000e+00 : f32
    %203 = vector.broadcast %cst_37 : f32 to vector<2x16xf32>
    %204 = arith.subf %203, %195 : vector<2x16xf32>
    %205 = arith.mulf %204, %202 : vector<2x16xf32>
    %206 = arith.mulf %195, %174 : vector<2x16xf32>
    %207 = arith.addf %205, %206 : vector<2x16xf32>
    %208 = vector.extract_strided_slice %207 {offsets = [0, 0], sizes = [2, 8], strides = [1, 1]} : vector<2x16xf32> to vector<2x8xf32>
    %209 = vector.extract_strided_slice %207 {offsets = [0, 8], sizes = [2, 8], strides = [1, 1]} : vector<2x16xf32> to vector<2x8xf32>
    %cst_38 = arith.constant dense<0.000000e+00> : vector<2x48xf32>
    %210 = tpu.matmul %207, %9, %cst_38 {dimension_numbers = #tpu.dot_dimension_numbers<[1], [0], [0], [1], [0, 0, 1, 1], [], []>} : vector<2x16xf32>, vector<16x48xf32>, vector<2x48xf32> -> vector<2x48xf32>
    %211 = vector.extract_strided_slice %8 {offsets = [6, 0, 0], sizes = [1, 2, 48], strides = [1, 1, 1]} : vector<8x2x48xf32> to vector<1x2x48xf32>
    %212 = vector.shape_cast %211 : vector<1x2x48xf32> to vector<2x48xf32>
    %213 = vector.extract_strided_slice %212 {offsets = [0, 0], sizes = [2, 16], strides = [1, 1]} : vector<2x48xf32> to vector<2x16xf32>
    %214 = vector.extract_strided_slice %210 {offsets = [0, 0], sizes = [2, 16], strides = [1, 1]} : vector<2x48xf32> to vector<2x16xf32>
    %215 = arith.addf %213, %214 : vector<2x16xf32>
    %216 = arith.negf %215 : vector<2x16xf32>
    %217 = math.exp %216 : vector<2x16xf32>
    %cst_39 = arith.constant 1.000000e+00 : f32
    %218 = vector.broadcast %cst_39 : f32 to vector<2x16xf32>
    %219 = arith.addf %218, %217 : vector<2x16xf32>
    %220 = arith.divf %218, %219 : vector<2x16xf32>
    %221 = vector.extract_strided_slice %212 {offsets = [0, 16], sizes = [2, 16], strides = [1, 1]} : vector<2x48xf32> to vector<2x16xf32>
    %222 = vector.extract_strided_slice %210 {offsets = [0, 16], sizes = [2, 16], strides = [1, 1]} : vector<2x48xf32> to vector<2x16xf32>
    %223 = arith.addf %221, %222 : vector<2x16xf32>
    %224 = arith.negf %223 : vector<2x16xf32>
    %225 = math.exp %224 : vector<2x16xf32>
    %cst_40 = arith.constant 1.000000e+00 : f32
    %226 = vector.broadcast %cst_40 : f32 to vector<2x16xf32>
    %227 = arith.addf %226, %225 : vector<2x16xf32>
    %228 = arith.divf %226, %227 : vector<2x16xf32>
    %229 = vector.extract_strided_slice %212 {offsets = [0, 32], sizes = [2, 16], strides = [1, 1]} : vector<2x48xf32> to vector<2x16xf32>
    %230 = vector.extract_strided_slice %210 {offsets = [0, 32], sizes = [2, 16], strides = [1, 1]} : vector<2x48xf32> to vector<2x16xf32>
    %231 = vector.broadcast %10 : vector<1x16xf32> to vector<2x16xf32>
    %232 = arith.addf %230, %231 : vector<2x16xf32>
    %233 = arith.mulf %220, %232 : vector<2x16xf32>
    %234 = arith.addf %229, %233 : vector<2x16xf32>
    %235 = math.tanh %234 : vector<2x16xf32>
    %cst_41 = arith.constant 1.000000e+00 : f32
    %236 = vector.broadcast %cst_41 : f32 to vector<2x16xf32>
    %237 = arith.subf %236, %228 : vector<2x16xf32>
    %238 = arith.mulf %237, %235 : vector<2x16xf32>
    %239 = arith.mulf %228, %207 : vector<2x16xf32>
    %240 = arith.addf %238, %239 : vector<2x16xf32>
    %241 = vector.extract_strided_slice %240 {offsets = [0, 0], sizes = [2, 8], strides = [1, 1]} : vector<2x16xf32> to vector<2x8xf32>
    %242 = vector.extract_strided_slice %240 {offsets = [0, 8], sizes = [2, 8], strides = [1, 1]} : vector<2x16xf32> to vector<2x8xf32>
    %cst_42 = arith.constant dense<0.000000e+00> : vector<2x48xf32>
    %243 = tpu.matmul %240, %9, %cst_42 {dimension_numbers = #tpu.dot_dimension_numbers<[1], [0], [0], [1], [0, 0, 1, 1], [], []>} : vector<2x16xf32>, vector<16x48xf32>, vector<2x48xf32> -> vector<2x48xf32>
    %244 = vector.extract_strided_slice %8 {offsets = [7, 0, 0], sizes = [1, 2, 48], strides = [1, 1, 1]} : vector<8x2x48xf32> to vector<1x2x48xf32>
    %245 = vector.shape_cast %244 : vector<1x2x48xf32> to vector<2x48xf32>
    %246 = vector.extract_strided_slice %245 {offsets = [0, 0], sizes = [2, 16], strides = [1, 1]} : vector<2x48xf32> to vector<2x16xf32>
    %247 = vector.extract_strided_slice %243 {offsets = [0, 0], sizes = [2, 16], strides = [1, 1]} : vector<2x48xf32> to vector<2x16xf32>
    %248 = arith.addf %246, %247 : vector<2x16xf32>
    %249 = arith.negf %248 : vector<2x16xf32>
    %250 = math.exp %249 : vector<2x16xf32>
    %cst_43 = arith.constant 1.000000e+00 : f32
    %251 = vector.broadcast %cst_43 : f32 to vector<2x16xf32>
    %252 = arith.addf %251, %250 : vector<2x16xf32>
    %253 = arith.divf %251, %252 : vector<2x16xf32>
    %254 = vector.extract_strided_slice %245 {offsets = [0, 16], sizes = [2, 16], strides = [1, 1]} : vector<2x48xf32> to vector<2x16xf32>
    %255 = vector.extract_strided_slice %243 {offsets = [0, 16], sizes = [2, 16], strides = [1, 1]} : vector<2x48xf32> to vector<2x16xf32>
    %256 = arith.addf %254, %255 : vector<2x16xf32>
    %257 = arith.negf %256 : vector<2x16xf32>
    %258 = math.exp %257 : vector<2x16xf32>
    %cst_44 = arith.constant 1.000000e+00 : f32
    %259 = vector.broadcast %cst_44 : f32 to vector<2x16xf32>
    %260 = arith.addf %259, %258 : vector<2x16xf32>
    %261 = arith.divf %259, %260 : vector<2x16xf32>
    %262 = vector.extract_strided_slice %245 {offsets = [0, 32], sizes = [2, 16], strides = [1, 1]} : vector<2x48xf32> to vector<2x16xf32>
    %263 = vector.extract_strided_slice %243 {offsets = [0, 32], sizes = [2, 16], strides = [1, 1]} : vector<2x48xf32> to vector<2x16xf32>
    %264 = vector.broadcast %10 : vector<1x16xf32> to vector<2x16xf32>
    %265 = arith.addf %263, %264 : vector<2x16xf32>
    %266 = arith.mulf %253, %265 : vector<2x16xf32>
    %267 = arith.addf %262, %266 : vector<2x16xf32>
    %268 = math.tanh %267 : vector<2x16xf32>
    %cst_45 = arith.constant 1.000000e+00 : f32
    %269 = vector.broadcast %cst_45 : f32 to vector<2x16xf32>
    %270 = arith.subf %269, %261 : vector<2x16xf32>
    %271 = arith.mulf %270, %268 : vector<2x16xf32>
    %272 = arith.mulf %261, %240 : vector<2x16xf32>
    %273 = arith.addf %271, %272 : vector<2x16xf32>
    %274 = vector.extract_strided_slice %273 {offsets = [0, 0], sizes = [2, 8], strides = [1, 1]} : vector<2x16xf32> to vector<2x8xf32>
    %275 = vector.extract_strided_slice %273 {offsets = [0, 8], sizes = [2, 8], strides = [1, 1]} : vector<2x16xf32> to vector<2x8xf32>
    %cst_46 = arith.constant 0.000000e+00 : f32
    %276 = vector.broadcast %cst_46 : f32 to vector<2x8xf32>
    %cst_47 = arith.constant 0.000000e+00 : f32
    %277 = vector.broadcast %cst_47 : f32 to vector<2x8xf32>
    %278 = vector.extract_strided_slice %0 {offsets = [0, 0, 0], sizes = [2, 1, 1], strides = [1, 1, 1]} : vector<2x8x1xf32> to vector<2x1x1xf32>
    %279 = vector.shape_cast %278 : vector<2x1x1xf32> to vector<2x1xf32>
    %280 = vector.broadcast %279 : vector<2x1xf32> to vector<2x8xf32>
    %281 = arith.mulf %43, %280 : vector<2x8xf32>
    %282 = vector.broadcast %279 : vector<2x1xf32> to vector<2x8xf32>
    %283 = arith.mulf %275, %282 : vector<2x8xf32>
    %284 = arith.addf %276, %281 : vector<2x8xf32>
    %285 = arith.addf %277, %283 : vector<2x8xf32>
    %286 = vector.extract_strided_slice %0 {offsets = [0, 1, 0], sizes = [2, 1, 1], strides = [1, 1, 1]} : vector<2x8x1xf32> to vector<2x1x1xf32>
    %287 = vector.shape_cast %286 : vector<2x1x1xf32> to vector<2x1xf32>
    %288 = vector.broadcast %287 : vector<2x1xf32> to vector<2x8xf32>
    %289 = arith.mulf %76, %288 : vector<2x8xf32>
    %290 = vector.broadcast %287 : vector<2x1xf32> to vector<2x8xf32>
    %291 = arith.mulf %242, %290 : vector<2x8xf32>
    %292 = arith.addf %284, %289 : vector<2x8xf32>
    %293 = arith.addf %285, %291 : vector<2x8xf32>
    %294 = vector.extract_strided_slice %0 {offsets = [0, 2, 0], sizes = [2, 1, 1], strides = [1, 1, 1]} : vector<2x8x1xf32> to vector<2x1x1xf32>
    %295 = vector.shape_cast %294 : vector<2x1x1xf32> to vector<2x1xf32>
    %296 = vector.broadcast %295 : vector<2x1xf32> to vector<2x8xf32>
    %297 = arith.mulf %109, %296 : vector<2x8xf32>
    %298 = vector.broadcast %295 : vector<2x1xf32> to vector<2x8xf32>
    %299 = arith.mulf %209, %298 : vector<2x8xf32>
    %300 = arith.addf %292, %297 : vector<2x8xf32>
    %301 = arith.addf %293, %299 : vector<2x8xf32>
    %302 = vector.extract_strided_slice %0 {offsets = [0, 3, 0], sizes = [2, 1, 1], strides = [1, 1, 1]} : vector<2x8x1xf32> to vector<2x1x1xf32>
    %303 = vector.shape_cast %302 : vector<2x1x1xf32> to vector<2x1xf32>
    %304 = vector.broadcast %303 : vector<2x1xf32> to vector<2x8xf32>
    %305 = arith.mulf %142, %304 : vector<2x8xf32>
    %306 = vector.broadcast %303 : vector<2x1xf32> to vector<2x8xf32>
    %307 = arith.mulf %176, %306 : vector<2x8xf32>
    %308 = arith.addf %300, %305 : vector<2x8xf32>
    %309 = arith.addf %301, %307 : vector<2x8xf32>
    %310 = vector.extract_strided_slice %0 {offsets = [0, 4, 0], sizes = [2, 1, 1], strides = [1, 1, 1]} : vector<2x8x1xf32> to vector<2x1x1xf32>
    %311 = vector.shape_cast %310 : vector<2x1x1xf32> to vector<2x1xf32>
    %312 = vector.broadcast %311 : vector<2x1xf32> to vector<2x8xf32>
    %313 = arith.mulf %175, %312 : vector<2x8xf32>
    %314 = vector.broadcast %311 : vector<2x1xf32> to vector<2x8xf32>
    %315 = arith.mulf %143, %314 : vector<2x8xf32>
    %316 = arith.addf %308, %313 : vector<2x8xf32>
    %317 = arith.addf %309, %315 : vector<2x8xf32>
    %318 = vector.extract_strided_slice %0 {offsets = [0, 5, 0], sizes = [2, 1, 1], strides = [1, 1, 1]} : vector<2x8x1xf32> to vector<2x1x1xf32>
    %319 = vector.shape_cast %318 : vector<2x1x1xf32> to vector<2x1xf32>
    %320 = vector.broadcast %319 : vector<2x1xf32> to vector<2x8xf32>
    %321 = arith.mulf %208, %320 : vector<2x8xf32>
    %322 = vector.broadcast %319 : vector<2x1xf32> to vector<2x8xf32>
    %323 = arith.mulf %110, %322 : vector<2x8xf32>
    %324 = arith.addf %316, %321 : vector<2x8xf32>
    %325 = arith.addf %317, %323 : vector<2x8xf32>
    %326 = vector.extract_strided_slice %0 {offsets = [0, 6, 0], sizes = [2, 1, 1], strides = [1, 1, 1]} : vector<2x8x1xf32> to vector<2x1x1xf32>
    %327 = vector.shape_cast %326 : vector<2x1x1xf32> to vector<2x1xf32>
    %328 = vector.broadcast %327 : vector<2x1xf32> to vector<2x8xf32>
    %329 = arith.mulf %241, %328 : vector<2x8xf32>
    %330 = vector.broadcast %327 : vector<2x1xf32> to vector<2x8xf32>
    %331 = arith.mulf %77, %330 : vector<2x8xf32>
    %332 = arith.addf %324, %329 : vector<2x8xf32>
    %333 = arith.addf %325, %331 : vector<2x8xf32>
    %334 = vector.extract_strided_slice %0 {offsets = [0, 7, 0], sizes = [2, 1, 1], strides = [1, 1, 1]} : vector<2x8x1xf32> to vector<2x1x1xf32>
    %335 = vector.shape_cast %334 : vector<2x1x1xf32> to vector<2x1xf32>
    %336 = vector.broadcast %335 : vector<2x1xf32> to vector<2x8xf32>
    %337 = arith.mulf %274, %336 : vector<2x8xf32>
    %338 = vector.broadcast %335 : vector<2x1xf32> to vector<2x8xf32>
    %339 = arith.mulf %44, %338 : vector<2x8xf32>
    %340 = arith.addf %332, %337 : vector<2x8xf32>
    %341 = arith.addf %333, %339 : vector<2x8xf32>
    %cst_48 = arith.constant dense<0.000000e+00> : vector<2x1xf32>
    %342 = vector.multi_reduction <add>, %0, %cst_48 [1] : vector<2x8x1xf32> to vector<2x1xf32>
    %cst_49 = arith.constant 1.000000e+00 : f32
    %343 = vector.broadcast %cst_49 : f32 to vector<2x1xf32>
    %344 = arith.maximumf %342, %343 : vector<2x1xf32>
    %345 = tpu.reciprocal %344 {approx = true} : vector<2x1xf32> -> vector<2x1xf32>
    %346 = tpu.concatenate %340, %341 in 1 : vector<2x8xf32>, vector<2x8xf32> -> vector<2x16xf32>
    %347 = vector.broadcast %345 : vector<2x1xf32> to vector<2x16xf32>
    %348 = arith.mulf %346, %347 : vector<2x16xf32>
    %cst_50 = arith.constant 0.000000e+00 : f32
    %349 = vector.broadcast %cst_50 : f32 to vector<2x2x16xf32>
    %c0_51 = arith.constant 0 : index
    %c0_52 = arith.constant 0 : index
    %c0_53 = arith.constant 0 : index
    %350 = vector.load %arg19[%c0_51, %c0_52, %c0_53] : memref<2x12x16xf32, #tpu.memory_space<vmem>>, vector<2x2x16xf32>
    tpu.vector_store %arg19[%c0_51, %c0_52, %c0_53], %349 {strides = array<i32>} : memref<2x12x16xf32, #tpu.memory_space<vmem>>, vector<2x2x16xf32>,
    %c0_54 = arith.constant 0 : index
    %c10 = arith.constant 10 : index
    %c0_55 = arith.constant 0 : index
    %351 = vector.load %arg19[%c0_54, %c10, %c0_55] : memref<2x12x16xf32, #tpu.memory_space<vmem>>, vector<2x2x16xf32>
    tpu.vector_store %arg19[%c0_54, %c10, %c0_55], %349 {strides = array<i32>} : memref<2x12x16xf32, #tpu.memory_space<vmem>>, vector<2x2x16xf32>,
    %352 = vector.shape_cast %281 : vector<2x8xf32> to vector<2x1x8xf32>
    %353 = vector.shape_cast %289 : vector<2x8xf32> to vector<2x1x8xf32>
    %354 = vector.shape_cast %297 : vector<2x8xf32> to vector<2x1x8xf32>
    %355 = vector.shape_cast %305 : vector<2x8xf32> to vector<2x1x8xf32>
    %356 = vector.shape_cast %313 : vector<2x8xf32> to vector<2x1x8xf32>
    %357 = vector.shape_cast %321 : vector<2x8xf32> to vector<2x1x8xf32>
    %358 = vector.shape_cast %329 : vector<2x8xf32> to vector<2x1x8xf32>
    %359 = vector.shape_cast %337 : vector<2x8xf32> to vector<2x1x8xf32>
    %360 = tpu.concatenate %352, %353, %354, %355, %356, %357, %358, %359 in 1 : vector<2x1x8xf32>, vector<2x1x8xf32>, vector<2x1x8xf32>, vector<2x1x8xf32>, vector<2x1x8xf32>, vector<2x1x8xf32>, vector<2x1x8xf32>, vector<2x1x8xf32> -> vector<2x8x8xf32>
    %361 = vector.shape_cast %283 : vector<2x8xf32> to vector<2x1x8xf32>
    %362 = vector.shape_cast %291 : vector<2x8xf32> to vector<2x1x8xf32>
    %363 = vector.shape_cast %299 : vector<2x8xf32> to vector<2x1x8xf32>
    %364 = vector.shape_cast %307 : vector<2x8xf32> to vector<2x1x8xf32>
    %365 = vector.shape_cast %315 : vector<2x8xf32> to vector<2x1x8xf32>
    %366 = vector.shape_cast %323 : vector<2x8xf32> to vector<2x1x8xf32>
    %367 = vector.shape_cast %331 : vector<2x8xf32> to vector<2x1x8xf32>
    %368 = vector.shape_cast %339 : vector<2x8xf32> to vector<2x1x8xf32>
    %369 = tpu.concatenate %361, %362, %363, %364, %365, %366, %367, %368 in 1 : vector<2x1x8xf32>, vector<2x1x8xf32>, vector<2x1x8xf32>, vector<2x1x8xf32>, vector<2x1x8xf32>, vector<2x1x8xf32>, vector<2x1x8xf32>, vector<2x1x8xf32> -> vector<2x8x8xf32>
    %370 = tpu.concatenate %360, %369 in 2 : vector<2x8x8xf32>, vector<2x8x8xf32> -> vector<2x8x16xf32>
    %c0_56 = arith.constant 0 : index
    %c2 = arith.constant 2 : index
    %c0_57 = arith.constant 0 : index
    %371 = vector.load %arg19[%c0_56, %c2, %c0_57] : memref<2x12x16xf32, #tpu.memory_space<vmem>>, vector<2x8x16xf32>
    tpu.vector_store %arg19[%c0_56, %c2, %c0_57], %370 {strides = array<i32>} : memref<2x12x16xf32, #tpu.memory_space<vmem>>, vector<2x8x16xf32>,
    %c0_58 = arith.constant 0 : index
    %c0_59 = arith.constant 0 : index
    %c0_60 = arith.constant 0 : index
    %372 = vector.load %arg8[%c0_58, %c0_59, %c0_60] : memref<3x16x8xf32, #tpu.memory_space<vmem>>, vector<3x16x8xf32>
    %cst_61 = arith.constant 0.000000e+00 : f32
    %373 = vector.broadcast %cst_61 : f32 to vector<20x8xf32>
    %c0_62 = arith.constant 0 : index
    %c0_63 = arith.constant 0 : index
    %c0_64 = arith.constant 0 : index
    %374 = vector.load %arg19[%c0_62, %c0_63, %c0_64] : memref<2x12x16xf32, #tpu.memory_space<vmem>>, vector<2x10x16xf32>
    %375 = vector.shape_cast %374 : vector<2x10x16xf32> to vector<20x16xf32>
    %376 = vector.extract_strided_slice %372 {offsets = [0, 0, 0], sizes = [1, 16, 8], strides = [1, 1, 1]} : vector<3x16x8xf32> to vector<1x16x8xf32>
    %377 = vector.shape_cast %376 : vector<1x16x8xf32> to vector<16x8xf32>
    %cst_65 = arith.constant dense<0.000000e+00> : vector<20x8xf32>
    %378 = tpu.matmul %375, %377, %cst_65 {dimension_numbers = #tpu.dot_dimension_numbers<[1], [0], [0], [1], [0, 0, 1, 1], [], []>} : vector<20x16xf32>, vector<16x8xf32>, vector<20x8xf32> -> vector<20x8xf32>
    %379 = arith.addf %373, %378 : vector<20x8xf32>
    %c0_66 = arith.constant 0 : index
    %c1 = arith.constant 1 : index
    %c0_67 = arith.constant 0 : index
    %380 = vector.load %arg19[%c0_66, %c1, %c0_67] : memref<2x12x16xf32, #tpu.memory_space<vmem>>, vector<2x10x16xf32>
    %381 = vector.shape_cast %380 : vector<2x10x16xf32> to vector<20x16xf32>
    %382 = vector.extract_strided_slice %372 {offsets = [1, 0, 0], sizes = [1, 16, 8], strides = [1, 1, 1]} : vector<3x16x8xf32> to vector<1x16x8xf32>
    %383 = vector.shape_cast %382 : vector<1x16x8xf32> to vector<16x8xf32>
    %cst_68 = arith.constant dense<0.000000e+00> : vector<20x8xf32>
    %384 = tpu.matmul %381, %383, %cst_68 {dimension_numbers = #tpu.dot_dimension_numbers<[1], [0], [0], [1], [0, 0, 1, 1], [], []>} : vector<20x16xf32>, vector<16x8xf32>, vector<20x8xf32> -> vector<20x8xf32>
    %385 = arith.addf %379, %384 : vector<20x8xf32>
    %c0_69 = arith.constant 0 : index
    %c2_70 = arith.constant 2 : index
    %c0_71 = arith.constant 0 : index
    %386 = vector.load %arg19[%c0_69, %c2_70, %c0_71] : memref<2x12x16xf32, #tpu.memory_space<vmem>>, vector<2x10x16xf32>
    %387 = vector.shape_cast %386 : vector<2x10x16xf32> to vector<20x16xf32>
    %388 = vector.extract_strided_slice %372 {offsets = [2, 0, 0], sizes = [1, 16, 8], strides = [1, 1, 1]} : vector<3x16x8xf32> to vector<1x16x8xf32>
    %389 = vector.shape_cast %388 : vector<1x16x8xf32> to vector<16x8xf32>
    %cst_72 = arith.constant dense<0.000000e+00> : vector<20x8xf32>
    %390 = tpu.matmul %387, %389, %cst_72 {dimension_numbers = #tpu.dot_dimension_numbers<[1], [0], [0], [1], [0, 0, 1, 1], [], []>} : vector<20x16xf32>, vector<16x8xf32>, vector<20x8xf32> -> vector<20x8xf32>
    %391 = arith.addf %385, %390 : vector<20x8xf32>
    %c0_73 = arith.constant 0 : index
    %c0_74 = arith.constant 0 : index
    %392 = vector.load %arg9[%c0_73, %c0_74] : memref<1x8xf32, #tpu.memory_space<vmem>>, vector<1x8xf32>
    %393 = vector.broadcast %392 : vector<1x8xf32> to vector<20x8xf32>
    %394 = arith.addf %391, %393 : vector<20x8xf32>
    %395 = vector.shape_cast %394 : vector<20x8xf32> to vector<2x10x8xf32>
    %396 = vector.extract_strided_slice %395 {offsets = [0, 1, 0], sizes = [2, 9, 4], strides = [1, 1, 1]} : vector<2x10x8xf32> to vector<2x9x4xf32>
    %cst_75 = arith.constant 0.000000e+00 : f32
    %397 = vector.broadcast %cst_75 : f32 to vector<2x9x4xf32>
    %398 = arith.maximumf %396, %397 : vector<2x9x4xf32>
    %cst_76 = arith.constant dense<0xFF800000> : vector<2x4xf32>
    %399 = vector.multi_reduction <maximumf>, %398, %cst_76 [1] : vector<2x9x4xf32> to vector<2x4xf32>
    %400 = vector.extract_strided_slice %395 {offsets = [0, 0, 4], sizes = [2, 10, 4], strides = [1, 1, 1]} : vector<2x10x8xf32> to vector<2x10x4xf32>
    %cst_77 = arith.constant 0.000000e+00 : f32
    %401 = vector.broadcast %cst_77 : f32 to vector<2x10x4xf32>
    %402 = arith.maximumf %400, %401 : vector<2x10x4xf32>
    %cst_78 = arith.constant dense<0xFF800000> : vector<2x4xf32>
    %403 = vector.multi_reduction <maximumf>, %402, %cst_78 [1] : vector<2x10x4xf32> to vector<2x4xf32>
    %c0_79 = arith.constant 0 : index
    %c0_80 = arith.constant 0 : index
    %c0_81 = arith.constant 0 : index
    %404 = vector.load %arg1[%c0_79, %c0_80, %c0_81] : memref<2x8x16xf32, #tpu.memory_space<vmem>>, vector<2x8x16xf32>
    %405 = vector.shape_cast %404 : vector<2x8x16xf32> to vector<16x16xf32>
    %c0_82 = arith.constant 0 : index
    %c0_83 = arith.constant 0 : index
    %406 = vector.load %arg10[%c0_82, %c0_83] : memref<16x4xf32, #tpu.memory_space<vmem>>, vector<16x4xf32>
    %cst_84 = arith.constant dense<0.000000e+00> : vector<16x4xf32>
    %407 = tpu.matmul %405, %406, %cst_84 {dimension_numbers = #tpu.dot_dimension_numbers<[1], [0], [0], [1], [0, 0, 1, 1], [], []>} : vector<16x16xf32>, vector<16x4xf32>, vector<16x4xf32> -> vector<16x4xf32>
    %408 = math.tanh %407 : vector<16x4xf32>
    %c0_85 = arith.constant 0 : index
    %c0_86 = arith.constant 0 : index
    %409 = vector.load %arg11[%c0_85, %c0_86] : memref<4x1xf32, #tpu.memory_space<vmem>>, vector<4x1xf32>
    %cst_87 = arith.constant dense<0.000000e+00> : vector<16x1xf32>
    %410 = tpu.matmul %408, %409, %cst_87 {dimension_numbers = #tpu.dot_dimension_numbers<[1], [0], [0], [1], [0, 0, 1, 1], [], []>} : vector<16x4xf32>, vector<4x1xf32>, vector<16x1xf32> -> vector<16x1xf32>
    %411 = vector.shape_cast %410 : vector<16x1xf32> to vector<2x8x1xf32>
    %cst_88 = arith.constant 0.000000e+00 : f32
    %412 = vector.broadcast %cst_88 : f32 to vector<2x8x1xf32>
    %413 = arith.cmpf ogt, %0, %412 : vector<2x8x1xf32>
    %cst_89 = arith.constant -1.000000e+30 : f32
    %414 = vector.broadcast %cst_89 : f32 to vector<2x8x1xf32>
    %415 = arith.select %413, %411, %414 : vector<2x8x1xi1>, vector<2x8x1xf32>
    %cst_90 = arith.constant dense<0xFF800000> : vector<2x1xf32>
    %416 = vector.multi_reduction <maximumf>, %415, %cst_90 [1] : vector<2x8x1xf32> to vector<2x1xf32>
    %417 = vector.shape_cast %416 : vector<2x1xf32> to vector<2x1x1xf32>
    %418 = vector.broadcast %417 : vector<2x1x1xf32> to vector<2x8x1xf32>
    %419 = arith.subf %415, %418 : vector<2x8x1xf32>
    %420 = math.exp %419 : vector<2x8x1xf32>
    %421 = arith.mulf %420, %0 : vector<2x8x1xf32>
    %cst_91 = arith.constant dense<0.000000e+00> : vector<2x1xf32>
    %422 = vector.multi_reduction <add>, %421, %cst_91 [1] : vector<2x8x1xf32> to vector<2x1xf32>
    %423 = vector.shape_cast %422 : vector<2x1xf32> to vector<2x1x1xf32>
    %cst_92 = arith.constant 1.000000e-30 : f32
    %424 = vector.broadcast %cst_92 : f32 to vector<2x1x1xf32>
    %425 = arith.maximumf %423, %424 : vector<2x1x1xf32>
    %426 = tpu.reciprocal %425 {approx = true} : vector<2x1x1xf32> -> vector<2x1x1xf32>
    %427 = vector.broadcast %426 : vector<2x1x1xf32> to vector<2x8x1xf32>
    %428 = arith.mulf %421, %427 : vector<2x8x1xf32>
    %429 = vector.broadcast %428 : vector<2x8x1xf32> to vector<2x8x16xf32>
    %430 = arith.mulf %429, %404 : vector<2x8x16xf32>
    %cst_93 = arith.constant dense<0.000000e+00> : vector<2x16xf32>
    %431 = vector.multi_reduction <add>, %430, %cst_93 [1] : vector<2x8x16xf32> to vector<2x16xf32>
    %cst_94 = arith.constant 1.250000e-01 : f32
    %432 = vector.broadcast %cst_94 : f32 to vector<2x16xf32>
    %433 = arith.mulf %431, %432 : vector<2x16xf32>
    %c0_95 = arith.constant 0 : index
    %c0_96 = arith.constant 0 : index
    %434 = vector.load %arg12[%c0_95, %c0_96] : memref<16x32xf32, #tpu.memory_space<vmem>>, vector<16x32xf32>
    %cst_97 = arith.constant dense<0.000000e+00> : vector<2x32xf32>
    %435 = tpu.matmul %348, %434, %cst_97 {dimension_numbers = #tpu.dot_dimension_numbers<[1], [0], [0], [1], [0, 0, 1, 1], [], []>} : vector<2x16xf32>, vector<16x32xf32>, vector<2x32xf32> -> vector<2x32xf32>
    %c0_98 = arith.constant 0 : index
    %c0_99 = arith.constant 0 : index
    %436 = vector.load %arg13[%c0_98, %c0_99] : memref<4x32xf32, #tpu.memory_space<vmem>>, vector<4x32xf32>
    %cst_100 = arith.constant dense<0.000000e+00> : vector<2x32xf32>
    %437 = tpu.matmul %399, %436, %cst_100 {dimension_numbers = #tpu.dot_dimension_numbers<[1], [0], [0], [1], [0, 0, 1, 1], [], []>} : vector<2x4xf32>, vector<4x32xf32>, vector<2x32xf32> -> vector<2x32xf32>
    %438 = arith.addf %435, %437 : vector<2x32xf32>
    %c0_101 = arith.constant 0 : index
    %c0_102 = arith.constant 0 : index
    %439 = vector.load %arg14[%c0_101, %c0_102] : memref<4x32xf32, #tpu.memory_space<vmem>>, vector<4x32xf32>
    %cst_103 = arith.constant dense<0.000000e+00> : vector<2x32xf32>
    %440 = tpu.matmul %403, %439, %cst_103 {dimension_numbers = #tpu.dot_dimension_numbers<[1], [0], [0], [1], [0, 0, 1, 1], [], []>} : vector<2x4xf32>, vector<4x32xf32>, vector<2x32xf32> -> vector<2x32xf32>
    %441 = arith.addf %438, %440 : vector<2x32xf32>
    %c0_104 = arith.constant 0 : index
    %c0_105 = arith.constant 0 : index
    %442 = vector.load %arg3[%c0_104, %c0_105] : memref<2x16xf32, #tpu.memory_space<vmem>>, vector<2x16xf32>
    %c0_106 = arith.constant 0 : index
    %c0_107 = arith.constant 0 : index
    %443 = vector.load %arg15[%c0_106, %c0_107] : memref<16x32xf32, #tpu.memory_space<vmem>>, vector<16x32xf32>
    %cst_108 = arith.constant dense<0.000000e+00> : vector<2x32xf32>
    %444 = tpu.matmul %442, %443, %cst_108 {dimension_numbers = #tpu.dot_dimension_numbers<[1], [0], [0], [1], [0, 0, 1, 1], [], []>} : vector<2x16xf32>, vector<16x32xf32>, vector<2x32xf32> -> vector<2x32xf32>
    %445 = arith.addf %441, %444 : vector<2x32xf32>
    %c0_109 = arith.constant 0 : index
    %c0_110 = arith.constant 0 : index
    %446 = vector.load %arg16[%c0_109, %c0_110] : memref<16x32xf32, #tpu.memory_space<vmem>>, vector<16x32xf32>
    %cst_111 = arith.constant dense<0.000000e+00> : vector<2x32xf32>
    %447 = tpu.matmul %433, %446, %cst_111 {dimension_numbers = #tpu.dot_dimension_numbers<[1], [0], [0], [1], [0, 0, 1, 1], [], []>} : vector<2x16xf32>, vector<16x32xf32>, vector<2x32xf32> -> vector<2x32xf32>
    %448 = arith.addf %445, %447 : vector<2x32xf32>
    %c0_112 = arith.constant 0 : index
    %c0_113 = arith.constant 0 : index
    %449 = vector.load %arg17[%c0_112, %c0_113] : memref<1x32xf32, #tpu.memory_space<vmem>>, vector<1x32xf32>
    %450 = vector.broadcast %449 : vector<1x32xf32> to vector<2x32xf32>
    %451 = arith.addf %448, %450 : vector<2x32xf32>
    %cst_114 = arith.constant 0.000000e+00 : f32
    %452 = vector.broadcast %cst_114 : f32 to vector<2x32xf32>
    %453 = arith.maximumf %451, %452 : vector<2x32xf32>
    %454 = arith.mulf %453, %453 : vector<2x32xf32>
    %cst_115 = arith.constant dense<0.000000e+00> : vector<2xf32>
    %455 = vector.multi_reduction <add>, %454, %cst_115 [1] : vector<2x32xf32> to vector<2xf32>
    %456 = vector.shape_cast %455 : vector<2xf32> to vector<2x1xf32>
    %cst_116 = arith.constant 9.99999996E-13 : f32
    %457 = vector.broadcast %cst_116 : f32 to vector<2x1xf32>
    %458 = arith.maximumf %456, %457 : vector<2x1xf32>
    %459 = math.rsqrt %458 : vector<2x1xf32>
    %460 = vector.broadcast %459 : vector<2x1xf32> to vector<2x32xf32>
    %461 = arith.mulf %453, %460 : vector<2x32xf32>
    %c0_117 = arith.constant 0 : index
    %c0_118 = arith.constant 0 : index
    %462 = vector.load %arg18[%c0_117, %c0_118] : memref<2x32xf32, #tpu.memory_space<vmem>>, vector<2x32xf32>
    tpu.vector_store %arg18[%c0_117, %c0_118], %461 {strides = array<i32>} : memref<2x32xf32, #tpu.memory_space<vmem>>, vector<2x32xf32>,
    return
  }
}

</mosaic_0001>

<llo_original>
// kernel: tpu_custom_call.1
$region0: #{tpu_custom_call.1}
  #allocation0 [shape = 'u32[]', space=smem, size = 0x4, offset = 0x4, fixed_abs, tag = 'smem constant byte address 0x4 - core index']
  #allocation1 [shape = 'u32[144,128]{1,0:T(1,128)}', space=vmem, size = 0x12000, scoped, tag = 'internal scratch']
  #allocation2 [shape = 'f32[2,12,16]{2,1,0:T(8,128)}', space=vmem, size = 0x4000, scoped, tag = 'scratch operand']
  %s0 = inlined_call_operand.vmem [shape: f32[8,2,32], index: 0, kind: input, shape index: {}]
  %s1 = inlined_call_operand.vmem [shape: f32[2,8,16], index: 1, kind: input, shape index: {}]
  %s2 = inlined_call_operand.vmem [shape: f32[2,8,1], index: 2, kind: input, shape index: {}]
  %s3 = inlined_call_operand.hbm [shape: f32[2,16], index: 3, kind: input, shape index: {}]
  %s4 = inlined_call_operand.vmem [shape: f32[32,48], index: 4, kind: input, shape index: {}]
  %s5 = inlined_call_operand.hbm [shape: f32[1,48], index: 5, kind: input, shape index: {}]
  %s6 = inlined_call_operand.vmem [shape: f32[16,48], index: 6, kind: input, shape index: {}]
  %s7 = inlined_call_operand.hbm [shape: f32[1,16], index: 7, kind: input, shape index: {}]
  %s8 = inlined_call_operand.vmem [shape: f32[3,16,8], index: 8, kind: input, shape index: {}]
  %s9 = inlined_call_operand.hbm [shape: f32[1,8], index: 9, kind: input, shape index: {}]
  %s10 = inlined_call_operand.vmem [shape: f32[16,4], index: 10, kind: input, shape index: {}]
  %s11 = inlined_call_operand.vmem [shape: f32[4,1], index: 11, kind: input, shape index: {}]
  %s12 = inlined_call_operand.vmem [shape: f32[16,32], index: 12, kind: input, shape index: {}]
  %s13 = inlined_call_operand.vmem [shape: f32[4,32], index: 13, kind: input, shape index: {}]
  %s14 = inlined_call_operand.vmem [shape: f32[4,32], index: 14, kind: input, shape index: {}]
  %s15 = inlined_call_operand.vmem [shape: f32[16,32], index: 15, kind: input, shape index: {}]
  %s16 = inlined_call_operand.vmem [shape: f32[16,32], index: 16, kind: input, shape index: {}]
  %s17 = inlined_call_operand.vmem [shape: f32[1,32], index: 17, kind: input, shape index: {}]
  %s18 = inlined_call_operand.hbm [shape: f32[2,32], index: 18, kind: output, shape index: {}]
  %s19 = sld [smem:[#allocation0]]
  $region98: #{tpu_custom_call.1} parent=0
    _
  %s21 = ssub.s32 1, %s19
  %s22 = scalar_select 0, %s21, %s19
  $region1: #{tpu_custom_call.1} parent=0
    #allocation3 [shape = 'u8[1024]{0}', space=vmem, size = 0x400, scoped, tag = 'input window, operand 3, single buffered']
    #allocation4 [shape = 's32[1]{0}', space=sflag, size = 0x4, scoped, tag = 'scoped memory for tpu_custom_call.1']
    #allocation5 [shape = 's32[1]{0}', space=sflag, size = 0x4, scoped, tag = 'scoped memory for tpu_custom_call.1']
    #allocation6 [shape = 'u8[512]{0}', space=vmem, size = 0x400, scoped, tag = 'input window, operand 5, single buffered']
    #allocation7 [shape = 's32[1]{0}', space=sflag, size = 0x4, scoped, tag = 'scoped memory for tpu_custom_call.1']
    #allocation8 [shape = 'u8[512]{0}', space=vmem, size = 0x400, scoped, tag = 'input window, operand 7, single buffered']
    #allocation9 [shape = 'u8[512]{0}', space=vmem, size = 0x400, scoped, tag = 'input window, operand 9, single buffered']
    #allocation10 [shape = 's32[1]{0}', space=sflag, size = 0x4, scoped, tag = 'scoped memory for tpu_custom_call.1']
    #allocation11 [shape = 'u8[1024]{0}', space=vmem, size = 0x400, scoped, tag = 'output window, operand 0, single buffered']
    %23 = vsyncpa [#allocation4], 0
    %24 = vsyncpa [#allocation7], 0
    %25 = vsyncpa [#allocation10], 0
    %26 = vsyncpa [#allocation5], 0
    // Predicated region
    $region2: #{tpu_custom_call.1} parent=1 // pred_check
      _
    $region3: #{tpu_custom_call.1} parent=1 // pred_check_branch
      %28 = sbr.rel (0) target = $region5
    $region4: #{tpu_custom_call.1} parent=1 // pred_region
      _
    $region5: #{tpu_custom_call.1} parent=1 // pred_fallthru
      _
    // Predicated region
    $region6: #{tpu_custom_call.1} parent=1 // pred_check
      _
    $region7: #{tpu_custom_call.1} parent=1 // pred_check_branch
      %30 = sbr.rel (0) target = $region9
    $region8: #{tpu_custom_call.1} parent=1 // pred_region
      _
    $region9: #{tpu_custom_call.1} parent=1 // pred_fallthru
      _
    // Predicated region
    $region10: #{tpu_custom_call.1} parent=1 // pred_check
      _
    $region11: #{tpu_custom_call.1} parent=1 // pred_check_branch
      %32 = sbr.rel (0) target = $region13
    $region12: #{tpu_custom_call.1} parent=1 // pred_region
      _
    $region13: #{tpu_custom_call.1} parent=1 // pred_fallthru
      _
    // Predicated region
    $region14: #{tpu_custom_call.1} parent=1 // pred_check
      _
    $region15: #{tpu_custom_call.1} parent=1 // pred_check_branch
      %34 = sbr.rel (0) target = $region17
    $region16: #{tpu_custom_call.1} parent=1 // pred_region
      %s36 = ssub.s32 32, 32
      %37 = vsyncadd [#allocation4], %s36
      %s39 = sshll.u32 [#allocation3], 4
      %s40 = int_to_ptr.vmem [resolvable:$true] %s39
      %42 = dma.hbm_to_vmem [thread:$0]  %s3, 32, %s40, [#allocation4]
    $region17: #{tpu_custom_call.1} parent=1 // pred_fallthru
      _
    // Predicated region
    $region18: #{tpu_custom_call.1} parent=1 // pred_check
      _
    $region19: #{tpu_custom_call.1} parent=1 // pred_check_branch
      %44 = sbr.rel (0) target = $region21
    $region20: #{tpu_custom_call.1} parent=1 // pred_region
      _
    $region21: #{tpu_custom_call.1} parent=1 // pred_fallthru
      _
    // Predicated region
    $region22: #{tpu_custom_call.1} parent=1 // pred_check
      _
    $region23: #{tpu_custom_call.1} parent=1 // pred_check_branch
      %46 = sbr.rel (0) target = $region25
    $region24: #{tpu_custom_call.1} parent=1 // pred_region
      %s48 = ssub.s32 16, 16
      %49 = vsyncadd [#allocation7], %s48
      %s51 = sshll.u32 [#allocation6], 4
      %s52 = int_to_ptr.vmem [resolvable:$true] %s51
      %54 = dma.hbm_to_vmem [thread:$0]  %s5, 16, %s52, [#allocation7]
    $region25: #{tpu_custom_call.1} parent=1 // pred_fallthru
      _
    // Predicated region
    $region26: #{tpu_custom_call.1} parent=1 // pred_check
      _
    $region27: #{tpu_custom_call.1} parent=1 // pred_check_branch
      %56 = sbr.rel (0) target = $region29
    $region28: #{tpu_custom_call.1} parent=1 // pred_region
      _
    $region29: #{tpu_custom_call.1} parent=1 // pred_fallthru
      _
    // Predicated region
    $region30: #{tpu_custom_call.1} parent=1 // pred_check
      _
    $region31: #{tpu_custom_call.1} parent=1 // pred_check_branch
      %58 = sbr.rel (0) target = $region33
    $region32: #{tpu_custom_call.1} parent=1 // pred_region
      %s60 = ssub.s32 16, 16
      %61 = vsyncadd [#allocation7], %s60
      %s63 = sshll.u32 [#allocation8], 4
      %s64 = int_to_ptr.vmem [resolvable:$true] %s63
      %66 = dma.hbm_to_vmem [thread:$0]  %s7, 16, %s64, [#allocation7]
    $region33: #{tpu_custom_call.1} parent=1 // pred_fallthru
      _
    // Predicated region
    $region34: #{tpu_custom_call.1} parent=1 // pred_check
      _
    $region35: #{tpu_custom_call.1} parent=1 // pred_check_branch
      %68 = sbr.rel (0) target = $region37
    $region36: #{tpu_custom_call.1} parent=1 // pred_region
      _
    $region37: #{tpu_custom_call.1} parent=1 // pred_fallthru
      _
    // Predicated region
    $region38: #{tpu_custom_call.1} parent=1 // pred_check
      _
    $region39: #{tpu_custom_call.1} parent=1 // pred_check_branch
      %70 = sbr.rel (0) target = $region41
    $region40: #{tpu_custom_call.1} parent=1 // pred_region
      %s72 = ssub.s32 16, 16
      %73 = vsyncadd [#allocation10], %s72
      %s75 = sshll.u32 [#allocation9], 4
      %s76 = int_to_ptr.vmem [resolvable:$true] %s75
      %78 = dma.hbm_to_vmem [thread:$0]  %s9, 16, %s76, [#allocation10]
    $region41: #{tpu_custom_call.1} parent=1 // pred_fallthru
      _
    // Predicated region
    $region42: #{tpu_custom_call.1} parent=1 // pred_check
      _
    $region43: #{tpu_custom_call.1} parent=1 // pred_check_branch
      %80 = sbr.rel (0) target = $region45
    $region44: #{tpu_custom_call.1} parent=1 // pred_region
      _
    $region45: #{tpu_custom_call.1} parent=1 // pred_fallthru
      _
    // Predicated region
    $region46: #{tpu_custom_call.1} parent=1 // pred_check
      _
    $region47: #{tpu_custom_call.1} parent=1 // pred_check_branch
      %82 = sbr.rel (0) target = $region49
    $region48: #{tpu_custom_call.1} parent=1 // pred_region
      _
    $region49: #{tpu_custom_call.1} parent=1 // pred_fallthru
      _
    // Predicated region
    $region50: #{tpu_custom_call.1} parent=1 // pred_check
      _
    $region51: #{tpu_custom_call.1} parent=1 // pred_check_branch
      %84 = sbr.rel (0) target = $region53
    $region52: #{tpu_custom_call.1} parent=1 // pred_region
      _
    $region53: #{tpu_custom_call.1} parent=1 // pred_fallthru
      _
    // Predicated region
    $region54: #{tpu_custom_call.1} parent=1 // pred_check
      _
    $region55: #{tpu_custom_call.1} parent=1 // pred_check_branch
      %86 = sbr.rel (0) target = $region57
    $region56: #{tpu_custom_call.1} parent=1 // pred_region
      _
    $region57: #{tpu_custom_call.1} parent=1 // pred_fallthru
      _
    // Predicated region
    $region58: #{tpu_custom_call.1} parent=1 // pred_check
      _
    $region59: #{tpu_custom_call.1} parent=1 // pred_check_branch
      %88 = sbr.rel (0) target = $region61
    $region60: #{tpu_custom_call.1} parent=1 // pred_region
      _
    $region61: #{tpu_custom_call.1} parent=1 // pred_fallthru
      _
    // Predicated region
    $region62: #{tpu_custom_call.1} parent=1 // pred_check
      _
    $region63: #{tpu_custom_call.1} parent=1 // pred_check_branch
      %90 = sbr.rel (0) target = $region65
    $region64: #{tpu_custom_call.1} parent=1 // pred_region
      _
    $region65: #{tpu_custom_call.1} parent=1 // pred_fallthru
      _
    // Predicated region
    $region66: #{tpu_custom_call.1} parent=1 // pred_check
      _
    $region67: #{tpu_custom_call.1} parent=1 // pred_check_branch
      %92 = sbr.rel (0) target = $region69
    $region68: #{tpu_custom_call.1} parent=1 // pred_region
      _
    $region69: #{tpu_custom_call.1} parent=1 // pred_fallthru
      _
    // Predicated region
    $region70: #{tpu_custom_call.1} parent=1 // pred_check
      _
    $region71: #{tpu_custom_call.1} parent=1 // pred_check_branch
      %94 = sbr.rel (0) target = $region73
    $region72: #{tpu_custom_call.1} parent=1 // pred_region
      _
    $region73: #{tpu_custom_call.1} parent=1 // pred_fallthru
      _
    // Predicated region
    $region74: #{tpu_custom_call.1} parent=1 // pred_check
      _
    $region75: #{tpu_custom_call.1} parent=1 // pred_check_branch
      %96 = sbr.rel (0) target = $region77
    $region76: #{tpu_custom_call.1} parent=1 // pred_region
      %97 = dma.done [#allocation4], 32
    $region77: #{tpu_custom_call.1} parent=1 // pred_fallthru
      _
    // Predicated region
    $region78: #{tpu_custom_call.1} parent=1 // pred_check
      _
    $region79: #{tpu_custom_call.1} parent=1 // pred_check_branch
      %99 = sbr.rel (0) target = $region81
    $region80: #{tpu_custom_call.1} parent=1 // pred_region
      %100 = dma.done [#allocation7], 16
    $region81: #{tpu_custom_call.1} parent=1 // pred_fallthru
      _
    // Predicated region
    $region82: #{tpu_custom_call.1} parent=1 // pred_check
      _
    $region83: #{tpu_custom_call.1} parent=1 // pred_check_branch
      %102 = sbr.rel (0) target = $region85
    $region84: #{tpu_custom_call.1} parent=1 // pred_region
      %103 = dma.done [#allocation7], 16
    $region85: #{tpu_custom_call.1} parent=1 // pred_fallthru
      _
    // Predicated region
    $region86: #{tpu_custom_call.1} parent=1 // pred_check
      _
    $region87: #{tpu_custom_call.1} parent=1 // pred_check_branch
      %105 = sbr.rel (0) target = $region89
    $region88: #{tpu_custom_call.1} parent=1 // pred_region
      %106 = dma.done [#allocation10], 16
    $region89: #{tpu_custom_call.1} parent=1 // pred_fallthru
      _
    %v107 = vld [vmem:[%s2] sm:$0xff]
    %v108 = vld [vmem:[%s2 + $0x8] sm:$0xff]
    %v109 = vld [vmem:[%s0] sm:$0x3]
    %v110 = vld [vmem:[%s0 + $0x2] sm:$0x3]
    %v111 = vld [vmem:[%s0 + $0x4] sm:$0x3]
    %v112 = vld [vmem:[%s0 + $0x6] sm:$0x3]
    %v113 = vld [vmem:[%s0 + $0x8] sm:$0x3]
    %v114 = vld [vmem:[%s0 + $0xa] sm:$0x3]
    %v115 = vld [vmem:[%s0 + $0xc] sm:$0x3]
    %v116 = vld [vmem:[%s0 + $0xe] sm:$0x3]
    %v117 = vld [vmem:[%s4] sm:$0xff]
    %v118 = vld [vmem:[%s4 + $0x8] sm:$0xff]
    %v119 = vld [vmem:[%s4 + $0x10] sm:$0xff]
    %v120 = vld [vmem:[%s4 + $0x18] sm:$0xff]
    %v121 = vld [vmem:[#allocation6] sm:$0x1]
    %v123 = vlaneseq
    %v124 = vshrl.u32 %v123, 7
    %v125 = vsub.s32 0, %v124
    %v126 = vrot.slane %v121, %v125
    %v136 = vcombine.low %v109, %v110
    %v137 = vcombine.low %v111, %v112
    %v139 = vunpack.c.l.s4 1983009808
    %v140 = vunpack.c.0.s8 %v139
    %v141 = vlaneseq
    %v142 = vshrl.u32 %v141, 7
    %v143 = vsub.s32 %v140, %v142
    %v144 = vrot.slane %v136, %v143
    %v146 = vunpack.c.l.s4 1983009808
    %v147 = vunpack.c.0.s8 %v146
    %v148 = vlaneseq
    %v149 = vshrl.u32 %v148, 7
    %v150 = vsub.s32 %v147, %v149
    %v151 = vrot.slane %v137, %v150
    %v152 = vcombine.low %v144, %v151
    %v153 = vcombine.low %v113, %v114
    %v154 = vcombine.low %v115, %v116
    %v156 = vunpack.c.l.s4 1983009808
    %v157 = vunpack.c.0.s8 %v156
    %v158 = vlaneseq
    %v159 = vshrl.u32 %v158, 7
    %v160 = vsub.s32 %v157, %v159
    %v161 = vrot.slane %v153, %v160
    %v163 = vunpack.c.l.s4 1983009808
    %v164 = vunpack.c.0.s8 %v163
    %v165 = vlaneseq
    %v166 = vshrl.u32 %v165, 7
    %v167 = vsub.s32 %v164, %v166
    %v168 = vrot.slane %v154, %v167
    %v169 = vcombine.low %v161, %v168
    %vm170 = vcmask 261120
    %v171 = vsel %vm170, %v152, 0
    %v173 = vsel %vm170, %v169, 0
    %175 = vmatprep.subr.mxu0 0.0
    %176 = vmatpush1.msra.mxu0 %v117
    %177 = vmatprep.subr.mxu0 0.0
    %178 = vmatpush1.msra.mxu0 %v118
    %179 = vmatprep.subr.mxu0 0.0
    %180 = vmatpush1.msra.mxu0 %v119
    %181 = vmatprep.subr.mxu0 0.0
    %182 = vmatpush1.msra.mxu0 %v120
    %183 = vmatprep.subr.mxu0 0.0
    %184 = vmatpush1.msra.mxu0 0.0
    %185 = vmatprep.subr.mxu0 0.0
    %186 = vmatpush1.msra.mxu0 0.0
    %187 = vmatprep.subr.mxu0 0.0
    %188 = vmatpush1.msra.mxu0 0.0
    %189 = vmatprep.subr.mxu0 0.0
    %190 = vmatpush1.msra.mxu0 0.0
    %191 = vmatprep.subr.mxu0 0.0
    %192 = vmatpush1.msra.mxu0 0.0
    %193 = vmatprep.subr.mxu0 0.0
    %194 = vmatpush1.msra.mxu0 0.0
    %195 = vmatprep.subr.mxu0 0.0
    %196 = vmatpush1.msra.mxu0 0.0
    %197 = vmatprep.subr.mxu0 0.0
    %198 = vmatpush1.msra.mxu0 0.0
    %199 = vmatprep.subr.mxu0 0.0
    %200 = vmatpush1.msra.mxu0 0.0
    %201 = vmatprep.subr.mxu0 0.0
    %202 = vmatpush1.msra.mxu0 0.0
    %203 = vmatprep.subr.mxu0 0.0
    %204 = vmatpush1.msra.mxu0 0.0
    %205 = vmatprep.subr.mxu0 0.0
    %206 = vmatpush1.msra.mxu0 0.0
    %207 = vmatprep.subr.mxu0 0.0
    %208 = vmatpush1.msra.mxu0 0.0
    %209 = vmatprep.subr.mxu0 0.0
    %210 = vmatpush1.msra.mxu0 0.0
    %211 = vmatprep.subr.mxu0 0.0
    %212 = vmatpush1.msra.mxu0 0.0
    %213 = vmatprep.subr.mxu0 0.0
    %214 = vmatpush1.msra.mxu0 0.0
    %215 = vmatprep.subr.mxu0 0.0
    %216 = vmatpush1.msra.mxu0 0.0
    %217 = vmatprep.subr.mxu0 0.0
    %218 = vmatpush1.msra.mxu0 0.0
    %219 = vmatprep.subr.mxu0 0.0
    %220 = vmatpush1.msra.mxu0 0.0
    %221 = vmatprep.subr.mxu0 0.0
    %222 = vmatpush1.msra.mxu0 0.0
    %223 = vmatprep.subr.mxu0 0.0
    %224 = vmatpush1.msra.mxu0 0.0
    %225 = vmatprep.subr.mxu0 0.0
    %226 = vmatpush1.msra.mxu0 0.0
    %227 = vmatprep.subr.mxu0 0.0
    %228 = vmatpush1.msra.mxu0 0.0
    %229 = vmatprep.subr.mxu0 0.0
    %230 = vmatpush1.msra.mxu0 0.0
    %231 = vmatprep.subr.mxu0 0.0
    %232 = vmatpush1.msra.mxu0 0.0
    %233 = vmatprep.subr.mxu0 0.0
    %234 = vmatpush1.msra.mxu0 0.0
    %235 = vmatprep.subr.mxu0 0.0
    %236 = vmatpush1.msra.mxu0 0.0
    %237 = vmatprep.subr.mxu0 0.0
    %238 = vmatpush1.msra.mxu0 0.0
    %239 = vmatprep.mubr.f32.mxu0 0.0
    %240 = vmatmul.mubr.f32.gmra.mrb[0].mxu0 %v171
    %v241 = vpop.f32.mrb[0].mxu0
    %v242 = vadd.f32 %v126, %v241
    %v243 = vpop.f32.mrb[0].mxu0
    %244 = vmatprep.mubr.f32.mxu0 0.0
    %245 = vmatmul.mubr.f32.gmra.mrb[0].mxu0 %v173
    %v246 = vpop.f32.mrb[0].mxu0
    %v247 = vadd.f32 %v126, %v246
    %v248 = vpop.f32.mrb[0].mxu0
    %249 = vdwg.mxu0
    %v252 = vcombine.high %v242, %v242
    %v254 = vunpack.c.l.s4 1983009808
    %v255 = vunpack.c.0.s8 %v254
    %v256 = vlaneseq
    %v257 = vshrl.u32 %v256, 7
    %v258 = vsub.s32 %v255, %v257
    %v259 = vrot.slane %v242, %v258
    %v261 = vunpack.c.l.s4 1983009808
    %v262 = vunpack.c.0.s8 %v261
    %v263 = vlaneseq
    %v264 = vshrl.u32 %v263, 7
    %v265 = vsub.s32 %v262, %v264
    %v266 = vrot.slane %v252, %v265
    %v267 = vcombine.high %v259, %v259
    %v268 = vcombine.high %v266, %v266
    %v269 = vcombine.high %v247, %v247
    %v271 = vunpack.c.l.s4 1983009808
    %v272 = vunpack.c.0.s8 %v271
    %v273 = vlaneseq
    %v274 = vshrl.u32 %v273, 7
    %v275 = vsub.s32 %v272, %v274
    %v276 = vrot.slane %v247, %v275
    %v278 = vunpack.c.l.s4 1983009808
    %v279 = vunpack.c.0.s8 %v278
    %v280 = vlaneseq
    %v281 = vshrl.u32 %v280, 7
    %v282 = vsub.s32 %v279, %v281
    %v283 = vrot.slane %v269, %v282
    %v284 = vcombine.high %v276, %v276
    %v285 = vcombine.high %v283, %v283
    %v294 = vld [vmem:[%s6] sm:$0xff]
    %v295 = vld [vmem:[%s6 + $0x8] sm:$0xff]
    %v296 = vld [vmem:[#allocation8] sm:$0x1]
    %vm297 = vcmask 130048
    %v299 = vsel %vm297, 0.0, 0
    %301 = vmatprep.subr.mxu0 0.0
    %302 = vmatpush1.msra.mxu0 %v294
    %303 = vmatprep.subr.mxu0 0.0
    %304 = vmatpush1.msra.mxu0 %v295
    %305 = vmatprep.subr.mxu0 0.0
    %306 = vmatpush1.msra.mxu0 0.0
    %307 = vmatprep.subr.mxu0 0.0
    %308 = vmatpush1.msra.mxu0 0.0
    %309 = vmatprep.subr.mxu0 0.0
    %310 = vmatpush1.msra.mxu0 0.0
    %311 = vmatprep.subr.mxu0 0.0
    %312 = vmatpush1.msra.mxu0 0.0
    %313 = vmatprep.subr.mxu0 0.0
    %314 = vmatpush1.msra.mxu0 0.0
    %315 = vmatprep.subr.mxu0 0.0
    %316 = vmatpush1.msra.mxu0 0.0
    %317 = vmatprep.subr.mxu0 0.0
    %318 = vmatpush1.msra.mxu0 0.0
    %319 = vmatprep.subr.mxu0 0.0
    %320 = vmatpush1.msra.mxu0 0.0
    %321 = vmatprep.subr.mxu0 0.0
    %322 = vmatpush1.msra.mxu0 0.0
    %323 = vmatprep.subr.mxu0 0.0
    %324 = vmatpush1.msra.mxu0 0.0
    %325 = vmatprep.subr.mxu0 0.0
    %326 = vmatpush1.msra.mxu0 0.0
    %327 = vmatprep.subr.mxu0 0.0
    %328 = vmatpush1.msra.mxu0 0.0
    %329 = vmatprep.subr.mxu0 0.0
    %330 = vmatpush1.msra.mxu0 0.0
    %331 = vmatprep.subr.mxu0 0.0
    %332 = vmatpush1.msra.mxu0 0.0
    %333 = vmatprep.subr.mxu0 0.0
    %334 = vmatpush1.msra.mxu0 0.0
    %335 = vmatprep.subr.mxu0 0.0
    %336 = vmatpush1.msra.mxu0 0.0
    %337 = vmatprep.subr.mxu0 0.0
    %338 = vmatpush1.msra.mxu0 0.0
    %339 = vmatprep.subr.mxu0 0.0
    %340 = vmatpush1.msra.mxu0 0.0
    %341 = vmatprep.subr.mxu0 0.0
    %342 = vmatpush1.msra.mxu0 0.0
    %343 = vmatprep.subr.mxu0 0.0
    %344 = vmatpush1.msra.mxu0 0.0
    %345 = vmatprep.subr.mxu0 0.0
    %346 = vmatpush1.msra.mxu0 0.0
    %347 = vmatprep.subr.mxu0 0.0
    %348 = vmatpush1.msra.mxu0 0.0
    %349 = vmatprep.subr.mxu0 0.0
    %350 = vmatpush1.msra.mxu0 0.0
    %351 = vmatprep.subr.mxu0 0.0
    %352 = vmatpush1.msra.mxu0 0.0
    %353 = vmatprep.subr.mxu0 0.0
    %354 = vmatpush1.msra.mxu0 0.0
    %355 = vmatprep.subr.mxu0 0.0
    %356 = vmatpush1.msra.mxu0 0.0
    %357 = vmatprep.subr.mxu0 0.0
    %358 = vmatpush1.msra.mxu0 0.0
    %359 = vmatprep.subr.mxu0 0.0
    %360 = vmatpush1.msra.mxu0 0.0
    %361 = vmatprep.subr.mxu0 0.0
    %362 = vmatpush1.msra.mxu0 0.0
    %363 = vmatprep.subr.mxu0 0.0
    %364 = vmatpush1.msra.mxu0 0.0
    %365 = vmatprep.mubr.f32.mxu0 0.0
    %366 = vmatmul.mubr.f32.gmra.mrb[0].mxu0 %v299
    %v367 = vpop.f32.mrb[0].mxu0
    %v368 = vadd.f32 0.0, %v367
    %v369 = vpop.f32.mrb[0].mxu0
    %370 = vdwg.mxu0
    %v371 = vadd.f32 %v259, %v368
    %v372 = vxor.u32 %v371, 2147483648
    %v373 = vmul.f32 %v372, 1.442695
    %v374 = vpow.pop %v373
    %v375 = vadd.f32 %v374, 1.0
    %v376 = vrcp.pop %v375
    %v377 = vmul.f32 1.0, %v376
    %v379 = vlaneseq
    %v380 = vshrl.u32 %v379, 7
    %v381 = vsub.s32 0, %v380
    %v382 = vrot.slane %v296, %v381
    %383 = vrot.lane.b32.xlu0 %v382, 32
    %v384 = vpop.permute.xlu0 %383
    %v386 = vadd.f32 %v368, %v384
    %v389 = vunpack.c.l.s4 1983009808
    %v390 = vunpack.c.0.s8 %v389
    %v391 = vlaneseq
    %v392 = vshrl.u32 %v391, 7
    %v393 = vsub.s32 %v390, %v392
    %v394 = vrot.slane %v386, %v393
    %395 = vrot.lane.b32.xlu0 %v394, 96
    %v396 = vpop.permute.xlu0 %395
    %v398 = vmul.f32 %v377, %v396
    %400 = vrot.lane.b32.xlu0 %v398, 32
    %v401 = vpop.permute.xlu0 %400
    %v403 = vadd.f32 %v259, %v401
    %v404 = vtanh.pop %v403
    %v405 = vsub.f32 1.0, %v377
    %407 = vrot.lane.b32.xlu0 %v404, 112
    %v408 = vpop.permute.xlu0 %407
    %v410 = vmul.f32 %v405, %v408
    %v411 = vmul.f32 %v377, 0.0
    %v412 = vadd.f32 %v410, %v411
    %v415 = vunpack.c.l.s4 1983009808
    %v416 = vunpack.c.0.s8 %v415
    %v417 = vlaneseq
    %v418 = vshrl.u32 %v417, 7
    %v419 = vsub.s32 %v416, %v418
    %v420 = vrot.slane %v412, %v419
    %421 = vrot.lane.b32.xlu0 %v420, 112
    %v422 = vpop.permute.xlu0 %421
    %v423 = vsel %vm297, %v422, 0
    %425 = vmatprep.subr.mxu0 0.0
    %426 = vmatpush1.msra.mxu0 %v294
    %427 = vmatprep.subr.mxu0 0.0
    %428 = vmatpush1.msra.mxu0 %v295
    %429 = vmatprep.subr.mxu0 0.0
    %430 = vmatpush1.msra.mxu0 0.0
    %431 = vmatprep.subr.mxu0 0.0
    %432 = vmatpush1.msra.mxu0 0.0
    %433 = vmatprep.subr.mxu0 0.0
    %434 = vmatpush1.msra.mxu0 0.0
    %435 = vmatprep.subr.mxu0 0.0
    %436 = vmatpush1.msra.mxu0 0.0
    %437 = vmatprep.subr.mxu0 0.0
    %438 = vmatpush1.msra.mxu0 0.0
    %439 = vmatprep.subr.mxu0 0.0
    %440 = vmatpush1.msra.mxu0 0.0
    %441 = vmatprep.subr.mxu0 0.0
    %442 = vmatpush1.msra.mxu0 0.0
    %443 = vmatprep.subr.mxu0 0.0
    %444 = vmatpush1.msra.mxu0 0.0
    %445 = vmatprep.subr.mxu0 0.0
    %446 = vmatpush1.msra.mxu0 0.0
    %447 = vmatprep.subr.mxu0 0.0
    %448 = vmatpush1.msra.mxu0 0.0
    %449 = vmatprep.subr.mxu0 0.0
    %450 = vmatpush1.msra.mxu0 0.0
    %451 = vmatprep.subr.mxu0 0.0
    %452 = vmatpush1.msra.mxu0 0.0
    %453 = vmatprep.subr.mxu0 0.0
    %454 = vmatpush1.msra.mxu0 0.0
    %455 = vmatprep.subr.mxu0 0.0
    %456 = vmatpush1.msra.mxu0 0.0
    %457 = vmatprep.subr.mxu0 0.0
    %458 = vmatpush1.msra.mxu0 0.0
    %459 = vmatprep.subr.mxu0 0.0
    %460 = vmatpush1.msra.mxu0 0.0
    %461 = vmatprep.subr.mxu0 0.0
    %462 = vmatpush1.msra.mxu0 0.0
    %463 = vmatprep.subr.mxu0 0.0
    %464 = vmatpush1.msra.mxu0 0.0
    %465 = vmatprep.subr.mxu0 0.0
    %466 = vmatpush1.msra.mxu0 0.0
    %467 = vmatprep.subr.mxu0 0.0
    %468 = vmatpush1.msra.mxu0 0.0
    %469 = vmatprep.subr.mxu0 0.0
    %470 = vmatpush1.msra.mxu0 0.0
    %471 = vmatprep.subr.mxu0 0.0
    %472 = vmatpush1.msra.mxu0 0.0
    %473 = vmatprep.subr.mxu0 0.0
    %474 = vmatpush1.msra.mxu0 0.0
    %475 = vmatprep.subr.mxu0 0.0
    %476 = vmatpush1.msra.mxu0 0.0
    %477 = vmatprep.subr.mxu0 0.0
    %478 = vmatpush1.msra.mxu0 0.0
    %479 = vmatprep.subr.mxu0 0.0
    %480 = vmatpush1.msra.mxu0 0.0
    %481 = vmatprep.subr.mxu0 0.0
    %482 = vmatpush1.msra.mxu0 0.0
    %483 = vmatprep.subr.mxu0 0.0
    %484 = vmatpush1.msra.mxu0 0.0
    %485 = vmatprep.subr.mxu0 0.0
    %486 = vmatpush1.msra.mxu0 0.0
    %487 = vmatprep.subr.mxu0 0.0
    %488 = vmatpush1.msra.mxu0 0.0
    %489 = vmatprep.mubr.f32.mxu0 0.0
    %490 = vmatmul.mubr.f32.gmra.mrb[0].mxu0 %v423
    %v491 = vpop.f32.mrb[0].mxu0
    %v492 = vadd.f32 0.0, %v491
    %v493 = vpop.f32.mrb[0].mxu0
    %494 = vdwg.mxu0
    %v495 = vadd.f32 %v267, %v492
    %v496 = vxor.u32 %v495, 2147483648
    %v497 = vmul.f32 %v496, 1.442695
    %v498 = vpow.pop %v497
    %v499 = vadd.f32 %v498, 1.0
    %v500 = vrcp.pop %v499
    %v501 = vmul.f32 1.0, %v500
    %v502 = vadd.f32 %v492, %v384
    %v505 = vunpack.c.l.s4 1983009808
    %v506 = vunpack.c.0.s8 %v505
    %v507 = vlaneseq
    %v508 = vshrl.u32 %v507, 7
    %v509 = vsub.s32 %v506, %v508
    %v510 = vrot.slane %v502, %v509
    %511 = vrot.lane.b32.xlu0 %v510, 96
    %v512 = vpop.permute.xlu0 %511
    %v514 = vmul.f32 %v501, %v512
    %516 = vrot.lane.b32.xlu0 %v514, 32
    %v517 = vpop.permute.xlu0 %516
    %v519 = vadd.f32 %v267, %v517
    %v520 = vtanh.pop %v519
    %v521 = vsub.f32 1.0, %v501
    %523 = vrot.lane.b32.xlu0 %v520, 112
    %v524 = vpop.permute.xlu0 %523
    %v526 = vmul.f32 %v521, %v524
    %v527 = vmul.f32 %v501, %v412
    %v528 = vadd.f32 %v526, %v527
    %v531 = vunpack.c.l.s4 1983009808
    %v532 = vunpack.c.0.s8 %v531
    %v533 = vlaneseq
    %v534 = vshrl.u32 %v533, 7
    %v535 = vsub.s32 %v532, %v534
    %v536 = vrot.slane %v528, %v535
    %537 = vrot.lane.b32.xlu0 %v536, 112
    %v538 = vpop.permute.xlu0 %537
    %v539 = vsel %vm297, %v538, 0
    %541 = vmatprep.subr.mxu0 0.0
    %542 = vmatpush1.msra.mxu0 %v294
    %543 = vmatprep.subr.mxu0 0.0
    %544 = vmatpush1.msra.mxu0 %v295
    %545 = vmatprep.subr.mxu0 0.0
    %546 = vmatpush1.msra.mxu0 0.0
    %547 = vmatprep.subr.mxu0 0.0
    %548 = vmatpush1.msra.mxu0 0.0
    %549 = vmatprep.subr.mxu0 0.0
    %550 = vmatpush1.msra.mxu0 0.0
    %551 = vmatprep.subr.mxu0 0.0
    %552 = vmatpush1.msra.mxu0 0.0
    %553 = vmatprep.subr.mxu0 0.0
    %554 = vmatpush1.msra.mxu0 0.0
    %555 = vmatprep.subr.mxu0 0.0
    %556 = vmatpush1.msra.mxu0 0.0
    %557 = vmatprep.subr.mxu0 0.0
    %558 = vmatpush1.msra.mxu0 0.0
    %559 = vmatprep.subr.mxu0 0.0
    %560 = vmatpush1.msra.mxu0 0.0
    %561 = vmatprep.subr.mxu0 0.0
    %562 = vmatpush1.msra.mxu0 0.0
    %563 = vmatprep.subr.mxu0 0.0
    %564 = vmatpush1.msra.mxu0 0.0
    %565 = vmatprep.subr.mxu0 0.0
    %566 = vmatpush1.msra.mxu0 0.0
    %567 = vmatprep.subr.mxu0 0.0
    %568 = vmatpush1.msra.mxu0 0.0
    %569 = vmatprep.subr.mxu0 0.0
    %570 = vmatpush1.msra.mxu0 0.0
    %571 = vmatprep.subr.mxu0 0.0
    %572 = vmatpush1.msra.mxu0 0.0
    %573 = vmatprep.subr.mxu0 0.0
    %574 = vmatpush1.msra.mxu0 0.0
    %575 = vmatprep.subr.mxu0 0.0
    %576 = vmatpush1.msra.mxu0 0.0
    %577 = vmatprep.subr.mxu0 0.0
    %578 = vmatpush1.msra.mxu0 0.0
    %579 = vmatprep.subr.mxu0 0.0
    %580 = vmatpush1.msra.mxu0 0.0
    %581 = vmatprep.subr.mxu0 0.0
    %582 = vmatpush1.msra.mxu0 0.0
    %583 = vmatprep.subr.mxu0 0.0
    %584 = vmatpush1.msra.mxu0 0.0
    %585 = vmatprep.subr.mxu0 0.0
    %586 = vmatpush1.msra.mxu0 0.0
    %587 = vmatprep.subr.mxu0 0.0
    %588 = vmatpush1.msra.mxu0 0.0
    %589 = vmatprep.subr.mxu0 0.0
    %590 = vmatpush1.msra.mxu0 0.0
    %591 = vmatprep.subr.mxu0 0.0
    %592 = vmatpush1.msra.mxu0 0.0
    %593 = vmatprep.subr.mxu0 0.0
    %594 = vmatpush1.msra.mxu0 0.0
    %595 = vmatprep.subr.mxu0 0.0
    %596 = vmatpush1.msra.mxu0 0.0
    %597 = vmatprep.subr.mxu0 0.0
    %598 = vmatpush1.msra.mxu0 0.0
    %599 = vmatprep.subr.mxu0 0.0
    %600 = vmatpush1.msra.mxu0 0.0
    %601 = vmatprep.subr.mxu0 0.0
    %602 = vmatpush1.msra.mxu0 0.0
    %603 = vmatprep.subr.mxu0 0.0
    %604 = vmatpush1.msra.mxu0 0.0
    %605 = vmatprep.mubr.f32.mxu0 0.0
    %606 = vmatmul.mubr.f32.gmra.mrb[0].mxu0 %v539
    %v607 = vpop.f32.mrb[0].mxu0
    %v608 = vadd.f32 0.0, %v607
    %v609 = vpop.f32.mrb[0].mxu0
    %610 = vdwg.mxu0
    %v611 = vadd.f32 %v266, %v608
    %v612 = vxor.u32 %v611, 2147483648
    %v613 = vmul.f32 %v612, 1.442695
    %v614 = vpow.pop %v613
    %v615 = vadd.f32 %v614, 1.0
    %v616 = vrcp.pop %v615
    %v617 = vmul.f32 1.0, %v616
    %v618 = vadd.f32 %v608, %v384
    %v621 = vunpack.c.l.s4 1983009808
    %v622 = vunpack.c.0.s8 %v621
    %v623 = vlaneseq
    %v624 = vshrl.u32 %v623, 7
    %v625 = vsub.s32 %v622, %v624
    %v626 = vrot.slane %v618, %v625
    %627 = vrot.lane.b32.xlu0 %v626, 96
    %v628 = vpop.permute.xlu0 %627
    %v630 = vmul.f32 %v617, %v628
    %632 = vrot.lane.b32.xlu0 %v630, 32
    %v633 = vpop.permute.xlu0 %632
    %v635 = vadd.f32 %v266, %v633
    %v636 = vtanh.pop %v635
    %v637 = vsub.f32 1.0, %v617
    %639 = vrot.lane.b32.xlu0 %v636, 112
    %v640 = vpop.permute.xlu0 %639
    %v642 = vmul.f32 %v637, %v640
    %v643 = vmul.f32 %v617, %v528
    %v644 = vadd.f32 %v642, %v643
    %v647 = vunpack.c.l.s4 1983009808
    %v648 = vunpack.c.0.s8 %v647
    %v649 = vlaneseq
    %v650 = vshrl.u32 %v649, 7
    %v651 = vsub.s32 %v648, %v650
    %v652 = vrot.slane %v644, %v651
    %653 = vrot.lane.b32.xlu0 %v652, 112
    %v654 = vpop.permute.xlu0 %653
    %v655 = vsel %vm297, %v654, 0
    %657 = vmatprep.subr.mxu0 0.0
    %658 = vmatpush1.msra.mxu0 %v294
    %659 = vmatprep.subr.mxu0 0.0
    %660 = vmatpush1.msra.mxu0 %v295
    %661 = vmatprep.subr.mxu0 0.0
    %662 = vmatpush1.msra.mxu0 0.0
    %663 = vmatprep.subr.mxu0 0.0
    %664 = vmatpush1.msra.mxu0 0.0
    %665 = vmatprep.subr.mxu0 0.0
    %666 = vmatpush1.msra.mxu0 0.0
    %667 = vmatprep.subr.mxu0 0.0
    %668 = vmatpush1.msra.mxu0 0.0
    %669 = vmatprep.subr.mxu0 0.0
    %670 = vmatpush1.msra.mxu0 0.0
    %671 = vmatprep.subr.mxu0 0.0
    %672 = vmatpush1.msra.mxu0 0.0
    %673 = vmatprep.subr.mxu0 0.0
    %674 = vmatpush1.msra.mxu0 0.0
    %675 = vmatprep.subr.mxu0 0.0
    %676 = vmatpush1.msra.mxu0 0.0
    %677 = vmatprep.subr.mxu0 0.0
    %678 = vmatpush1.msra.mxu0 0.0
    %679 = vmatprep.subr.mxu0 0.0
    %680 = vmatpush1.msra.mxu0 0.0
    %681 = vmatprep.subr.mxu0 0.0
    %682 = vmatpush1.msra.mxu0 0.0
    %683 = vmatprep.subr.mxu0 0.0
    %684 = vmatpush1.msra.mxu0 0.0
    %685 = vmatprep.subr.mxu0 0.0
    %686 = vmatpush1.msra.mxu0 0.0
    %687 = vmatprep.subr.mxu0 0.0
    %688 = vmatpush1.msra.mxu0 0.0
    %689 = vmatprep.subr.mxu0 0.0
    %690 = vmatpush1.msra.mxu0 0.0
    %691 = vmatprep.subr.mxu0 0.0
    %692 = vmatpush1.msra.mxu0 0.0
    %693 = vmatprep.subr.mxu0 0.0
    %694 = vmatpush1.msra.mxu0 0.0
    %695 = vmatprep.subr.mxu0 0.0
    %696 = vmatpush1.msra.mxu0 0.0
    %697 = vmatprep.subr.mxu0 0.0
    %698 = vmatpush1.msra.mxu0 0.0
    %699 = vmatprep.subr.mxu0 0.0
    %700 = vmatpush1.msra.mxu0 0.0
    %701 = vmatprep.subr.mxu0 0.0
    %702 = vmatpush1.msra.mxu0 0.0
    %703 = vmatprep.subr.mxu0 0.0
    %704 = vmatpush1.msra.mxu0 0.0
    %705 = vmatprep.subr.mxu0 0.0
    %706 = vmatpush1.msra.mxu0 0.0
    %707 = vmatprep.subr.mxu0 0.0
    %708 = vmatpush1.msra.mxu0 0.0
    %709 = vmatprep.subr.mxu0 0.0
    %710 = vmatpush1.msra.mxu0 0.0
    %711 = vmatprep.subr.mxu0 0.0
    %712 = vmatpush1.msra.mxu0 0.0
    %713 = vmatprep.subr.mxu0 0.0
    %714 = vmatpush1.msra.mxu0 0.0
    %715 = vmatprep.subr.mxu0 0.0
    %716 = vmatpush1.msra.mxu0 0.0
    %717 = vmatprep.subr.mxu0 0.0
    %718 = vmatpush1.msra.mxu0 0.0
    %719 = vmatprep.subr.mxu0 0.0
    %720 = vmatpush1.msra.mxu0 0.0
    %721 = vmatprep.mubr.f32.mxu0 0.0
    %722 = vmatmul.mubr.f32.gmra.mrb[0].mxu0 %v655
    %v723 = vpop.f32.mrb[0].mxu0
    %v724 = vadd.f32 0.0, %v723
    %v725 = vpop.f32.mrb[0].mxu0
    %726 = vdwg.mxu0
    %v727 = vadd.f32 %v268, %v724
    %v728 = vxor.u32 %v727, 2147483648
    %v729 = vmul.f32 %v728, 1.442695
    %v730 = vpow.pop %v729
    %v731 = vadd.f32 %v730, 1.0
    %v732 = vrcp.pop %v731
    %v733 = vmul.f32 1.0, %v732
    %v734 = vadd.f32 %v724, %v384
    %v737 = vunpack.c.l.s4 1983009808
    %v738 = vunpack.c.0.s8 %v737
    %v739 = vlaneseq
    %v740 = vshrl.u32 %v739, 7
    %v741 = vsub.s32 %v738, %v740
    %v742 = vrot.slane %v734, %v741
    %743 = vrot.lane.b32.xlu0 %v742, 96
    %v744 = vpop.permute.xlu0 %743
    %v746 = vmul.f32 %v733, %v744
    %748 = vrot.lane.b32.xlu0 %v746, 32
    %v749 = vpop.permute.xlu0 %748
    %v751 = vadd.f32 %v268, %v749
    %v752 = vtanh.pop %v751
    %v753 = vsub.f32 1.0, %v733
    %755 = vrot.lane.b32.xlu0 %v752, 112
    %v756 = vpop.permute.xlu0 %755
    %v758 = vmul.f32 %v753, %v756
    %v759 = vmul.f32 %v733, %v644
    %v760 = vadd.f32 %v758, %v759
    %v763 = vunpack.c.l.s4 1983009808
    %v764 = vunpack.c.0.s8 %v763
    %v765 = vlaneseq
    %v766 = vshrl.u32 %v765, 7
    %v767 = vsub.s32 %v764, %v766
    %v768 = vrot.slane %v760, %v767
    %769 = vrot.lane.b32.xlu0 %v768, 112
    %v770 = vpop.permute.xlu0 %769
    %v771 = vsel %vm297, %v770, 0
    %773 = vmatprep.subr.mxu0 0.0
    %774 = vmatpush1.msra.mxu0 %v294
    %775 = vmatprep.subr.mxu0 0.0
    %776 = vmatpush1.msra.mxu0 %v295
    %777 = vmatprep.subr.mxu0 0.0
    %778 = vmatpush1.msra.mxu0 0.0
    %779 = vmatprep.subr.mxu0 0.0
    %780 = vmatpush1.msra.mxu0 0.0
    %781 = vmatprep.subr.mxu0 0.0
    %782 = vmatpush1.msra.mxu0 0.0
    %783 = vmatprep.subr.mxu0 0.0
    %784 = vmatpush1.msra.mxu0 0.0
    %785 = vmatprep.subr.mxu0 0.0
    %786 = vmatpush1.msra.mxu0 0.0
    %787 = vmatprep.subr.mxu0 0.0
    %788 = vmatpush1.msra.mxu0 0.0
    %789 = vmatprep.subr.mxu0 0.0
    %790 = vmatpush1.msra.mxu0 0.0
    %791 = vmatprep.subr.mxu0 0.0
    %792 = vmatpush1.msra.mxu0 0.0
    %793 = vmatprep.subr.mxu0 0.0
    %794 = vmatpush1.msra.mxu0 0.0
    %795 = vmatprep.subr.mxu0 0.0
    %796 = vmatpush1.msra.mxu0 0.0
    %797 = vmatprep.subr.mxu0 0.0
    %798 = vmatpush1.msra.mxu0 0.0
    %799 = vmatprep.subr.mxu0 0.0
    %800 = vmatpush1.msra.mxu0 0.0
    %801 = vmatprep.subr.mxu0 0.0
    %802 = vmatpush1.msra.mxu0 0.0
    %803 = vmatprep.subr.mxu0 0.0
    %804 = vmatpush1.msra.mxu0 0.0
    %805 = vmatprep.subr.mxu0 0.0
    %806 = vmatpush1.msra.mxu0 0.0
    %807 = vmatprep.subr.mxu0 0.0
    %808 = vmatpush1.msra.mxu0 0.0
    %809 = vmatprep.subr.mxu0 0.0
    %810 = vmatpush1.msra.mxu0 0.0
    %811 = vmatprep.subr.mxu0 0.0
    %812 = vmatpush1.msra.mxu0 0.0
    %813 = vmatprep.subr.mxu0 0.0
    %814 = vmatpush1.msra.mxu0 0.0
    %815 = vmatprep.subr.mxu0 0.0
    %816 = vmatpush1.msra.mxu0 0.0
    %817 = vmatprep.subr.mxu0 0.0
    %818 = vmatpush1.msra.mxu0 0.0
    %819 = vmatprep.subr.mxu0 0.0
    %820 = vmatpush1.msra.mxu0 0.0
    %821 = vmatprep.subr.mxu0 0.0
    %822 = vmatpush1.msra.mxu0 0.0
    %823 = vmatprep.subr.mxu0 0.0
    %824 = vmatpush1.msra.mxu0 0.0
    %825 = vmatprep.subr.mxu0 0.0
    %826 = vmatpush1.msra.mxu0 0.0
    %827 = vmatprep.subr.mxu0 0.0
    %828 = vmatpush1.msra.mxu0 0.0
    %829 = vmatprep.subr.mxu0 0.0
    %830 = vmatpush1.msra.mxu0 0.0
    %831 = vmatprep.subr.mxu0 0.0
    %832 = vmatpush1.msra.mxu0 0.0
    %833 = vmatprep.subr.mxu0 0.0
    %834 = vmatpush1.msra.mxu0 0.0
    %835 = vmatprep.subr.mxu0 0.0
    %836 = vmatpush1.msra.mxu0 0.0
    %837 = vmatprep.mubr.f32.mxu0 0.0
    %838 = vmatmul.mubr.f32.gmra.mrb[0].mxu0 %v771
    %v839 = vpop.f32.mrb[0].mxu0
    %v840 = vadd.f32 0.0, %v839
    %v841 = vpop.f32.mrb[0].mxu0
    %842 = vdwg.mxu0
    %v843 = vadd.f32 %v276, %v840
    %v844 = vxor.u32 %v843, 2147483648
    %v845 = vmul.f32 %v844, 1.442695
    %v846 = vpow.pop %v845
    %v847 = vadd.f32 %v846, 1.0
    %v848 = vrcp.pop %v847
    %v849 = vmul.f32 1.0, %v848
    %v850 = vadd.f32 %v840, %v384
    %v853 = vunpack.c.l.s4 1983009808
    %v854 = vunpack.c.0.s8 %v853
    %v855 = vlaneseq
    %v856 = vshrl.u32 %v855, 7
    %v857 = vsub.s32 %v854, %v856
    %v858 = vrot.slane %v850, %v857
    %859 = vrot.lane.b32.xlu0 %v858, 96
    %v860 = vpop.permute.xlu0 %859
    %v862 = vmul.f32 %v849, %v860
    %864 = vrot.lane.b32.xlu0 %v862, 32
    %v865 = vpop.permute.xlu0 %864
    %v867 = vadd.f32 %v276, %v865
    %v868 = vtanh.pop %v867
    %v869 = vsub.f32 1.0, %v849
    %871 = vrot.lane.b32.xlu0 %v868, 112
    %v872 = vpop.permute.xlu0 %871
    %v874 = vmul.f32 %v869, %v872
    %v875 = vmul.f32 %v849, %v760
    %v876 = vadd.f32 %v874, %v875
    %v879 = vunpack.c.l.s4 1983009808
    %v880 = vunpack.c.0.s8 %v879
    %v881 = vlaneseq
    %v882 = vshrl.u32 %v881, 7
    %v883 = vsub.s32 %v880, %v882
    %v884 = vrot.slane %v876, %v883
    %885 = vrot.lane.b32.xlu0 %v884, 112
    %v886 = vpop.permute.xlu0 %885
    %v887 = vsel %vm297, %v886, 0
    %889 = vmatprep.subr.mxu0 0.0
    %890 = vmatpush1.msra.mxu0 %v294
    %891 = vmatprep.subr.mxu0 0.0
    %892 = vmatpush1.msra.mxu0 %v295
    %893 = vmatprep.subr.mxu0 0.0
    %894 = vmatpush1.msra.mxu0 0.0
    %895 = vmatprep.subr.mxu0 0.0
    %896 = vmatpush1.msra.mxu0 0.0
    %897 = vmatprep.subr.mxu0 0.0
    %898 = vmatpush1.msra.mxu0 0.0
    %899 = vmatprep.subr.mxu0 0.0
    %900 = vmatpush1.msra.mxu0 0.0
    %901 = vmatprep.subr.mxu0 0.0
    %902 = vmatpush1.msra.mxu0 0.0
    %903 = vmatprep.subr.mxu0 0.0
    %904 = vmatpush1.msra.mxu0 0.0
    %905 = vmatprep.subr.mxu0 0.0
    %906 = vmatpush1.msra.mxu0 0.0
    %907 = vmatprep.subr.mxu0 0.0
    %908 = vmatpush1.msra.mxu0 0.0
    %909 = vmatprep.subr.mxu0 0.0
    %910 = vmatpush1.msra.mxu0 0.0
    %911 = vmatprep.subr.mxu0 0.0
    %912 = vmatpush1.msra.mxu0 0.0
    %913 = vmatprep.subr.mxu0 0.0
    %914 = vmatpush1.msra.mxu0 0.0
    %915 = vmatprep.subr.mxu0 0.0
    %916 = vmatpush1.msra.mxu0 0.0
    %917 = vmatprep.subr.mxu0 0.0
    %918 = vmatpush1.msra.mxu0 0.0
    %919 = vmatprep.subr.mxu0 0.0
    %920 = vmatpush1.msra.mxu0 0.0
    %921 = vmatprep.subr.mxu0 0.0
    %922 = vmatpush1.msra.mxu0 0.0
    %923 = vmatprep.subr.mxu0 0.0
    %924 = vmatpush1.msra.mxu0 0.0
    %925 = vmatprep.subr.mxu0 0.0
    %926 = vmatpush1.msra.mxu0 0.0
    %927 = vmatprep.subr.mxu0 0.0
    %928 = vmatpush1.msra.mxu0 0.0
    %929 = vmatprep.subr.mxu0 0.0
    %930 = vmatpush1.msra.mxu0 0.0
    %931 = vmatprep.subr.mxu0 0.0
    %932 = vmatpush1.msra.mxu0 0.0
    %933 = vmatprep.subr.mxu0 0.0
    %934 = vmatpush1.msra.mxu0 0.0
    %935 = vmatprep.subr.mxu0 0.0
    %936 = vmatpush1.msra.mxu0 0.0
    %937 = vmatprep.subr.mxu0 0.0
    %938 = vmatpush1.msra.mxu0 0.0
    %939 = vmatprep.subr.mxu0 0.0
    %940 = vmatpush1.msra.mxu0 0.0
    %941 = vmatprep.subr.mxu0 0.0
    %942 = vmatpush1.msra.mxu0 0.0
    %943 = vmatprep.subr.mxu0 0.0
    %944 = vmatpush1.msra.mxu0 0.0
    %945 = vmatprep.subr.mxu0 0.0
    %946 = vmatpush1.msra.mxu0 0.0
    %947 = vmatprep.subr.mxu0 0.0
    %948 = vmatpush1.msra.mxu0 0.0
    %949 = vmatprep.subr.mxu0 0.0
    %950 = vmatpush1.msra.mxu0 0.0
    %951 = vmatprep.subr.mxu0 0.0
    %952 = vmatpush1.msra.mxu0 0.0
    %953 = vmatprep.mubr.f32.mxu0 0.0
    %954 = vmatmul.mubr.f32.gmra.mrb[0].mxu0 %v887
    %v955 = vpop.f32.mrb[0].mxu0
    %v956 = vadd.f32 0.0, %v955
    %v957 = vpop.f32.mrb[0].mxu0
    %958 = vdwg.mxu0
    %v959 = vadd.f32 %v284, %v956
    %v960 = vxor.u32 %v959, 2147483648
    %v961 = vmul.f32 %v960, 1.442695
    %v962 = vpow.pop %v961
    %v963 = vadd.f32 %v962, 1.0
    %v964 = vrcp.pop %v963
    %v965 = vmul.f32 1.0, %v964
    %v966 = vadd.f32 %v956, %v384
    %v969 = vunpack.c.l.s4 1983009808
    %v970 = vunpack.c.0.s8 %v969
    %v971 = vlaneseq
    %v972 = vshrl.u32 %v971, 7
    %v973 = vsub.s32 %v970, %v972
    %v974 = vrot.slane %v966, %v973
    %975 = vrot.lane.b32.xlu0 %v974, 96
    %v976 = vpop.permute.xlu0 %975
    %v978 = vmul.f32 %v965, %v976
    %980 = vrot.lane.b32.xlu0 %v978, 32
    %v981 = vpop.permute.xlu0 %980
    %v983 = vadd.f32 %v284, %v981
    %v984 = vtanh.pop %v983
    %v985 = vsub.f32 1.0, %v965
    %987 = vrot.lane.b32.xlu0 %v984, 112
    %v988 = vpop.permute.xlu0 %987
    %v990 = vmul.f32 %v985, %v988
    %v991 = vmul.f32 %v965, %v876
    %v992 = vadd.f32 %v990, %v991
    %v995 = vunpack.c.l.s4 1983009808
    %v996 = vunpack.c.0.s8 %v995
    %v997 = vlaneseq
    %v998 = vshrl.u32 %v997, 7
    %v999 = vsub.s32 %v996, %v998
    %v1000 = vrot.slane %v992, %v999
    %1001 = vrot.lane.b32.xlu0 %v1000, 112
    %v1002 = vpop.permute.xlu0 %1001
    %v1003 = vsel %vm297, %v1002, 0
    %1005 = vmatprep.subr.mxu0 0.0
    %1006 = vmatpush1.msra.mxu0 %v294
    %1007 = vmatprep.subr.mxu0 0.0
    %1008 = vmatpush1.msra.mxu0 %v295
    %1009 = vmatprep.subr.mxu0 0.0
    %1010 = vmatpush1.msra.mxu0 0.0
    %1011 = vmatprep.subr.mxu0 0.0
    %1012 = vmatpush1.msra.mxu0 0.0
    %1013 = vmatprep.subr.mxu0 0.0
    %1014 = vmatpush1.msra.mxu0 0.0
    %1015 = vmatprep.subr.mxu0 0.0
    %1016 = vmatpush1.msra.mxu0 0.0
    %1017 = vmatprep.subr.mxu0 0.0
    %1018 = vmatpush1.msra.mxu0 0.0
    %1019 = vmatprep.subr.mxu0 0.0
    %1020 = vmatpush1.msra.mxu0 0.0
    %1021 = vmatprep.subr.mxu0 0.0
    %1022 = vmatpush1.msra.mxu0 0.0
    %1023 = vmatprep.subr.mxu0 0.0
    %1024 = vmatpush1.msra.mxu0 0.0
    %1025 = vmatprep.subr.mxu0 0.0
    %1026 = vmatpush1.msra.mxu0 0.0
    %1027 = vmatprep.subr.mxu0 0.0
    %1028 = vmatpush1.msra.mxu0 0.0
    %1029 = vmatprep.subr.mxu0 0.0
    %1030 = vmatpush1.msra.mxu0 0.0
    %1031 = vmatprep.subr.mxu0 0.0
    %1032 = vmatpush1.msra.mxu0 0.0
    %1033 = vmatprep.subr.mxu0 0.0
    %1034 = vmatpush1.msra.mxu0 0.0
    %1035 = vmatprep.subr.mxu0 0.0
    %1036 = vmatpush1.msra.mxu0 0.0
    %1037 = vmatprep.subr.mxu0 0.0
    %1038 = vmatpush1.msra.mxu0 0.0
    %1039 = vmatprep.subr.mxu0 0.0
    %1040 = vmatpush1.msra.mxu0 0.0
    %1041 = vmatprep.subr.mxu0 0.0
    %1042 = vmatpush1.msra.mxu0 0.0
    %1043 = vmatprep.subr.mxu0 0.0
    %1044 = vmatpush1.msra.mxu0 0.0
    %1045 = vmatprep.subr.mxu0 0.0
    %1046 = vmatpush1.msra.mxu0 0.0
    %1047 = vmatprep.subr.mxu0 0.0
    %1048 = vmatpush1.msra.mxu0 0.0
    %1049 = vmatprep.subr.mxu0 0.0
    %1050 = vmatpush1.msra.mxu0 0.0
    %1051 = vmatprep.subr.mxu0 0.0
    %1052 = vmatpush1.msra.mxu0 0.0
    %1053 = vmatprep.subr.mxu0 0.0
    %1054 = vmatpush1.msra.mxu0 0.0
    %1055 = vmatprep.subr.mxu0 0.0
    %1056 = vmatpush1.msra.mxu0 0.0
    %1057 = vmatprep.subr.mxu0 0.0
    %1058 = vmatpush1.msra.mxu0 0.0
    %1059 = vmatprep.subr.mxu0 0.0
    %1060 = vmatpush1.msra.mxu0 0.0
    %1061 = vmatprep.subr.mxu0 0.0
    %1062 = vmatpush1.msra.mxu0 0.0
    %1063 = vmatprep.subr.mxu0 0.0
    %1064 = vmatpush1.msra.mxu0 0.0
    %1065 = vmatprep.subr.mxu0 0.0
    %1066 = vmatpush1.msra.mxu0 0.0
    %1067 = vmatprep.subr.mxu0 0.0
    %1068 = vmatpush1.msra.mxu0 0.0
    %1069 = vmatprep.mubr.f32.mxu0 0.0
    %1070 = vmatmul.mubr.f32.gmra.mrb[0].mxu0 %v1003
    %v1071 = vpop.f32.mrb[0].mxu0
    %v1072 = vadd.f32 0.0, %v1071
    %v1073 = vpop.f32.mrb[0].mxu0
    %1074 = vdwg.mxu0
    %v1075 = vadd.f32 %v283, %v1072
    %v1076 = vxor.u32 %v1075, 2147483648
    %v1077 = vmul.f32 %v1076, 1.442695
    %v1078 = vpow.pop %v1077
    %v1079 = vadd.f32 %v1078, 1.0
    %v1080 = vrcp.pop %v1079
    %v1081 = vmul.f32 1.0, %v1080
    %v1082 = vadd.f32 %v1072, %v384
    %v1085 = vunpack.c.l.s4 1983009808
    %v1086 = vunpack.c.0.s8 %v1085
    %v1087 = vlaneseq
    %v1088 = vshrl.u32 %v1087, 7
    %v1089 = vsub.s32 %v1086, %v1088
    %v1090 = vrot.slane %v1082, %v1089
    %1091 = vrot.lane.b32.xlu0 %v1090, 96
    %v1092 = vpop.permute.xlu0 %1091
    %v1094 = vmul.f32 %v1081, %v1092
    %1096 = vrot.lane.b32.xlu0 %v1094, 32
    %v1097 = vpop.permute.xlu0 %1096
    %v1099 = vadd.f32 %v283, %v1097
    %v1100 = vtanh.pop %v1099
    %v1101 = vsub.f32 1.0, %v1081
    %1103 = vrot.lane.b32.xlu0 %v1100, 112
    %v1104 = vpop.permute.xlu0 %1103
    %v1106 = vmul.f32 %v1101, %v1104
    %v1107 = vmul.f32 %v1081, %v992
    %v1108 = vadd.f32 %v1106, %v1107
    %v1111 = vunpack.c.l.s4 1983009808
    %v1112 = vunpack.c.0.s8 %v1111
    %v1113 = vlaneseq
    %v1114 = vshrl.u32 %v1113, 7
    %v1115 = vsub.s32 %v1112, %v1114
    %v1116 = vrot.slane %v1108, %v1115
    %1117 = vrot.lane.b32.xlu0 %v1116, 112
    %v1118 = vpop.permute.xlu0 %1117
    %v1119 = vsel %vm297, %v1118, 0
    %1121 = vmatprep.subr.mxu0 0.0
    %1122 = vmatpush1.msra.mxu0 %v294
    %1123 = vmatprep.subr.mxu0 0.0
    %1124 = vmatpush1.msra.mxu0 %v295
    %1125 = vmatprep.subr.mxu0 0.0
    %1126 = vmatpush1.msra.mxu0 0.0
    %1127 = vmatprep.subr.mxu0 0.0
    %1128 = vmatpush1.msra.mxu0 0.0
    %1129 = vmatprep.subr.mxu0 0.0
    %1130 = vmatpush1.msra.mxu0 0.0
    %1131 = vmatprep.subr.mxu0 0.0
    %1132 = vmatpush1.msra.mxu0 0.0
    %1133 = vmatprep.subr.mxu0 0.0
    %1134 = vmatpush1.msra.mxu0 0.0
    %1135 = vmatprep.subr.mxu0 0.0
    %1136 = vmatpush1.msra.mxu0 0.0
    %1137 = vmatprep.subr.mxu0 0.0
    %1138 = vmatpush1.msra.mxu0 0.0
    %1139 = vmatprep.subr.mxu0 0.0
    %1140 = vmatpush1.msra.mxu0 0.0
    %1141 = vmatprep.subr.mxu0 0.0
    %1142 = vmatpush1.msra.mxu0 0.0
    %1143 = vmatprep.subr.mxu0 0.0
    %1144 = vmatpush1.msra.mxu0 0.0
    %1145 = vmatprep.subr.mxu0 0.0
    %1146 = vmatpush1.msra.mxu0 0.0
    %1147 = vmatprep.subr.mxu0 0.0
    %1148 = vmatpush1.msra.mxu0 0.0
    %1149 = vmatprep.subr.mxu0 0.0
    %1150 = vmatpush1.msra.mxu0 0.0
    %1151 = vmatprep.subr.mxu0 0.0
    %1152 = vmatpush1.msra.mxu0 0.0
    %1153 = vmatprep.subr.mxu0 0.0
    %1154 = vmatpush1.msra.mxu0 0.0
    %1155 = vmatprep.subr.mxu0 0.0
    %1156 = vmatpush1.msra.mxu0 0.0
    %1157 = vmatprep.subr.mxu0 0.0
    %1158 = vmatpush1.msra.mxu0 0.0
    %1159 = vmatprep.subr.mxu0 0.0
    %1160 = vmatpush1.msra.mxu0 0.0
    %1161 = vmatprep.subr.mxu0 0.0
    %1162 = vmatpush1.msra.mxu0 0.0
    %1163 = vmatprep.subr.mxu0 0.0
    %1164 = vmatpush1.msra.mxu0 0.0
    %1165 = vmatprep.subr.mxu0 0.0
    %1166 = vmatpush1.msra.mxu0 0.0
    %1167 = vmatprep.subr.mxu0 0.0
    %1168 = vmatpush1.msra.mxu0 0.0
    %1169 = vmatprep.subr.mxu0 0.0
    %1170 = vmatpush1.msra.mxu0 0.0
    %1171 = vmatprep.subr.mxu0 0.0
    %1172 = vmatpush1.msra.mxu0 0.0
    %1173 = vmatprep.subr.mxu0 0.0
    %1174 = vmatpush1.msra.mxu0 0.0
    %1175 = vmatprep.subr.mxu0 0.0
    %1176 = vmatpush1.msra.mxu0 0.0
    %1177 = vmatprep.subr.mxu0 0.0
    %1178 = vmatpush1.msra.mxu0 0.0
    %1179 = vmatprep.subr.mxu0 0.0
    %1180 = vmatpush1.msra.mxu0 0.0
    %1181 = vmatprep.subr.mxu0 0.0
    %1182 = vmatpush1.msra.mxu0 0.0
    %1183 = vmatprep.subr.mxu0 0.0
    %1184 = vmatpush1.msra.mxu0 0.0
    %1185 = vmatprep.mubr.f32.mxu0 0.0
    %1186 = vmatmul.mubr.f32.gmra.mrb[0].mxu0 %v1119
    %v1187 = vpop.f32.mrb[0].mxu0
    %v1188 = vadd.f32 0.0, %v1187
    %v1189 = vpop.f32.mrb[0].mxu0
    %1190 = vdwg.mxu0
    %v1191 = vadd.f32 %v285, %v1188
    %v1192 = vxor.u32 %v1191, 2147483648
    %v1193 = vmul.f32 %v1192, 1.442695
    %v1194 = vpow.pop %v1193
    %v1195 = vadd.f32 %v1194, 1.0
    %v1196 = vrcp.pop %v1195
    %v1197 = vmul.f32 1.0, %v1196
    %v1198 = vadd.f32 %v1188, %v384
    %v1201 = vunpack.c.l.s4 1983009808
    %v1202 = vunpack.c.0.s8 %v1201
    %v1203 = vlaneseq
    %v1204 = vshrl.u32 %v1203, 7
    %v1205 = vsub.s32 %v1202, %v1204
    %v1206 = vrot.slane %v1198, %v1205
    %1207 = vrot.lane.b32.xlu0 %v1206, 96
    %v1208 = vpop.permute.xlu0 %1207
    %v1210 = vmul.f32 %v1197, %v1208
    %1212 = vrot.lane.b32.xlu0 %v1210, 32
    %v1213 = vpop.permute.xlu0 %1212
    %v1215 = vadd.f32 %v285, %v1213
    %v1216 = vtanh.pop %v1215
    %v1217 = vsub.f32 1.0, %v1197
    %1219 = vrot.lane.b32.xlu0 %v1216, 112
    %v1220 = vpop.permute.xlu0 %1219
    %v1222 = vmul.f32 %v1217, %v1220
    %v1223 = vmul.f32 %v1197, %v1108
    %v1224 = vadd.f32 %v1222, %v1223
    %1226 = vset.pattern.permute.xlu0 0
    %1227 = vperm.xlu0 %1226, %v107
    %v1228 = vpop.permute.xlu0 %1227
    %1230 = vset.pattern.permute.xlu0 0
    %1231 = vperm.xlu0 %1230, %v108
    %v1232 = vpop.permute.xlu0 %1231
    %v1234 = vunpack.c.l.s4 269488144
    %v1235 = vunpack.c.0.s8 %v1234
    %v1236 = vlaneseq
    %v1237 = vshrl.u32 %v1236, 7
    %v1238 = vsub.s32 %v1235, %v1237
    %v1239 = vrot.slane %v1228, %v1238
    %v1241 = vunpack.c.l.s4 269488144
    %v1242 = vunpack.c.0.s8 %v1241
    %v1243 = vlaneseq
    %v1244 = vshrl.u32 %v1243, 7
    %v1245 = vsub.s32 %v1242, %v1244
    %v1246 = vrot.slane %v1232, %v1245
    %vm1247 = vcmask 1044484
    %v1248 = vsel %vm1247, %v1239, %v1239
    %vm1249 = vcmask 1046534
    %v1250 = vsel %vm1249, %v1239, %v1248
    %v1251 = vrot.slane %v1246, 7
    %vm1252 = vcmask 1041409
    %v1253 = vsel %vm1252, %v1251, %v1250
    %vm1254 = vcmask 1043459
    %v1255 = vsel %vm1254, %v1251, %v1253
    %vm1256 = vcmask 1045509
    %v1257 = vsel %vm1256, %v1251, %v1255
    %vm1258 = vcmask 1047559
    %v1259 = vsel %vm1258, %v1251, %v1257
    %v1261 = vmul.f32 %v412, %v1259
    %v1262 = vmul.f32 %v1224, %v1259
    %v1263 = vadd.f32 %v1261, 0.0
    %v1264 = vadd.f32 %v1262, 0.0
    %v1265 = vrot.slane %v1239, 1
    %v1266 = vsel %vm1247, %v1265, %v1265
    %v1267 = vsel %vm1249, %v1265, %v1266
    %v1268 = vsel %vm1252, %v1246, %v1267
    %v1269 = vsel %vm1254, %v1246, %v1268
    %v1270 = vsel %vm1256, %v1246, %v1269
    %v1271 = vsel %vm1258, %v1246, %v1270
    %v1273 = vmul.f32 %v528, %v1271
    %v1274 = vmul.f32 %v1108, %v1271
    %v1275 = vadd.f32 %v1263, %v1273
    %v1276 = vadd.f32 %v1264, %v1274
    %v1278 = vunpack.c.l.s4 842150450
    %v1279 = vunpack.c.0.s8 %v1278
    %v1280 = vlaneseq
    %v1281 = vshrl.u32 %v1280, 7
    %v1282 = vsub.s32 %v1279, %v1281
    %v1283 = vrot.slane %v1228, %v1282
    %v1285 = vunpack.c.l.s4 842150450
    %v1286 = vunpack.c.0.s8 %v1285
    %v1287 = vlaneseq
    %v1288 = vshrl.u32 %v1287, 7
    %v1289 = vsub.s32 %v1286, %v1288
    %v1290 = vrot.slane %v1232, %v1289
    %v1291 = vsel %vm1247, %v1283, %v1283
    %v1292 = vsel %vm1249, %v1283, %v1291
    %v1293 = vrot.slane %v1290, 7
    %v1294 = vsel %vm1252, %v1293, %v1292
    %v1295 = vsel %vm1254, %v1293, %v1294
    %v1296 = vsel %vm1256, %v1293, %v1295
    %v1297 = vsel %vm1258, %v1293, %v1296
    %v1299 = vmul.f32 %v644, %v1297
    %v1300 = vmul.f32 %v992, %v1297
    %v1301 = vadd.f32 %v1275, %v1299
    %v1302 = vadd.f32 %v1276, %v1300
    %v1303 = vrot.slane %v1283, 1
    %v1304 = vsel %vm1247, %v1303, %v1303
    %v1305 = vsel %vm1249, %v1303, %v1304
    %v1306 = vsel %vm1252, %v1290, %v1305
    %v1307 = vsel %vm1254, %v1290, %v1306
    %v1308 = vsel %vm1256, %v1290, %v1307
    %v1309 = vsel %vm1258, %v1290, %v1308
    %v1311 = vmul.f32 %v760, %v1309
    %v1312 = vmul.f32 %v876, %v1309
    %v1313 = vadd.f32 %v1301, %v1311
    %v1314 = vadd.f32 %v1302, %v1312
    %v1316 = vunpack.c.l.s4 1414812756
    %v1317 = vunpack.c.0.s8 %v1316
    %v1318 = vlaneseq
    %v1319 = vshrl.u32 %v1318, 7
    %v1320 = vsub.s32 %v1317, %v1319
    %v1321 = vrot.slane %v1228, %v1320
    %v1323 = vunpack.c.l.s4 1414812756
    %v1324 = vunpack.c.0.s8 %v1323
    %v1325 = vlaneseq
    %v1326 = vshrl.u32 %v1325, 7
    %v1327 = vsub.s32 %v1324, %v1326
    %v1328 = vrot.slane %v1232, %v1327
    %v1329 = vsel %vm1247, %v1321, %v1321
    %v1330 = vsel %vm1249, %v1321, %v1329
    %v1331 = vrot.slane %v1328, 7
    %v1332 = vsel %vm1252, %v1331, %v1330
    %v1333 = vsel %vm1254, %v1331, %v1332
    %v1334 = vsel %vm1256, %v1331, %v1333
    %v1335 = vsel %vm1258, %v1331, %v1334
    %v1337 = vmul.f32 %v876, %v1335
    %v1338 = vmul.f32 %v760, %v1335
    %v1339 = vadd.f32 %v1313, %v1337
    %v1340 = vadd.f32 %v1314, %v1338
    %v1341 = vrot.slane %v1321, 1
    %v1342 = vsel %vm1247, %v1341, %v1341
    %v1343 = vsel %vm1249, %v1341, %v1342
    %v1344 = vsel %vm1252, %v1328, %v1343
    %v1345 = vsel %vm1254, %v1328, %v1344
    %v1346 = vsel %vm1256, %v1328, %v1345
    %v1347 = vsel %vm1258, %v1328, %v1346
    %v1349 = vmul.f32 %v992, %v1347
    %v1350 = vmul.f32 %v644, %v1347
    %v1351 = vadd.f32 %v1339, %v1349
    %v1352 = vadd.f32 %v1340, %v1350
    %v1354 = vunpack.c.l.s4 1987475062
    %v1355 = vunpack.c.0.s8 %v1354
    %v1356 = vlaneseq
    %v1357 = vshrl.u32 %v1356, 7
    %v1358 = vsub.s32 %v1355, %v1357
    %v1359 = vrot.slane %v1228, %v1358
    %v1361 = vunpack.c.l.s4 1987475062
    %v1362 = vunpack.c.0.s8 %v1361
    %v1363 = vlaneseq
    %v1364 = vshrl.u32 %v1363, 7
    %v1365 = vsub.s32 %v1362, %v1364
    %v1366 = vrot.slane %v1232, %v1365
    %v1367 = vsel %vm1247, %v1359, %v1359
    %v1368 = vsel %vm1249, %v1359, %v1367
    %v1369 = vrot.slane %v1366, 7
    %v1370 = vsel %vm1252, %v1369, %v1368
    %v1371 = vsel %vm1254, %v1369, %v1370
    %v1372 = vsel %vm1256, %v1369, %v1371
    %v1373 = vsel %vm1258, %v1369, %v1372
    %v1375 = vmul.f32 %v1108, %v1373
    %v1376 = vmul.f32 %v528, %v1373
    %v1377 = vadd.f32 %v1351, %v1375
    %v1378 = vadd.f32 %v1352, %v1376
    %v1379 = vrot.slane %v1359, 1
    %v1380 = vsel %vm1247, %v1379, %v1379
    %v1381 = vsel %vm1249, %v1379, %v1380
    %v1382 = vsel %vm1252, %v1366, %v1381
    %v1383 = vsel %vm1254, %v1366, %v1382
    %v1384 = vsel %vm1256, %v1366, %v1383
    %v1385 = vsel %vm1258, %v1366, %v1384
    %v1387 = vmul.f32 %v1224, %v1385
    %v1388 = vmul.f32 %v412, %v1385
    %v1389 = vadd.f32 %v1377, %v1387
    %v1390 = vadd.f32 %v1378, %v1388
    %vm1391 = vcmask 7168
    %v1392 = vsel %vm1391, %v107, 0.0
    %v1393 = vrot.slane %v1392, 4
    %v1394 = vadd.f32 %v1392, %v1393
    %v1395 = vrot.slane %v1394, 2
    %v1396 = vadd.f32 %v1394, %v1395
    %v1397 = vrot.slane %v1396, 1
    %v1398 = vadd.f32 %v1396, %v1397
    %v1399 = vsel %vm1391, %v108, 0.0
    %v1400 = vrot.slane %v1399, 4
    %v1401 = vadd.f32 %v1399, %v1400
    %v1402 = vrot.slane %v1401, 2
    %v1403 = vadd.f32 %v1401, %v1402
    %v1404 = vrot.slane %v1403, 1
    %v1405 = vadd.f32 %v1403, %v1404
    %v1406 = vmax.f32 %v1398, 1.0
    %v1407 = vmax.f32 %v1405, 1.0
    %v1408 = vrcp.pop %v1406
    %v1409 = vrcp.pop %v1407
    %v1412 = vunpack.c.l.s4 1983009808
    %v1413 = vunpack.c.0.s8 %v1412
    %v1414 = vlaneseq
    %v1415 = vshrl.u32 %v1414, 7
    %v1416 = vsub.s32 %v1413, %v1415
    %v1417 = vrot.slane %v1389, %v1416
    %1418 = vrot.lane.b32.xlu0 %v1417, 112
    %v1419 = vpop.permute.xlu0 %1418
    %v1423 = vunpack.c.l.s4 1983009808
    %v1424 = vunpack.c.0.s8 %v1423
    %v1425 = vlaneseq
    %v1426 = vshrl.u32 %v1425, 7
    %v1427 = vsub.s32 %v1424, %v1426
    %v1428 = vrot.slane %v1390, %v1427
    %1429 = vrot.lane.b32.xlu0 %v1428, 112
    %v1430 = vpop.permute.xlu0 %1429
    %vm1432 = vcmask 64512
    %v1433 = vsel %vm1432, %v1419, %v1430
    %1435 = vset.pattern.permute.xlu0 0
    %1436 = vperm.xlu0 %1435, %v1408
    %v1437 = vpop.permute.xlu0 %1436
    %1439 = vset.pattern.permute.xlu0 0
    %1440 = vperm.xlu0 %1439, %v1409
    %v1441 = vpop.permute.xlu0 %1440
    %v1442 = vsel %vm1252, %v1441, %v1437
    %v1444 = vmul.f32 %v1433, %v1442
    %vm1445 = vcmask 123904
    %1446 = vst.msk [vmem:[#allocation2] sm:$0x3] %vm1445, 0.0
    %1447 = vst.msk [vmem:[#allocation2 + $0x10] sm:$0x3] %vm1445, 0.0
    %1448 = vst.msk [vmem:[#allocation2 + $0xa] sm:$0x3] %vm1445, 0.0
    %1449 = vst.msk [vmem:[#allocation2 + $0x1a] sm:$0x3] %vm1445, 0.0
    %v1452 = vunpack.c.l.s4 1966171168
    %v1453 = vunpack.c.0.s8 %v1452
    %v1454 = vlaneseq
    %v1455 = vshrl.u32 %v1454, 7
    %v1456 = vsub.s32 %v1453, %v1455
    %v1457 = vrot.slane %v1261, %v1456
    %v1458 = vcombine.high %v1457, %v1457
    %v1463 = vunpack.c.l.s4 1966171168
    %v1464 = vunpack.c.0.s8 %v1463
    %v1465 = vlaneseq
    %v1466 = vshrl.u32 %v1465, 7
    %v1467 = vsub.s32 %v1464, %v1466
    %v1468 = vrot.slane %v1273, %v1467
    %v1469 = vcombine.high %v1468, %v1468
    %v1472 = vunpack.c.l.s4 1966171168
    %v1473 = vunpack.c.0.s8 %v1472
    %v1474 = vlaneseq
    %v1475 = vshrl.u32 %v1474, 7
    %v1476 = vsub.s32 %v1473, %v1475
    %v1477 = vrot.slane %v1299, %v1476
    %v1478 = vcombine.high %v1477, %v1477
    %v1481 = vunpack.c.l.s4 1966171168
    %v1482 = vunpack.c.0.s8 %v1481
    %v1483 = vlaneseq
    %v1484 = vshrl.u32 %v1483, 7
    %v1485 = vsub.s32 %v1482, %v1484
    %v1486 = vrot.slane %v1311, %v1485
    %v1487 = vcombine.high %v1486, %v1486
    %v1490 = vunpack.c.l.s4 1966171168
    %v1491 = vunpack.c.0.s8 %v1490
    %v1492 = vlaneseq
    %v1493 = vshrl.u32 %v1492, 7
    %v1494 = vsub.s32 %v1491, %v1493
    %v1495 = vrot.slane %v1337, %v1494
    %v1496 = vcombine.high %v1495, %v1495
    %v1499 = vunpack.c.l.s4 1966171168
    %v1500 = vunpack.c.0.s8 %v1499
    %v1501 = vlaneseq
    %v1502 = vshrl.u32 %v1501, 7
    %v1503 = vsub.s32 %v1500, %v1502
    %v1504 = vrot.slane %v1349, %v1503
    %v1505 = vcombine.high %v1504, %v1504
    %v1508 = vunpack.c.l.s4 1966171168
    %v1509 = vunpack.c.0.s8 %v1508
    %v1510 = vlaneseq
    %v1511 = vshrl.u32 %v1510, 7
    %v1512 = vsub.s32 %v1509, %v1511
    %v1513 = vrot.slane %v1375, %v1512
    %v1514 = vcombine.high %v1513, %v1513
    %v1517 = vunpack.c.l.s4 1966171168
    %v1518 = vunpack.c.0.s8 %v1517
    %v1519 = vlaneseq
    %v1520 = vshrl.u32 %v1519, 7
    %v1521 = vsub.s32 %v1518, %v1520
    %v1522 = vrot.slane %v1387, %v1521
    %v1523 = vcombine.high %v1522, %v1522
    %v1524 = vlaneseq
    %v1525 = vshrl.u32 %v1524, 7
    %v1526 = vsub.s32 0, %v1525
    %v1527 = vrot.slane %v1468, %v1526
    %v1528 = vlaneseq
    %v1529 = vshrl.u32 %v1528, 7
    %v1530 = vsub.s32 0, %v1529
    %v1531 = vrot.slane %v1469, %v1530
    %v1534 = vlaneseq
    %v1535 = vshrl.u32 %v1534, 7
    %v1536 = vsub.s32 0, %v1535
    %v1537 = vrot.slane %v1477, %v1536
    %v1538 = vlaneseq
    %v1539 = vshrl.u32 %v1538, 7
    %v1540 = vsub.s32 0, %v1539
    %v1541 = vrot.slane %v1478, %v1540
    %v1544 = vlaneseq
    %v1545 = vshrl.u32 %v1544, 7
    %v1546 = vsub.s32 0, %v1545
    %v1547 = vrot.slane %v1486, %v1546
    %v1548 = vlaneseq
    %v1549 = vshrl.u32 %v1548, 7
    %v1550 = vsub.s32 0, %v1549
    %v1551 = vrot.slane %v1487, %v1550
    %v1554 = vlaneseq
    %v1555 = vshrl.u32 %v1554, 7
    %v1556 = vsub.s32 0, %v1555
    %v1557 = vrot.slane %v1495, %v1556
    %v1558 = vlaneseq
    %v1559 = vshrl.u32 %v1558, 7
    %v1560 = vsub.s32 0, %v1559
    %v1561 = vrot.slane %v1496, %v1560
    %v1564 = vlaneseq
    %v1565 = vshrl.u32 %v1564, 7
    %v1566 = vsub.s32 0, %v1565
    %v1567 = vrot.slane %v1504, %v1566
    %v1568 = vlaneseq
    %v1569 = vshrl.u32 %v1568, 7
    %v1570 = vsub.s32 0, %v1569
    %v1571 = vrot.slane %v1505, %v1570
    %v1574 = vlaneseq
    %v1575 = vshrl.u32 %v1574, 7
    %v1576 = vsub.s32 0, %v1575
    %v1577 = vrot.slane %v1513, %v1576
    %v1578 = vlaneseq
    %v1579 = vshrl.u32 %v1578, 7
    %v1580 = vsub.s32 0, %v1579
    %v1581 = vrot.slane %v1514, %v1580
    %v1584 = vlaneseq
    %v1585 = vshrl.u32 %v1584, 7
    %v1586 = vsub.s32 0, %v1585
    %v1587 = vrot.slane %v1522, %v1586
    %v1588 = vlaneseq
    %v1589 = vshrl.u32 %v1588, 7
    %v1590 = vsub.s32 0, %v1589
    %v1591 = vrot.slane %v1523, %v1590
    %vm1594 = vcmask 1040384
    %v1595 = vsel %vm1594, %v1457, %v1527
    %v1596 = vsel %vm1594, %v1458, %v1531
    %vm1597 = vcmask 1041408
    %v1598 = vsel %vm1597, %v1595, %v1537
    %v1599 = vsel %vm1597, %v1596, %v1541
    %vm1600 = vcmask 1042432
    %v1601 = vsel %vm1600, %v1598, %v1547
    %v1602 = vsel %vm1600, %v1599, %v1551
    %vm1603 = vcmask 1043456
    %v1604 = vsel %vm1603, %v1601, %v1557
    %v1605 = vsel %vm1603, %v1602, %v1561
    %vm1606 = vcmask 1044480
    %v1607 = vsel %vm1606, %v1604, %v1567
    %v1608 = vsel %vm1606, %v1605, %v1571
    %vm1609 = vcmask 1045504
    %v1610 = vsel %vm1609, %v1607, %v1577
    %v1611 = vsel %vm1609, %v1608, %v1581
    %vm1612 = vcmask 1046528
    %v1613 = vsel %vm1612, %v1610, %v1587
    %v1614 = vsel %vm1612, %v1611, %v1591
    %v1617 = vunpack.c.l.s4 1966171168
    %v1618 = vunpack.c.0.s8 %v1617
    %v1619 = vlaneseq
    %v1620 = vshrl.u32 %v1619, 7
    %v1621 = vsub.s32 %v1618, %v1620
    %v1622 = vrot.slane %v1262, %v1621
    %v1623 = vcombine.high %v1622, %v1622
    %v1628 = vunpack.c.l.s4 1966171168
    %v1629 = vunpack.c.0.s8 %v1628
    %v1630 = vlaneseq
    %v1631 = vshrl.u32 %v1630, 7
    %v1632 = vsub.s32 %v1629, %v1631
    %v1633 = vrot.slane %v1274, %v1632
    %v1634 = vcombine.high %v1633, %v1633
    %v1637 = vunpack.c.l.s4 1966171168
    %v1638 = vunpack.c.0.s8 %v1637
    %v1639 = vlaneseq
    %v1640 = vshrl.u32 %v1639, 7
    %v1641 = vsub.s32 %v1638, %v1640
    %v1642 = vrot.slane %v1300, %v1641
    %v1643 = vcombine.high %v1642, %v1642
    %v1646 = vunpack.c.l.s4 1966171168
    %v1647 = vunpack.c.0.s8 %v1646
    %v1648 = vlaneseq
    %v1649 = vshrl.u32 %v1648, 7
    %v1650 = vsub.s32 %v1647, %v1649
    %v1651 = vrot.slane %v1312, %v1650
    %v1652 = vcombine.high %v1651, %v1651
    %v1655 = vunpack.c.l.s4 1966171168
    %v1656 = vunpack.c.0.s8 %v1655
    %v1657 = vlaneseq
    %v1658 = vshrl.u32 %v1657, 7
    %v1659 = vsub.s32 %v1656, %v1658
    %v1660 = vrot.slane %v1338, %v1659
    %v1661 = vcombine.high %v1660, %v1660
    %v1664 = vunpack.c.l.s4 1966171168
    %v1665 = vunpack.c.0.s8 %v1664
    %v1666 = vlaneseq
    %v1667 = vshrl.u32 %v1666, 7
    %v1668 = vsub.s32 %v1665, %v1667
    %v1669 = vrot.slane %v1350, %v1668
    %v1670 = vcombine.high %v1669, %v1669
    %v1673 = vunpack.c.l.s4 1966171168
    %v1674 = vunpack.c.0.s8 %v1673
    %v1675 = vlaneseq
    %v1676 = vshrl.u32 %v1675, 7
    %v1677 = vsub.s32 %v1674, %v1676
    %v1678 = vrot.slane %v1376, %v1677
    %v1679 = vcombine.high %v1678, %v1678
    %v1682 = vunpack.c.l.s4 1966171168
    %v1683 = vunpack.c.0.s8 %v1682
    %v1684 = vlaneseq
    %v1685 = vshrl.u32 %v1684, 7
    %v1686 = vsub.s32 %v1683, %v1685
    %v1687 = vrot.slane %v1388, %v1686
    %v1688 = vcombine.high %v1687, %v1687
    %v1689 = vlaneseq
    %v1690 = vshrl.u32 %v1689, 7
    %v1691 = vsub.s32 0, %v1690
    %v1692 = vrot.slane %v1633, %v1691
    %v1693 = vlaneseq
    %v1694 = vshrl.u32 %v1693, 7
    %v1695 = vsub.s32 0, %v1694
    %v1696 = vrot.slane %v1634, %v1695
    %v1699 = vlaneseq
    %v1700 = vshrl.u32 %v1699, 7
    %v1701 = vsub.s32 0, %v1700
    %v1702 = vrot.slane %v1642, %v1701
    %v1703 = vlaneseq
    %v1704 = vshrl.u32 %v1703, 7
    %v1705 = vsub.s32 0, %v1704
    %v1706 = vrot.slane %v1643, %v1705
    %v1709 = vlaneseq
    %v1710 = vshrl.u32 %v1709, 7
    %v1711 = vsub.s32 0, %v1710
    %v1712 = vrot.slane %v1651, %v1711
    %v1713 = vlaneseq
    %v1714 = vshrl.u32 %v1713, 7
    %v1715 = vsub.s32 0, %v1714
    %v1716 = vrot.slane %v1652, %v1715
    %v1719 = vlaneseq
    %v1720 = vshrl.u32 %v1719, 7
    %v1721 = vsub.s32 0, %v1720
    %v1722 = vrot.slane %v1660, %v1721
    %v1723 = vlaneseq
    %v1724 = vshrl.u32 %v1723, 7
    %v1725 = vsub.s32 0, %v1724
    %v1726 = vrot.slane %v1661, %v1725
    %v1729 = vlaneseq
    %v1730 = vshrl.u32 %v1729, 7
    %v1731 = vsub.s32 0, %v1730
    %v1732 = vrot.slane %v1669, %v1731
    %v1733 = vlaneseq
    %v1734 = vshrl.u32 %v1733, 7
    %v1735 = vsub.s32 0, %v1734
    %v1736 = vrot.slane %v1670, %v1735
    %v1739 = vlaneseq
    %v1740 = vshrl.u32 %v1739, 7
    %v1741 = vsub.s32 0, %v1740
    %v1742 = vrot.slane %v1678, %v1741
    %v1743 = vlaneseq
    %v1744 = vshrl.u32 %v1743, 7
    %v1745 = vsub.s32 0, %v1744
    %v1746 = vrot.slane %v1679, %v1745
    %v1749 = vlaneseq
    %v1750 = vshrl.u32 %v1749, 7
    %v1751 = vsub.s32 0, %v1750
    %v1752 = vrot.slane %v1687, %v1751
    %v1753 = vlaneseq
    %v1754 = vshrl.u32 %v1753, 7
    %v1755 = vsub.s32 0, %v1754
    %v1756 = vrot.slane %v1688, %v1755
    %v1759 = vsel %vm1594, %v1622, %v1692
    %v1760 = vsel %vm1594, %v1623, %v1696
    %v1761 = vsel %vm1597, %v1759, %v1702
    %v1762 = vsel %vm1597, %v1760, %v1706
    %v1763 = vsel %vm1600, %v1761, %v1712
    %v1764 = vsel %vm1600, %v1762, %v1716
    %v1765 = vsel %vm1603, %v1763, %v1722
    %v1766 = vsel %vm1603, %v1764, %v1726
    %v1767 = vsel %vm1606, %v1765, %v1732
    %v1768 = vsel %vm1606, %v1766, %v1736
    %v1769 = vsel %vm1609, %v1767, %v1742
    %v1770 = vsel %vm1609, %v1768, %v1746
    %v1771 = vsel %vm1612, %v1769, %v1752
    %v1772 = vsel %vm1612, %v1770, %v1756
    %1775 = vrot.lane.b32.xlu0 %v1613, 112
    %v1776 = vpop.permute.xlu0 %1775
    %1777 = vrot.lane.b32.xlu0 %v1614, 112
    %v1778 = vpop.permute.xlu0 %1777
    %1783 = vrot.lane.b32.xlu0 %v1771, 112
    %v1784 = vpop.permute.xlu0 %1783
    %1785 = vrot.lane.b32.xlu0 %v1772, 112
    %v1786 = vpop.permute.xlu0 %1785
    %v1789 = vsel %vm1432, %v1776, %v1784
    %v1790 = vsel %vm1432, %v1778, %v1786
    %1791 = vst.msk [vmem:[#allocation2 + $0x2] sm:$0xff] %vm297, %v1789
    %1792 = vst.msk [vmem:[#allocation2 + $0x12] sm:$0xff] %vm297, %v1790
    %v1793 = vld [vmem:[%s8] sm:$0xff]
    %v1794 = vld [vmem:[%s8 + $0x8] sm:$0xff]
    %v1795 = vld [vmem:[%s8 + $0x10] sm:$0xff]
    %v1796 = vld [vmem:[%s8 + $0x18] sm:$0xff]
    %v1797 = vld [vmem:[%s8 + $0x20] sm:$0xff]
    %v1798 = vld [vmem:[%s8 + $0x28] sm:$0xff]
    %v1799 = vld [vmem:[#allocation2] sm:$0xff]
    %v1800 = vld [vmem:[#allocation2 + $0x8] sm:$0x3]
    %v1801 = vld [vmem:[#allocation2 + $0x10] sm:$0xff]
    %v1802 = vld [vmem:[#allocation2 + $0x18] sm:$0x3]
    %v1807 = vcombine.high %v1799, %v1799
    %v1809 = vunpack.c.l.s4 1983009808
    %v1810 = vunpack.c.0.s8 %v1809
    %v1811 = vlaneseq
    %v1812 = vshrl.u32 %v1811, 7
    %v1813 = vsub.s32 %v1810, %v1812
    %v1814 = vrot.slane %v1799, %v1813
    %v1816 = vunpack.c.l.s4 1983009808
    %v1817 = vunpack.c.0.s8 %v1816
    %v1818 = vlaneseq
    %v1819 = vshrl.u32 %v1818, 7
    %v1820 = vsub.s32 %v1817, %v1819
    %v1821 = vrot.slane %v1807, %v1820
    %v1822 = vcombine.high %v1814, %v1814
    %v1823 = vcombine.high %v1821, %v1821
    %v1825 = vunpack.c.l.s4 1983009808
    %v1826 = vunpack.c.0.s8 %v1825
    %v1827 = vlaneseq
    %v1828 = vshrl.u32 %v1827, 7
    %v1829 = vsub.s32 %v1826, %v1828
    %v1830 = vrot.slane %v1800, %v1829
    %v1831 = vcombine.high %v1801, %v1801
    %v1833 = vunpack.c.l.s4 1983009808
    %v1834 = vunpack.c.0.s8 %v1833
    %v1835 = vlaneseq
    %v1836 = vshrl.u32 %v1835, 7
    %v1837 = vsub.s32 %v1834, %v1836
    %v1838 = vrot.slane %v1801, %v1837
    %v1840 = vunpack.c.l.s4 1983009808
    %v1841 = vunpack.c.0.s8 %v1840
    %v1842 = vlaneseq
    %v1843 = vshrl.u32 %v1842, 7
    %v1844 = vsub.s32 %v1841, %v1843
    %v1845 = vrot.slane %v1831, %v1844
    %v1846 = vcombine.high %v1838, %v1838
    %v1847 = vcombine.high %v1845, %v1845
    %v1849 = vunpack.c.l.s4 1983009808
    %v1850 = vunpack.c.0.s8 %v1849
    %v1851 = vlaneseq
    %v1852 = vshrl.u32 %v1851, 7
    %v1853 = vsub.s32 %v1850, %v1852
    %v1854 = vrot.slane %v1802, %v1853
    %v1855 = vld [vmem:[#allocation2 + $0x1] sm:$0xff]
    %v1856 = vld [vmem:[#allocation2 + $0x9] sm:$0x3]
    %v1857 = vld [vmem:[#allocation2 + $0x11] sm:$0xff]
    %v1858 = vld [vmem:[#allocation2 + $0x19] sm:$0x3]
    %v1863 = vcombine.high %v1855, %v1855
    %v1865 = vunpack.c.l.s4 1983009808
    %v1866 = vunpack.c.0.s8 %v1865
    %v1867 = vlaneseq
    %v1868 = vshrl.u32 %v1867, 7
    %v1869 = vsub.s32 %v1866, %v1868
    %v1870 = vrot.slane %v1855, %v1869
    %v1872 = vunpack.c.l.s4 1983009808
    %v1873 = vunpack.c.0.s8 %v1872
    %v1874 = vlaneseq
    %v1875 = vshrl.u32 %v1874, 7
    %v1876 = vsub.s32 %v1873, %v1875
    %v1877 = vrot.slane %v1863, %v1876
    %v1878 = vcombine.high %v1870, %v1870
    %v1879 = vcombine.high %v1877, %v1877
    %v1881 = vunpack.c.l.s4 1983009808
    %v1882 = vunpack.c.0.s8 %v1881
    %v1883 = vlaneseq
    %v1884 = vshrl.u32 %v1883, 7
    %v1885 = vsub.s32 %v1882, %v1884
    %v1886 = vrot.slane %v1856, %v1885
    %v1887 = vcombine.high %v1857, %v1857
    %v1889 = vunpack.c.l.s4 1983009808
    %v1890 = vunpack.c.0.s8 %v1889
    %v1891 = vlaneseq
    %v1892 = vshrl.u32 %v1891, 7
    %v1893 = vsub.s32 %v1890, %v1892
    %v1894 = vrot.slane %v1857, %v1893
    %v1896 = vunpack.c.l.s4 1983009808
    %v1897 = vunpack.c.0.s8 %v1896
    %v1898 = vlaneseq
    %v1899 = vshrl.u32 %v1898, 7
    %v1900 = vsub.s32 %v1897, %v1899
    %v1901 = vrot.slane %v1887, %v1900
    %v1902 = vcombine.high %v1894, %v1894
    %v1903 = vcombine.high %v1901, %v1901
    %v1905 = vunpack.c.l.s4 1983009808
    %v1906 = vunpack.c.0.s8 %v1905
    %v1907 = vlaneseq
    %v1908 = vshrl.u32 %v1907, 7
    %v1909 = vsub.s32 %v1906, %v1908
    %v1910 = vrot.slane %v1858, %v1909
    %v1911 = vcombine.low %v1870, %v1878
    %v1912 = vcombine.low %v1877, %v1879
    %v1914 = vunpack.c.l.s4 1983009808
    %v1915 = vunpack.c.0.s8 %v1914
    %v1916 = vlaneseq
    %v1917 = vshrl.u32 %v1916, 7
    %v1918 = vsub.s32 %v1915, %v1917
    %v1919 = vrot.slane %v1911, %v1918
    %v1921 = vunpack.c.l.s4 1983009808
    %v1922 = vunpack.c.0.s8 %v1921
    %v1923 = vlaneseq
    %v1924 = vshrl.u32 %v1923, 7
    %v1925 = vsub.s32 %v1922, %v1924
    %v1926 = vrot.slane %v1912, %v1925
    %v1927 = vcombine.low %v1919, %v1926
    %v1928 = vcombine.low %v1886, %v1894
    %v1929 = vcombine.low %v1902, %v1901
    %v1931 = vunpack.c.l.s4 1983009808
    %v1932 = vunpack.c.0.s8 %v1931
    %v1933 = vlaneseq
    %v1934 = vshrl.u32 %v1933, 7
    %v1935 = vsub.s32 %v1932, %v1934
    %v1936 = vrot.slane %v1928, %v1935
    %v1938 = vunpack.c.l.s4 1983009808
    %v1939 = vunpack.c.0.s8 %v1938
    %v1940 = vlaneseq
    %v1941 = vshrl.u32 %v1940, 7
    %v1942 = vsub.s32 %v1939, %v1941
    %v1943 = vrot.slane %v1929, %v1942
    %v1944 = vcombine.low %v1936, %v1943
    %v1945 = vcombine.low %v1903, %v1910
    %v1947 = vunpack.c.l.s4 1983009808
    %v1948 = vunpack.c.0.s8 %v1947
    %v1949 = vlaneseq
    %v1950 = vshrl.u32 %v1949, 7
    %v1951 = vsub.s32 %v1948, %v1950
    %v1952 = vrot.slane %v1945, %v1951
    %v1953 = vsel %vm297, %v1927, 0
    %v1955 = vsel %vm297, %v1944, 0
    %v1957 = vsel %vm297, %v1952, 0
    %1959 = vmatprep.subr.mxu0 0.0
    %1960 = vmatpush1.msra.mxu0 %v1795
    %1961 = vmatprep.subr.mxu0 0.0
    %1962 = vmatpush1.msra.mxu0 %v1796
    %1963 = vmatprep.subr.mxu0 0.0
    %1964 = vmatpush1.msra.mxu0 0.0
    %1965 = vmatprep.subr.mxu0 0.0
    %1966 = vmatpush1.msra.mxu0 0.0
    %1967 = vmatprep.subr.mxu0 0.0
    %1968 = vmatpush1.msra.mxu0 0.0
    %1969 = vmatprep.subr.mxu0 0.0
    %1970 = vmatpush1.msra.mxu0 0.0
    %1971 = vmatprep.subr.mxu0 0.0
    %1972 = vmatpush1.msra.mxu0 0.0
    %1973 = vmatprep.subr.mxu0 0.0
    %1974 = vmatpush1.msra.mxu0 0.0
    %1975 = vmatprep.subr.mxu0 0.0
    %1976 = vmatpush1.msra.mxu0 0.0
    %1977 = vmatprep.subr.mxu0 0.0
    %1978 = vmatpush1.msra.mxu0 0.0
    %1979 = vmatprep.subr.mxu0 0.0
    %1980 = vmatpush1.msra.mxu0 0.0
    %1981 = vmatprep.subr.mxu0 0.0
    %1982 = vmatpush1.msra.mxu0 0.0
    %1983 = vmatprep.subr.mxu0 0.0
    %1984 = vmatpush1.msra.mxu0 0.0
    %1985 = vmatprep.subr.mxu0 0.0
    %1986 = vmatpush1.msra.mxu0 0.0
    %1987 = vmatprep.subr.mxu0 0.0
    %1988 = vmatpush1.msra.mxu0 0.0
    %1989 = vmatprep.subr.mxu0 0.0
    %1990 = vmatpush1.msra.mxu0 0.0
    %1991 = vmatprep.subr.mxu0 0.0
    %1992 = vmatpush1.msra.mxu0 0.0
    %1993 = vmatprep.subr.mxu0 0.0
    %1994 = vmatpush1.msra.mxu0 0.0
    %1995 = vmatprep.subr.mxu0 0.0
    %1996 = vmatpush1.msra.mxu0 0.0
    %1997 = vmatprep.subr.mxu0 0.0
    %1998 = vmatpush1.msra.mxu0 0.0
    %1999 = vmatprep.subr.mxu0 0.0
    %2000 = vmatpush1.msra.mxu0 0.0
    %2001 = vmatprep.subr.mxu0 0.0
    %2002 = vmatpush1.msra.mxu0 0.0
    %2003 = vmatprep.subr.mxu0 0.0
    %2004 = vmatpush1.msra.mxu0 0.0
    %2005 = vmatprep.subr.mxu0 0.0
    %2006 = vmatpush1.msra.mxu0 0.0
    %2007 = vmatprep.subr.mxu0 0.0
    %2008 = vmatpush1.msra.mxu0 0.0
    %2009 = vmatprep.subr.mxu0 0.0
    %2010 = vmatpush1.msra.mxu0 0.0
    %2011 = vmatprep.subr.mxu0 0.0
    %2012 = vmatpush1.msra.mxu0 0.0
    %2013 = vmatprep.subr.mxu0 0.0
    %2014 = vmatpush1.msra.mxu0 0.0
    %2015 = vmatprep.subr.mxu0 0.0
    %2016 = vmatpush1.msra.mxu0 0.0
    %2017 = vmatprep.subr.mxu0 0.0
    %2018 = vmatpush1.msra.mxu0 0.0
    %2019 = vmatprep.subr.mxu0 0.0
    %2020 = vmatpush1.msra.mxu0 0.0
    %2021 = vmatprep.subr.mxu0 0.0
    %2022 = vmatpush1.msra.mxu0 0.0
    %2023 = vmatprep.mubr.f32.mxu0 0.0
    %2024 = vmatmul.mubr.f32.gmra.mrb[0].mxu0 %v1953
    %v2025 = vpop.f32.mrb[0].mxu0
    %v2026 = vadd.f32 0.0, %v2025
    %v2027 = vpop.f32.mrb[0].mxu0
    %2028 = vmatprep.mubr.f32.mxu0 0.0
    %2029 = vmatmul.mubr.f32.gmra.mrb[0].mxu0 %v1955
    %v2030 = vpop.f32.mrb[0].mxu0
    %v2031 = vadd.f32 0.0, %v2030
    %v2032 = vpop.f32.mrb[0].mxu0
    %2033 = vmatprep.mubr.f32.mxu0 0.0
    %2034 = vmatmul.mubr.f32.gmra.mrb[0].mxu0 %v1957
    %v2035 = vpop.f32.mrb[0].mxu0
    %v2036 = vadd.f32 0.0, %v2035
    %v2037 = vpop.f32.mrb[0].mxu0
    %2038 = vdwg.mxu0
    %v2039 = vcombine.low %v1814, %v1822
    %v2040 = vcombine.low %v1821, %v1823
    %v2042 = vunpack.c.l.s4 1983009808
    %v2043 = vunpack.c.0.s8 %v2042
    %v2044 = vlaneseq
    %v2045 = vshrl.u32 %v2044, 7
    %v2046 = vsub.s32 %v2043, %v2045
    %v2047 = vrot.slane %v2039, %v2046
    %v2049 = vunpack.c.l.s4 1983009808
    %v2050 = vunpack.c.0.s8 %v2049
    %v2051 = vlaneseq
    %v2052 = vshrl.u32 %v2051, 7
    %v2053 = vsub.s32 %v2050, %v2052
    %v2054 = vrot.slane %v2040, %v2053
    %v2055 = vcombine.low %v2047, %v2054
    %v2056 = vcombine.low %v1830, %v1838
    %v2057 = vcombine.low %v1846, %v1845
    %v2059 = vunpack.c.l.s4 1983009808
    %v2060 = vunpack.c.0.s8 %v2059
    %v2061 = vlaneseq
    %v2062 = vshrl.u32 %v2061, 7
    %v2063 = vsub.s32 %v2060, %v2062
    %v2064 = vrot.slane %v2056, %v2063
    %v2066 = vunpack.c.l.s4 1983009808
    %v2067 = vunpack.c.0.s8 %v2066
    %v2068 = vlaneseq
    %v2069 = vshrl.u32 %v2068, 7
    %v2070 = vsub.s32 %v2067, %v2069
    %v2071 = vrot.slane %v2057, %v2070
    %v2072 = vcombine.low %v2064, %v2071
    %v2073 = vcombine.low %v1847, %v1854
    %v2075 = vunpack.c.l.s4 1983009808
    %v2076 = vunpack.c.0.s8 %v2075
    %v2077 = vlaneseq
    %v2078 = vshrl.u32 %v2077, 7
    %v2079 = vsub.s32 %v2076, %v2078
    %v2080 = vrot.slane %v2073, %v2079
    %v2081 = vsel %vm297, %v2055, 0
    %v2083 = vsel %vm297, %v2072, 0
    %v2085 = vsel %vm297, %v2080, 0
    %2087 = vmatprep.subr.mxu0 0.0
    %2088 = vmatpush1.msra.mxu0 %v1793
    %2089 = vmatprep.subr.mxu0 0.0
    %2090 = vmatpush1.msra.mxu0 %v1794
    %2091 = vmatprep.subr.mxu0 0.0
    %2092 = vmatpush1.msra.mxu0 0.0
    %2093 = vmatprep.subr.mxu0 0.0
    %2094 = vmatpush1.msra.mxu0 0.0
    %2095 = vmatprep.subr.mxu0 0.0
    %2096 = vmatpush1.msra.mxu0 0.0
    %2097 = vmatprep.subr.mxu0 0.0
    %2098 = vmatpush1.msra.mxu0 0.0
    %2099 = vmatprep.subr.mxu0 0.0
    %2100 = vmatpush1.msra.mxu0 0.0
    %2101 = vmatprep.subr.mxu0 0.0
    %2102 = vmatpush1.msra.mxu0 0.0
    %2103 = vmatprep.subr.mxu0 0.0
    %2104 = vmatpush1.msra.mxu0 0.0
    %2105 = vmatprep.subr.mxu0 0.0
    %2106 = vmatpush1.msra.mxu0 0.0
    %2107 = vmatprep.subr.mxu0 0.0
    %2108 = vmatpush1.msra.mxu0 0.0
    %2109 = vmatprep.subr.mxu0 0.0
    %2110 = vmatpush1.msra.mxu0 0.0
    %2111 = vmatprep.subr.mxu0 0.0
    %2112 = vmatpush1.msra.mxu0 0.0
    %2113 = vmatprep.subr.mxu0 0.0
    %2114 = vmatpush1.msra.mxu0 0.0
    %2115 = vmatprep.subr.mxu0 0.0
    %2116 = vmatpush1.msra.mxu0 0.0
    %2117 = vmatprep.subr.mxu0 0.0
    %2118 = vmatpush1.msra.mxu0 0.0
    %2119 = vmatprep.subr.mxu0 0.0
    %2120 = vmatpush1.msra.mxu0 0.0
    %2121 = vmatprep.subr.mxu0 0.0
    %2122 = vmatpush1.msra.mxu0 0.0
    %2123 = vmatprep.subr.mxu0 0.0
    %2124 = vmatpush1.msra.mxu0 0.0
    %2125 = vmatprep.subr.mxu0 0.0
    %2126 = vmatpush1.msra.mxu0 0.0
    %2127 = vmatprep.subr.mxu0 0.0
    %2128 = vmatpush1.msra.mxu0 0.0
    %2129 = vmatprep.subr.mxu0 0.0
    %2130 = vmatpush1.msra.mxu0 0.0
    %2131 = vmatprep.subr.mxu0 0.0
    %2132 = vmatpush1.msra.mxu0 0.0
    %2133 = vmatprep.subr.mxu0 0.0
    %2134 = vmatpush1.msra.mxu0 0.0
    %2135 = vmatprep.subr.mxu0 0.0
    %2136 = vmatpush1.msra.mxu0 0.0
    %2137 = vmatprep.subr.mxu0 0.0
    %2138 = vmatpush1.msra.mxu0 0.0
    %2139 = vmatprep.subr.mxu0 0.0
    %2140 = vmatpush1.msra.mxu0 0.0
    %2141 = vmatprep.subr.mxu0 0.0
    %2142 = vmatpush1.msra.mxu0 0.0
    %2143 = vmatprep.subr.mxu0 0.0
    %2144 = vmatpush1.msra.mxu0 0.0
    %2145 = vmatprep.subr.mxu0 0.0
    %2146 = vmatpush1.msra.mxu0 0.0
    %2147 = vmatprep.subr.mxu0 0.0
    %2148 = vmatpush1.msra.mxu0 0.0
    %2149 = vmatprep.subr.mxu0 0.0
    %2150 = vmatpush1.msra.mxu0 0.0
    %2151 = vmatprep.mubr.f32.mxu0 0.0
    %2152 = vmatmul.mubr.f32.gmra.mrb[0].mxu0 %v2081
    %v2153 = vpop.f32.mrb[0].mxu0
    %v2154 = vadd.f32 %v2026, %v2153
    %v2155 = vpop.f32.mrb[0].mxu0
    %2156 = vmatprep.mubr.f32.mxu0 0.0
    %2157 = vmatmul.mubr.f32.gmra.mrb[0].mxu0 %v2083
    %v2158 = vpop.f32.mrb[0].mxu0
    %v2159 = vadd.f32 %v2031, %v2158
    %v2160 = vpop.f32.mrb[0].mxu0
    %2161 = vmatprep.mubr.f32.mxu0 0.0
    %2162 = vmatmul.mubr.f32.gmra.mrb[0].mxu0 %v2085
    %v2163 = vpop.f32.mrb[0].mxu0
    %v2164 = vadd.f32 %v2036, %v2163
    %v2165 = vpop.f32.mrb[0].mxu0
    %2166 = vdwg.mxu0
    %v2167 = vld [vmem:[#allocation2 + $0x2] sm:$0xff]
    %v2168 = vld [vmem:[#allocation2 + $0xa] sm:$0x3]
    %v2169 = vld [vmem:[#allocation2 + $0x12] sm:$0xff]
    %v2170 = vld [vmem:[#allocation2 + $0x1a] sm:$0x3]
    %v2175 = vcombine.high %v2167, %v2167
    %v2177 = vunpack.c.l.s4 1983009808
    %v2178 = vunpack.c.0.s8 %v2177
    %v2179 = vlaneseq
    %v2180 = vshrl.u32 %v2179, 7
    %v2181 = vsub.s32 %v2178, %v2180
    %v2182 = vrot.slane %v2167, %v2181
    %v2184 = vunpack.c.l.s4 1983009808
    %v2185 = vunpack.c.0.s8 %v2184
    %v2186 = vlaneseq
    %v2187 = vshrl.u32 %v2186, 7
    %v2188 = vsub.s32 %v2185, %v2187
    %v2189 = vrot.slane %v2175, %v2188
    %v2190 = vcombine.high %v2182, %v2182
    %v2191 = vcombine.high %v2189, %v2189
    %v2193 = vunpack.c.l.s4 1983009808
    %v2194 = vunpack.c.0.s8 %v2193
    %v2195 = vlaneseq
    %v2196 = vshrl.u32 %v2195, 7
    %v2197 = vsub.s32 %v2194, %v2196
    %v2198 = vrot.slane %v2168, %v2197
    %v2199 = vcombine.high %v2169, %v2169
    %v2201 = vunpack.c.l.s4 1983009808
    %v2202 = vunpack.c.0.s8 %v2201
    %v2203 = vlaneseq
    %v2204 = vshrl.u32 %v2203, 7
    %v2205 = vsub.s32 %v2202, %v2204
    %v2206 = vrot.slane %v2169, %v2205
    %v2208 = vunpack.c.l.s4 1983009808
    %v2209 = vunpack.c.0.s8 %v2208
    %v2210 = vlaneseq
    %v2211 = vshrl.u32 %v2210, 7
    %v2212 = vsub.s32 %v2209, %v2211
    %v2213 = vrot.slane %v2199, %v2212
    %v2214 = vcombine.high %v2206, %v2206
    %v2215 = vcombine.high %v2213, %v2213
    %v2217 = vunpack.c.l.s4 1983009808
    %v2218 = vunpack.c.0.s8 %v2217
    %v2219 = vlaneseq
    %v2220 = vshrl.u32 %v2219, 7
    %v2221 = vsub.s32 %v2218, %v2220
    %v2222 = vrot.slane %v2170, %v2221
    %v2223 = vcombine.low %v2182, %v2190
    %v2224 = vcombine.low %v2189, %v2191
    %v2226 = vunpack.c.l.s4 1983009808
    %v2227 = vunpack.c.0.s8 %v2226
    %v2228 = vlaneseq
    %v2229 = vshrl.u32 %v2228, 7
    %v2230 = vsub.s32 %v2227, %v2229
    %v2231 = vrot.slane %v2223, %v2230
    %v2233 = vunpack.c.l.s4 1983009808
    %v2234 = vunpack.c.0.s8 %v2233
    %v2235 = vlaneseq
    %v2236 = vshrl.u32 %v2235, 7
    %v2237 = vsub.s32 %v2234, %v2236
    %v2238 = vrot.slane %v2224, %v2237
    %v2239 = vcombine.low %v2231, %v2238
    %v2240 = vcombine.low %v2198, %v2206
    %v2241 = vcombine.low %v2214, %v2213
    %v2243 = vunpack.c.l.s4 1983009808
    %v2244 = vunpack.c.0.s8 %v2243
    %v2245 = vlaneseq
    %v2246 = vshrl.u32 %v2245, 7
    %v2247 = vsub.s32 %v2244, %v2246
    %v2248 = vrot.slane %v2240, %v2247
    %v2250 = vunpack.c.l.s4 1983009808
    %v2251 = vunpack.c.0.s8 %v2250
    %v2252 = vlaneseq
    %v2253 = vshrl.u32 %v2252, 7
    %v2254 = vsub.s32 %v2251, %v2253
    %v2255 = vrot.slane %v2241, %v2254
    %v2256 = vcombine.low %v2248, %v2255
    %v2257 = vcombine.low %v2215, %v2222
    %v2259 = vunpack.c.l.s4 1983009808
    %v2260 = vunpack.c.0.s8 %v2259
    %v2261 = vlaneseq
    %v2262 = vshrl.u32 %v2261, 7
    %v2263 = vsub.s32 %v2260, %v2262
    %v2264 = vrot.slane %v2257, %v2263
    %v2265 = vsel %vm297, %v2239, 0
    %v2267 = vsel %vm297, %v2256, 0
    %v2269 = vsel %vm297, %v2264, 0
    %2271 = vmatprep.subr.mxu0 0.0
    %2272 = vmatpush1.msra.mxu0 %v1797
    %2273 = vmatprep.subr.mxu0 0.0
    %2274 = vmatpush1.msra.mxu0 %v1798
    %2275 = vmatprep.subr.mxu0 0.0
    %2276 = vmatpush1.msra.mxu0 0.0
    %2277 = vmatprep.subr.mxu0 0.0
    %2278 = vmatpush1.msra.mxu0 0.0
    %2279 = vmatprep.subr.mxu0 0.0
    %2280 = vmatpush1.msra.mxu0 0.0
    %2281 = vmatprep.subr.mxu0 0.0
    %2282 = vmatpush1.msra.mxu0 0.0
    %2283 = vmatprep.subr.mxu0 0.0
    %2284 = vmatpush1.msra.mxu0 0.0
    %2285 = vmatprep.subr.mxu0 0.0
    %2286 = vmatpush1.msra.mxu0 0.0
    %2287 = vmatprep.subr.mxu0 0.0
    %2288 = vmatpush1.msra.mxu0 0.0
    %2289 = vmatprep.subr.mxu0 0.0
    %2290 = vmatpush1.msra.mxu0 0.0
    %2291 = vmatprep.subr.mxu0 0.0
    %2292 = vmatpush1.msra.mxu0 0.0
    %2293 = vmatprep.subr.mxu0 0.0
    %2294 = vmatpush1.msra.mxu0 0.0
    %2295 = vmatprep.subr.mxu0 0.0
    %2296 = vmatpush1.msra.mxu0 0.0
    %2297 = vmatprep.subr.mxu0 0.0
    %2298 = vmatpush1.msra.mxu0 0.0
    %2299 = vmatprep.subr.mxu0 0.0
    %2300 = vmatpush1.msra.mxu0 0.0
    %2301 = vmatprep.subr.mxu0 0.0
    %2302 = vmatpush1.msra.mxu0 0.0
    %2303 = vmatprep.subr.mxu0 0.0
    %2304 = vmatpush1.msra.mxu0 0.0
    %2305 = vmatprep.subr.mxu0 0.0
    %2306 = vmatpush1.msra.mxu0 0.0
    %2307 = vmatprep.subr.mxu0 0.0
    %2308 = vmatpush1.msra.mxu0 0.0
    %2309 = vmatprep.subr.mxu0 0.0
    %2310 = vmatpush1.msra.mxu0 0.0
    %2311 = vmatprep.subr.mxu0 0.0
    %2312 = vmatpush1.msra.mxu0 0.0
    %2313 = vmatprep.subr.mxu0 0.0
    %2314 = vmatpush1.msra.mxu0 0.0
    %2315 = vmatprep.subr.mxu0 0.0
    %2316 = vmatpush1.msra.mxu0 0.0
    %2317 = vmatprep.subr.mxu0 0.0
    %2318 = vmatpush1.msra.mxu0 0.0
    %2319 = vmatprep.subr.mxu0 0.0
    %2320 = vmatpush1.msra.mxu0 0.0
    %2321 = vmatprep.subr.mxu0 0.0
    %2322 = vmatpush1.msra.mxu0 0.0
    %2323 = vmatprep.subr.mxu0 0.0
    %2324 = vmatpush1.msra.mxu0 0.0
    %2325 = vmatprep.subr.mxu0 0.0
    %2326 = vmatpush1.msra.mxu0 0.0
    %2327 = vmatprep.subr.mxu0 0.0
    %2328 = vmatpush1.msra.mxu0 0.0
    %2329 = vmatprep.subr.mxu0 0.0
    %2330 = vmatpush1.msra.mxu0 0.0
    %2331 = vmatprep.subr.mxu0 0.0
    %2332 = vmatpush1.msra.mxu0 0.0
    %2333 = vmatprep.subr.mxu0 0.0
    %2334 = vmatpush1.msra.mxu0 0.0
    %2335 = vmatprep.mubr.f32.mxu0 0.0
    %2336 = vmatmul.mubr.f32.gmra.mrb[0].mxu0 %v2265
    %v2337 = vpop.f32.mrb[0].mxu0
    %v2338 = vadd.f32 0.0, %v2337
    %v2339 = vpop.f32.mrb[0].mxu0
    %2340 = vmatprep.mubr.f32.mxu0 0.0
    %2341 = vmatmul.mubr.f32.gmra.mrb[0].mxu0 %v2267
    %v2342 = vpop.f32.mrb[0].mxu0
    %v2343 = vadd.f32 0.0, %v2342
    %v2344 = vpop.f32.mrb[0].mxu0
    %2345 = vmatprep.mubr.f32.mxu0 0.0
    %2346 = vmatmul.mubr.f32.gmra.mrb[0].mxu0 %v2269
    %v2347 = vpop.f32.mrb[0].mxu0
    %v2348 = vadd.f32 0.0, %v2347
    %v2349 = vpop.f32.mrb[0].mxu0
    %2350 = vdwg.mxu0
    %v2351 = vadd.f32 %v2154, %v2338
    %v2352 = vadd.f32 %v2159, %v2343
    %v2353 = vadd.f32 %v2164, %v2348
    %v2354 = vld [vmem:[#allocation9] sm:$0x1]
    %v2356 = vlaneseq
    %v2357 = vshrl.u32 %v2356, 7
    %v2358 = vsub.s32 0, %v2357
    %v2359 = vrot.slane %v2354, %v2358
    %v2361 = vadd.f32 %v2351, %v2359
    %v2362 = vadd.f32 %v2352, %v2359
    %v2363 = vadd.f32 %v2353, %v2359
    %v2367 = vcombine.high %v2361, %v2361
    %v2369 = vunpack.c.l.s4 1983009808
    %v2370 = vunpack.c.0.s8 %v2369
    %v2371 = vlaneseq
    %v2372 = vshrl.u32 %v2371, 7
    %v2373 = vsub.s32 %v2370, %v2372
    %v2374 = vrot.slane %v2361, %v2373
    %v2376 = vunpack.c.l.s4 1983009808
    %v2377 = vunpack.c.0.s8 %v2376
    %v2378 = vlaneseq
    %v2379 = vshrl.u32 %v2378, 7
    %v2380 = vsub.s32 %v2377, %v2379
    %v2381 = vrot.slane %v2367, %v2380
    %v2382 = vcombine.high %v2374, %v2374
    %v2383 = vcombine.high %v2381, %v2381
    %v2384 = vcombine.high %v2362, %v2362
    %v2386 = vunpack.c.l.s4 1983009808
    %v2387 = vunpack.c.0.s8 %v2386
    %v2388 = vlaneseq
    %v2389 = vshrl.u32 %v2388, 7
    %v2390 = vsub.s32 %v2387, %v2389
    %v2391 = vrot.slane %v2362, %v2390
    %v2393 = vunpack.c.l.s4 1983009808
    %v2394 = vunpack.c.0.s8 %v2393
    %v2395 = vlaneseq
    %v2396 = vshrl.u32 %v2395, 7
    %v2397 = vsub.s32 %v2394, %v2396
    %v2398 = vrot.slane %v2384, %v2397
    %v2399 = vcombine.high %v2391, %v2391
    %v2400 = vcombine.high %v2398, %v2398
    %v2402 = vunpack.c.l.s4 1983009808
    %v2403 = vunpack.c.0.s8 %v2402
    %v2404 = vlaneseq
    %v2405 = vshrl.u32 %v2404, 7
    %v2406 = vsub.s32 %v2403, %v2405
    %v2407 = vrot.slane %v2363, %v2406
    %v2408 = vcombine.high %v2407, %v2407
    %v2419 = vmax.f32 %v2374, 0.0
    %v2420 = vmax.f32 %v2382, 0.0
    %v2421 = vmax.f32 %v2381, 0.0
    %v2422 = vmax.f32 %v2383, 0.0
    %v2423 = vmax.f32 %v2391, 0.0
    %v2424 = vmax.f32 %v2399, 0.0
    %v2425 = vmax.f32 %v2398, 0.0
    %v2426 = vmax.f32 %v2400, 0.0
    %v2427 = vmax.f32 %v2407, 0.0
    %v2428 = vmax.f32 %v2408, 0.0
    %v2439 = vcombine.low %v2419, %v2420
    %v2440 = vcombine.low %v2421, %v2422
    %v2442 = vunpack.c.l.s4 1983009808
    %v2443 = vunpack.c.0.s8 %v2442
    %v2444 = vlaneseq
    %v2445 = vshrl.u32 %v2444, 7
    %v2446 = vsub.s32 %v2443, %v2445
    %v2447 = vrot.slane %v2439, %v2446
    %v2449 = vunpack.c.l.s4 1983009808
    %v2450 = vunpack.c.0.s8 %v2449
    %v2451 = vlaneseq
    %v2452 = vshrl.u32 %v2451, 7
    %v2453 = vsub.s32 %v2450, %v2452
    %v2454 = vrot.slane %v2440, %v2453
    %v2455 = vcombine.low %v2447, %v2454
    %v2457 = vunpack.c.l.s4 1983009808
    %v2458 = vunpack.c.0.s8 %v2457
    %v2459 = vlaneseq
    %v2460 = vshrl.u32 %v2459, 7
    %v2461 = vsub.s32 %v2458, %v2460
    %v2462 = vrot.slane %v2423, %v2461
    %v2463 = vcombine.low %v2424, %v2425
    %v2464 = vcombine.low %v2426, %v2427
    %v2466 = vunpack.c.l.s4 1983009808
    %v2467 = vunpack.c.0.s8 %v2466
    %v2468 = vlaneseq
    %v2469 = vshrl.u32 %v2468, 7
    %v2470 = vsub.s32 %v2467, %v2469
    %v2471 = vrot.slane %v2463, %v2470
    %v2473 = vunpack.c.l.s4 1983009808
    %v2474 = vunpack.c.0.s8 %v2473
    %v2475 = vlaneseq
    %v2476 = vshrl.u32 %v2475, 7
    %v2477 = vsub.s32 %v2474, %v2476
    %v2478 = vrot.slane %v2464, %v2477
    %v2479 = vcombine.low %v2471, %v2478
    %v2481 = vunpack.c.l.s4 1983009808
    %v2482 = vunpack.c.0.s8 %v2481
    %v2483 = vlaneseq
    %v2484 = vshrl.u32 %v2483, 7
    %v2485 = vsub.s32 %v2482, %v2484
    %v2486 = vrot.slane %v2428, %v2485
    %vm2491 = vcmask 31745
    %v2492 = vsel %vm2491, %v2455, -inf
    %vm2493 = vcmask 25600
    %v2494 = vsel %vm2493, %v2462, -inf
    %v2495 = vmax.f32 %v2492, %v2494
    %v2496 = vrot.slane %v2495, 4
    %v2497 = vmax.f32 %v2495, %v2496
    %v2498 = vrot.slane %v2497, 2
    %v2499 = vmax.f32 %v2497, %v2498
    %v2500 = vrot.slane %v2499, 1
    %v2501 = vmax.f32 %v2499, %v2500
    %v2502 = vsel %vm2491, %v2479, -inf
    %v2503 = vsel %vm2493, %v2486, -inf
    %v2504 = vmax.f32 %v2502, %v2503
    %v2505 = vrot.slane %v2504, 4
    %v2506 = vmax.f32 %v2504, %v2505
    %v2507 = vrot.slane %v2506, 2
    %v2508 = vmax.f32 %v2506, %v2507
    %v2509 = vrot.slane %v2508, 1
    %v2510 = vmax.f32 %v2508, %v2509
    %vm2511 = vcmask 64544
    %v2512 = vsel %vm2511, %v2455, -inf
    %vm2513 = vcmask 58400
    %v2514 = vsel %vm2513, %v2462, -inf
    %v2515 = vmax.f32 %v2512, %v2514
    %v2516 = vrot.slane %v2515, 4
    %v2517 = vmax.f32 %v2515, %v2516
    %v2518 = vrot.slane %v2517, 2
    %v2519 = vmax.f32 %v2517, %v2518
    %v2520 = vrot.slane %v2519, 1
    %v2521 = vmax.f32 %v2519, %v2520
    %v2522 = vsel %vm2511, %v2479, -inf
    %v2523 = vsel %vm2513, %v2486, -inf
    %v2524 = vmax.f32 %v2522, %v2523
    %v2525 = vrot.slane %v2524, 4
    %v2526 = vmax.f32 %v2524, %v2525
    %v2527 = vrot.slane %v2526, 2
    %v2528 = vmax.f32 %v2526, %v2527
    %v2529 = vrot.slane %v2528, 1
    %v2530 = vmax.f32 %v2528, %v2529
    %v2531 = vld [vmem:[%s1] sm:$0xff]
    %v2532 = vld [vmem:[%s1 + $0x8] sm:$0xff]
    %v2533 = vld [vmem:[%s10] sm:$0xff]
    %v2534 = vld [vmem:[%s10 + $0x8] sm:$0xff]
    %v2536 = vsel %vm297, %v2531, 0
    %v2539 = vsel %vm297, %v2532, 0
    %2541 = vmatprep.subr.mxu0 0.0
    %2542 = vmatpush1.msra.mxu0 %v2533
    %2543 = vmatprep.subr.mxu0 0.0
    %2544 = vmatpush1.msra.mxu0 %v2534
    %2545 = vmatprep.subr.mxu0 0.0
    %2546 = vmatpush1.msra.mxu0 0.0
    %2547 = vmatprep.subr.mxu0 0.0
    %2548 = vmatpush1.msra.mxu0 0.0
    %2549 = vmatprep.subr.mxu0 0.0
    %2550 = vmatpush1.msra.mxu0 0.0
    %2551 = vmatprep.subr.mxu0 0.0
    %2552 = vmatpush1.msra.mxu0 0.0
    %2553 = vmatprep.subr.mxu0 0.0
    %2554 = vmatpush1.msra.mxu0 0.0
    %2555 = vmatprep.subr.mxu0 0.0
    %2556 = vmatpush1.msra.mxu0 0.0
    %2557 = vmatprep.subr.mxu0 0.0
    %2558 = vmatpush1.msra.mxu0 0.0
    %2559 = vmatprep.subr.mxu0 0.0
    %2560 = vmatpush1.msra.mxu0 0.0
    %2561 = vmatprep.subr.mxu0 0.0
    %2562 = vmatpush1.msra.mxu0 0.0
    %2563 = vmatprep.subr.mxu0 0.0
    %2564 = vmatpush1.msra.mxu0 0.0
    %2565 = vmatprep.subr.mxu0 0.0
    %2566 = vmatpush1.msra.mxu0 0.0
    %2567 = vmatprep.subr.mxu0 0.0
    %2568 = vmatpush1.msra.mxu0 0.0
    %2569 = vmatprep.subr.mxu0 0.0
    %2570 = vmatpush1.msra.mxu0 0.0
    %2571 = vmatprep.subr.mxu0 0.0
    %2572 = vmatpush1.msra.mxu0 0.0
    %2573 = vmatprep.subr.mxu0 0.0
    %2574 = vmatpush1.msra.mxu0 0.0
    %2575 = vmatprep.subr.mxu0 0.0
    %2576 = vmatpush1.msra.mxu0 0.0
    %2577 = vmatprep.subr.mxu0 0.0
    %2578 = vmatpush1.msra.mxu0 0.0
    %2579 = vmatprep.subr.mxu0 0.0
    %2580 = vmatpush1.msra.mxu0 0.0
    %2581 = vmatprep.subr.mxu0 0.0
    %2582 = vmatpush1.msra.mxu0 0.0
    %2583 = vmatprep.subr.mxu0 0.0
    %2584 = vmatpush1.msra.mxu0 0.0
    %2585 = vmatprep.subr.mxu0 0.0
    %2586 = vmatpush1.msra.mxu0 0.0
    %2587 = vmatprep.subr.mxu0 0.0
    %2588 = vmatpush1.msra.mxu0 0.0
    %2589 = vmatprep.subr.mxu0 0.0
    %2590 = vmatpush1.msra.mxu0 0.0
    %2591 = vmatprep.subr.mxu0 0.0
    %2592 = vmatpush1.msra.mxu0 0.0
    %2593 = vmatprep.subr.mxu0 0.0
    %2594 = vmatpush1.msra.mxu0 0.0
    %2595 = vmatprep.subr.mxu0 0.0
    %2596 = vmatpush1.msra.mxu0 0.0
    %2597 = vmatprep.subr.mxu0 0.0
    %2598 = vmatpush1.msra.mxu0 0.0
    %2599 = vmatprep.subr.mxu0 0.0
    %2600 = vmatpush1.msra.mxu0 0.0
    %2601 = vmatprep.subr.mxu0 0.0
    %2602 = vmatpush1.msra.mxu0 0.0
    %2603 = vmatprep.subr.mxu0 0.0
    %2604 = vmatpush1.msra.mxu0 0.0
    %2605 = vmatprep.mubr.f32.mxu0 0.0
    %2606 = vmatmul.mubr.f32.gmra.mrb[0].mxu0 %v2536
    %v2607 = vpop.f32.mrb[0].mxu0
    %v2608 = vadd.f32 0.0, %v2607
    %v2609 = vpop.f32.mrb[0].mxu0
    %2610 = vmatprep.mubr.f32.mxu0 0.0
    %2611 = vmatmul.mubr.f32.gmra.mrb[0].mxu0 %v2539
    %v2612 = vpop.f32.mrb[0].mxu0
    %v2613 = vadd.f32 0.0, %v2612
    %v2614 = vpop.f32.mrb[0].mxu0
    %2615 = vdwg.mxu0
    %v2616 = vtanh.pop %v2608
    %v2617 = vtanh.pop %v2613
    %v2618 = vld [vmem:[%s11] sm:$0xf]
    %vm2619 = vcmask 31744
    %v2621 = vsel %vm2619, %v2616, 0
    %v2624 = vsel %vm2619, %v2617, 0
    %v2627 = vsel %vm1603, %v2618, 0
    %2629 = vmatprep.subr.mxu0 0.0
    %2630 = vmatpush1.msra.mxu0 %v2627
    %2631 = vmatprep.subr.mxu0 0.0
    %2632 = vmatpush1.msra.mxu0 0.0
    %2633 = vmatprep.subr.mxu0 0.0
    %2634 = vmatpush1.msra.mxu0 0.0
    %2635 = vmatprep.subr.mxu0 0.0
    %2636 = vmatpush1.msra.mxu0 0.0
    %2637 = vmatprep.subr.mxu0 0.0
    %2638 = vmatpush1.msra.mxu0 0.0
    %2639 = vmatprep.subr.mxu0 0.0
    %2640 = vmatpush1.msra.mxu0 0.0
    %2641 = vmatprep.subr.mxu0 0.0
    %2642 = vmatpush1.msra.mxu0 0.0
    %2643 = vmatprep.subr.mxu0 0.0
    %2644 = vmatpush1.msra.mxu0 0.0
    %2645 = vmatprep.subr.mxu0 0.0
    %2646 = vmatpush1.msra.mxu0 0.0
    %2647 = vmatprep.subr.mxu0 0.0
    %2648 = vmatpush1.msra.mxu0 0.0
    %2649 = vmatprep.subr.mxu0 0.0
    %2650 = vmatpush1.msra.mxu0 0.0
    %2651 = vmatprep.subr.mxu0 0.0
    %2652 = vmatpush1.msra.mxu0 0.0
    %2653 = vmatprep.subr.mxu0 0.0
    %2654 = vmatpush1.msra.mxu0 0.0
    %2655 = vmatprep.subr.mxu0 0.0
    %2656 = vmatpush1.msra.mxu0 0.0
    %2657 = vmatprep.subr.mxu0 0.0
    %2658 = vmatpush1.msra.mxu0 0.0
    %2659 = vmatprep.subr.mxu0 0.0
    %2660 = vmatpush1.msra.mxu0 0.0
    %2661 = vmatprep.subr.mxu0 0.0
    %2662 = vmatpush1.msra.mxu0 0.0
    %2663 = vmatprep.subr.mxu0 0.0
    %2664 = vmatpush1.msra.mxu0 0.0
    %2665 = vmatprep.subr.mxu0 0.0
    %2666 = vmatpush1.msra.mxu0 0.0
    %2667 = vmatprep.subr.mxu0 0.0
    %2668 = vmatpush1.msra.mxu0 0.0
    %2669 = vmatprep.subr.mxu0 0.0
    %2670 = vmatpush1.msra.mxu0 0.0
    %2671 = vmatprep.subr.mxu0 0.0
    %2672 = vmatpush1.msra.mxu0 0.0
    %2673 = vmatprep.subr.mxu0 0.0
    %2674 = vmatpush1.msra.mxu0 0.0
    %2675 = vmatprep.subr.mxu0 0.0
    %2676 = vmatpush1.msra.mxu0 0.0
    %2677 = vmatprep.subr.mxu0 0.0
    %2678 = vmatpush1.msra.mxu0 0.0
    %2679 = vmatprep.subr.mxu0 0.0
    %2680 = vmatpush1.msra.mxu0 0.0
    %2681 = vmatprep.subr.mxu0 0.0
    %2682 = vmatpush1.msra.mxu0 0.0
    %2683 = vmatprep.subr.mxu0 0.0
    %2684 = vmatpush1.msra.mxu0 0.0
    %2685 = vmatprep.subr.mxu0 0.0
    %2686 = vmatpush1.msra.mxu0 0.0
    %2687 = vmatprep.subr.mxu0 0.0
    %2688 = vmatpush1.msra.mxu0 0.0
    %2689 = vmatprep.subr.mxu0 0.0
    %2690 = vmatpush1.msra.mxu0 0.0
    %2691 = vmatprep.subr.mxu0 0.0
    %2692 = vmatpush1.msra.mxu0 0.0
    %2693 = vmatprep.mubr.f32.mxu0 0.0
    %2694 = vmatmul.mubr.f32.gmra.mrb[0].mxu0 %v2621
    %v2695 = vpop.f32.mrb[0].mxu0
    %v2696 = vadd.f32 0.0, %v2695
    %v2697 = vpop.f32.mrb[0].mxu0
    %2698 = vmatprep.mubr.f32.mxu0 0.0
    %2699 = vmatmul.mubr.f32.gmra.mrb[0].mxu0 %v2624
    %v2700 = vpop.f32.mrb[0].mxu0
    %v2701 = vadd.f32 0.0, %v2700
    %v2702 = vpop.f32.mrb[0].mxu0
    %2703 = vdwg.mxu0
    %vm2704 = vcmp.gt.f32.partialorder %v107, 0.0
    %vm2705 = vcmp.gt.f32.partialorder %v108, 0.0
    %v2706 = vsel %vm2704, %v2696, -1e+30
    %v2707 = vsel %vm2705, %v2701, -1e+30
    %v2708 = vsel %vm1391, %v2706, -inf
    %v2709 = vrot.slane %v2708, 4
    %v2710 = vmax.f32 %v2708, %v2709
    %v2711 = vrot.slane %v2710, 2
    %v2712 = vmax.f32 %v2710, %v2711
    %v2713 = vrot.slane %v2712, 1
    %v2714 = vmax.f32 %v2712, %v2713
    %v2715 = vsel %vm1391, %v2707, -inf
    %v2716 = vrot.slane %v2715, 4
    %v2717 = vmax.f32 %v2715, %v2716
    %v2718 = vrot.slane %v2717, 2
    %v2719 = vmax.f32 %v2717, %v2718
    %v2720 = vrot.slane %v2719, 1
    %v2721 = vmax.f32 %v2719, %v2720
    %v2722 = vsub.f32 %v2706, %v2714
    %v2723 = vsub.f32 %v2707, %v2721
    %v2724 = vmul.f32 %v2722, 1.442695
    %v2725 = vpow.pop %v2724
    %v2726 = vmul.f32 %v2723, 1.442695
    %v2727 = vpow.pop %v2726
    %v2728 = vmul.f32 %v2725, %v107
    %v2729 = vmul.f32 %v2727, %v108
    %v2730 = vsel %vm1391, %v2728, 0.0
    %v2731 = vrot.slane %v2730, 4
    %v2732 = vadd.f32 %v2730, %v2731
    %v2733 = vrot.slane %v2732, 2
    %v2734 = vadd.f32 %v2732, %v2733
    %v2735 = vrot.slane %v2734, 1
    %v2736 = vadd.f32 %v2734, %v2735
    %v2737 = vsel %vm1391, %v2729, 0.0
    %v2738 = vrot.slane %v2737, 4
    %v2739 = vadd.f32 %v2737, %v2738
    %v2740 = vrot.slane %v2739, 2
    %v2741 = vadd.f32 %v2739, %v2740
    %v2742 = vrot.slane %v2741, 1
    %v2743 = vadd.f32 %v2741, %v2742
    %v2744 = vmax.f32 %v2736, 1e-30
    %v2745 = vmax.f32 %v2743, 1e-30
    %v2746 = vrcp.pop %v2744
    %v2747 = vrcp.pop %v2745
    %v2748 = vmul.f32 %v2728, %v2746
    %v2749 = vmul.f32 %v2729, %v2747
    %2751 = vset.pattern.permute.xlu0 0
    %2752 = vperm.xlu0 %2751, %v2748
    %v2753 = vpop.permute.xlu0 %2752
    %2756 = vset.pattern.permute.xlu0 0
    %2757 = vperm.xlu0 %2756, %v2749
    %v2758 = vpop.permute.xlu0 %2757
    %v2760 = vmul.f32 %v2753, %v2531
    %v2761 = vmul.f32 %v2758, %v2532
    %v2762 = vsel %vm297, %v2760, 0.0
    %v2763 = vrot.slane %v2762, 4
    %v2764 = vadd.f32 %v2762, %v2763
    %v2765 = vrot.slane %v2764, 2
    %v2766 = vadd.f32 %v2764, %v2765
    %v2767 = vrot.slane %v2766, 1
    %v2768 = vadd.f32 %v2766, %v2767
    %v2769 = vsel %vm297, %v2761, 0.0
    %v2770 = vrot.slane %v2769, 4
    %v2771 = vadd.f32 %v2769, %v2770
    %v2772 = vrot.slane %v2771, 2
    %v2773 = vadd.f32 %v2771, %v2772
    %v2774 = vrot.slane %v2773, 1
    %v2775 = vadd.f32 %v2773, %v2774
    %v2776 = vmul.f32 %v2768, 0.125
    %v2777 = vmul.f32 %v2775, 0.125
    %v2778 = vld [vmem:[%s12] sm:$0xff]
    %v2779 = vld [vmem:[%s12 + $0x8] sm:$0xff]
    %v2780 = vld [vmem:[%s13] sm:$0xf]
    %v2783 = vsel %vm1252, %v2510, %v2501
    %v2784 = vsel %vm2619, %v2783, 0
    %v2787 = vsel %vm1603, %v2780, 0
    %2789 = vmatprep.subr.mxu0 0.0
    %2790 = vmatpush1.msra.mxu0 %v2787
    %2791 = vmatprep.subr.mxu0 0.0
    %2792 = vmatpush1.msra.mxu0 0.0
    %2793 = vmatprep.subr.mxu0 0.0
    %2794 = vmatpush1.msra.mxu0 0.0
    %2795 = vmatprep.subr.mxu0 0.0
    %2796 = vmatpush1.msra.mxu0 0.0
    %2797 = vmatprep.subr.mxu0 0.0
    %2798 = vmatpush1.msra.mxu0 0.0
    %2799 = vmatprep.subr.mxu0 0.0
    %2800 = vmatpush1.msra.mxu0 0.0
    %2801 = vmatprep.subr.mxu0 0.0
    %2802 = vmatpush1.msra.mxu0 0.0
    %2803 = vmatprep.subr.mxu0 0.0
    %2804 = vmatpush1.msra.mxu0 0.0
    %2805 = vmatprep.subr.mxu0 0.0
    %2806 = vmatpush1.msra.mxu0 0.0
    %2807 = vmatprep.subr.mxu0 0.0
    %2808 = vmatpush1.msra.mxu0 0.0
    %2809 = vmatprep.subr.mxu0 0.0
    %2810 = vmatpush1.msra.mxu0 0.0
    %2811 = vmatprep.subr.mxu0 0.0
    %2812 = vmatpush1.msra.mxu0 0.0
    %2813 = vmatprep.subr.mxu0 0.0
    %2814 = vmatpush1.msra.mxu0 0.0
    %2815 = vmatprep.subr.mxu0 0.0
    %2816 = vmatpush1.msra.mxu0 0.0
    %2817 = vmatprep.subr.mxu0 0.0
    %2818 = vmatpush1.msra.mxu0 0.0
    %2819 = vmatprep.subr.mxu0 0.0
    %2820 = vmatpush1.msra.mxu0 0.0
    %2821 = vmatprep.subr.mxu0 0.0
    %2822 = vmatpush1.msra.mxu0 0.0
    %2823 = vmatprep.subr.mxu0 0.0
    %2824 = vmatpush1.msra.mxu0 0.0
    %2825 = vmatprep.subr.mxu0 0.0
    %2826 = vmatpush1.msra.mxu0 0.0
    %2827 = vmatprep.subr.mxu0 0.0
    %2828 = vmatpush1.msra.mxu0 0.0
    %2829 = vmatprep.subr.mxu0 0.0
    %2830 = vmatpush1.msra.mxu0 0.0
    %2831 = vmatprep.subr.mxu0 0.0
    %2832 = vmatpush1.msra.mxu0 0.0
    %2833 = vmatprep.subr.mxu0 0.0
    %2834 = vmatpush1.msra.mxu0 0.0
    %2835 = vmatprep.subr.mxu0 0.0
    %2836 = vmatpush1.msra.mxu0 0.0
    %2837 = vmatprep.subr.mxu0 0.0
    %2838 = vmatpush1.msra.mxu0 0.0
    %2839 = vmatprep.subr.mxu0 0.0
    %2840 = vmatpush1.msra.mxu0 0.0
    %2841 = vmatprep.subr.mxu0 0.0
    %2842 = vmatpush1.msra.mxu0 0.0
    %2843 = vmatprep.subr.mxu0 0.0
    %2844 = vmatpush1.msra.mxu0 0.0
    %2845 = vmatprep.subr.mxu0 0.0
    %2846 = vmatpush1.msra.mxu0 0.0
    %2847 = vmatprep.subr.mxu0 0.0
    %2848 = vmatpush1.msra.mxu0 0.0
    %2849 = vmatprep.subr.mxu0 0.0
    %2850 = vmatpush1.msra.mxu0 0.0
    %2851 = vmatprep.subr.mxu0 0.0
    %2852 = vmatpush1.msra.mxu0 0.0
    %2853 = vmatprep.mubr.f32.mxu0 0.0
    %2854 = vmatmul.mubr.f32.gmra.mrb[0].mxu0 %v2784
    %v2855 = vpop.f32.mrb[0].mxu0
    %v2856 = vadd.f32 0.0, %v2855
    %v2857 = vpop.f32.mrb[0].mxu0
    %2858 = vdwg.mxu0
    %v2860 = vsel %vm297, %v1444, 0
    %2862 = vmatprep.subr.mxu0 0.0
    %2863 = vmatpush1.msra.mxu0 %v2778
    %2864 = vmatprep.subr.mxu0 0.0
    %2865 = vmatpush1.msra.mxu0 %v2779
    %2866 = vmatprep.subr.mxu0 0.0
    %2867 = vmatpush1.msra.mxu0 0.0
    %2868 = vmatprep.subr.mxu0 0.0
    %2869 = vmatpush1.msra.mxu0 0.0
    %2870 = vmatprep.subr.mxu0 0.0
    %2871 = vmatpush1.msra.mxu0 0.0
    %2872 = vmatprep.subr.mxu0 0.0
    %2873 = vmatpush1.msra.mxu0 0.0
    %2874 = vmatprep.subr.mxu0 0.0
    %2875 = vmatpush1.msra.mxu0 0.0
    %2876 = vmatprep.subr.mxu0 0.0
    %2877 = vmatpush1.msra.mxu0 0.0
    %2878 = vmatprep.subr.mxu0 0.0
    %2879 = vmatpush1.msra.mxu0 0.0
    %2880 = vmatprep.subr.mxu0 0.0
    %2881 = vmatpush1.msra.mxu0 0.0
    %2882 = vmatprep.subr.mxu0 0.0
    %2883 = vmatpush1.msra.mxu0 0.0
    %2884 = vmatprep.subr.mxu0 0.0
    %2885 = vmatpush1.msra.mxu0 0.0
    %2886 = vmatprep.subr.mxu0 0.0
    %2887 = vmatpush1.msra.mxu0 0.0
    %2888 = vmatprep.subr.mxu0 0.0
    %2889 = vmatpush1.msra.mxu0 0.0
    %2890 = vmatprep.subr.mxu0 0.0
    %2891 = vmatpush1.msra.mxu0 0.0
    %2892 = vmatprep.subr.mxu0 0.0
    %2893 = vmatpush1.msra.mxu0 0.0
    %2894 = vmatprep.subr.mxu0 0.0
    %2895 = vmatpush1.msra.mxu0 0.0
    %2896 = vmatprep.subr.mxu0 0.0
    %2897 = vmatpush1.msra.mxu0 0.0
    %2898 = vmatprep.subr.mxu0 0.0
    %2899 = vmatpush1.msra.mxu0 0.0
    %2900 = vmatprep.subr.mxu0 0.0
    %2901 = vmatpush1.msra.mxu0 0.0
    %2902 = vmatprep.subr.mxu0 0.0
    %2903 = vmatpush1.msra.mxu0 0.0
    %2904 = vmatprep.subr.mxu0 0.0
    %2905 = vmatpush1.msra.mxu0 0.0
    %2906 = vmatprep.subr.mxu0 0.0
    %2907 = vmatpush1.msra.mxu0 0.0
    %2908 = vmatprep.subr.mxu0 0.0
    %2909 = vmatpush1.msra.mxu0 0.0
    %2910 = vmatprep.subr.mxu0 0.0
    %2911 = vmatpush1.msra.mxu0 0.0
    %2912 = vmatprep.subr.mxu0 0.0
    %2913 = vmatpush1.msra.mxu0 0.0
    %2914 = vmatprep.subr.mxu0 0.0
    %2915 = vmatpush1.msra.mxu0 0.0
    %2916 = vmatprep.subr.mxu0 0.0
    %2917 = vmatpush1.msra.mxu0 0.0
    %2918 = vmatprep.subr.mxu0 0.0
    %2919 = vmatpush1.msra.mxu0 0.0
    %2920 = vmatprep.subr.mxu0 0.0
    %2921 = vmatpush1.msra.mxu0 0.0
    %2922 = vmatprep.subr.mxu0 0.0
    %2923 = vmatpush1.msra.mxu0 0.0
    %2924 = vmatprep.subr.mxu0 0.0
    %2925 = vmatpush1.msra.mxu0 0.0
    %2926 = vmatprep.mubr.f32.mxu0 0.0
    %2927 = vmatmul.mubr.f32.gmra.mrb[0].mxu0 %v2860
    %v2928 = vpop.f32.mrb[0].mxu0
    %v2929 = vadd.f32 %v2856, %v2928
    %v2930 = vpop.f32.mrb[0].mxu0
    %2931 = vdwg.mxu0
    %v2932 = vld [vmem:[%s14] sm:$0xf]
    %v2935 = vsel %vm1252, %v2530, %v2521
    %2936 = vrot.lane.b32.xlu0 %v2935, 124
    %v2937 = vpop.permute.xlu0 %2936
    %v2938 = vsel %vm2619, %v2937, 0
    %v2941 = vsel %vm1603, %v2932, 0
    %2943 = vmatprep.subr.mxu0 0.0
    %2944 = vmatpush1.msra.mxu0 %v2941
    %2945 = vmatprep.subr.mxu0 0.0
    %2946 = vmatpush1.msra.mxu0 0.0
    %2947 = vmatprep.subr.mxu0 0.0
    %2948 = vmatpush1.msra.mxu0 0.0
    %2949 = vmatprep.subr.mxu0 0.0
    %2950 = vmatpush1.msra.mxu0 0.0
    %2951 = vmatprep.subr.mxu0 0.0
    %2952 = vmatpush1.msra.mxu0 0.0
    %2953 = vmatprep.subr.mxu0 0.0
    %2954 = vmatpush1.msra.mxu0 0.0
    %2955 = vmatprep.subr.mxu0 0.0
    %2956 = vmatpush1.msra.mxu0 0.0
    %2957 = vmatprep.subr.mxu0 0.0
    %2958 = vmatpush1.msra.mxu0 0.0
    %2959 = vmatprep.subr.mxu0 0.0
    %2960 = vmatpush1.msra.mxu0 0.0
    %2961 = vmatprep.subr.mxu0 0.0
    %2962 = vmatpush1.msra.mxu0 0.0
    %2963 = vmatprep.subr.mxu0 0.0
    %2964 = vmatpush1.msra.mxu0 0.0
    %2965 = vmatprep.subr.mxu0 0.0
    %2966 = vmatpush1.msra.mxu0 0.0
    %2967 = vmatprep.subr.mxu0 0.0
    %2968 = vmatpush1.msra.mxu0 0.0
    %2969 = vmatprep.subr.mxu0 0.0
    %2970 = vmatpush1.msra.mxu0 0.0
    %2971 = vmatprep.subr.mxu0 0.0
    %2972 = vmatpush1.msra.mxu0 0.0
    %2973 = vmatprep.subr.mxu0 0.0
    %2974 = vmatpush1.msra.mxu0 0.0
    %2975 = vmatprep.subr.mxu0 0.0
    %2976 = vmatpush1.msra.mxu0 0.0
    %2977 = vmatprep.subr.mxu0 0.0
    %2978 = vmatpush1.msra.mxu0 0.0
    %2979 = vmatprep.subr.mxu0 0.0
    %2980 = vmatpush1.msra.mxu0 0.0
    %2981 = vmatprep.subr.mxu0 0.0
    %2982 = vmatpush1.msra.mxu0 0.0
    %2983 = vmatprep.subr.mxu0 0.0
    %2984 = vmatpush1.msra.mxu0 0.0
    %2985 = vmatprep.subr.mxu0 0.0
    %2986 = vmatpush1.msra.mxu0 0.0
    %2987 = vmatprep.subr.mxu0 0.0
    %2988 = vmatpush1.msra.mxu0 0.0
    %2989 = vmatprep.subr.mxu0 0.0
    %2990 = vmatpush1.msra.mxu0 0.0
    %2991 = vmatprep.subr.mxu0 0.0
    %2992 = vmatpush1.msra.mxu0 0.0
    %2993 = vmatprep.subr.mxu0 0.0
    %2994 = vmatpush1.msra.mxu0 0.0
    %2995 = vmatprep.subr.mxu0 0.0
    %2996 = vmatpush1.msra.mxu0 0.0
    %2997 = vmatprep.subr.mxu0 0.0
    %2998 = vmatpush1.msra.mxu0 0.0
    %2999 = vmatprep.subr.mxu0 0.0
    %3000 = vmatpush1.msra.mxu0 0.0
    %3001 = vmatprep.subr.mxu0 0.0
    %3002 = vmatpush1.msra.mxu0 0.0
    %3003 = vmatprep.subr.mxu0 0.0
    %3004 = vmatpush1.msra.mxu0 0.0
    %3005 = vmatprep.subr.mxu0 0.0
    %3006 = vmatpush1.msra.mxu0 0.0
    %3007 = vmatprep.mubr.f32.mxu0 0.0
    %3008 = vmatmul.mubr.f32.gmra.mrb[0].mxu0 %v2938
    %v3009 = vpop.f32.mrb[0].mxu0
    %v3010 = vadd.f32 0.0, %v3009
    %v3011 = vpop.f32.mrb[0].mxu0
    %3012 = vdwg.mxu0
    %v3013 = vadd.f32 %v2929, %v3010
    %v3014 = vld [vmem:[#allocation3] sm:$0x3]
    %v3015 = vld [vmem:[%s15] sm:$0xff]
    %v3016 = vld [vmem:[%s15 + $0x8] sm:$0xff]
    %v3018 = vsel %vm297, %v3014, 0
    %3020 = vmatprep.subr.mxu0 0.0
    %3021 = vmatpush1.msra.mxu0 %v3015
    %3022 = vmatprep.subr.mxu0 0.0
    %3023 = vmatpush1.msra.mxu0 %v3016
    %3024 = vmatprep.subr.mxu0 0.0
    %3025 = vmatpush1.msra.mxu0 0.0
    %3026 = vmatprep.subr.mxu0 0.0
    %3027 = vmatpush1.msra.mxu0 0.0
    %3028 = vmatprep.subr.mxu0 0.0
    %3029 = vmatpush1.msra.mxu0 0.0
    %3030 = vmatprep.subr.mxu0 0.0
    %3031 = vmatpush1.msra.mxu0 0.0
    %3032 = vmatprep.subr.mxu0 0.0
    %3033 = vmatpush1.msra.mxu0 0.0
    %3034 = vmatprep.subr.mxu0 0.0
    %3035 = vmatpush1.msra.mxu0 0.0
    %3036 = vmatprep.subr.mxu0 0.0
    %3037 = vmatpush1.msra.mxu0 0.0
    %3038 = vmatprep.subr.mxu0 0.0
    %3039 = vmatpush1.msra.mxu0 0.0
    %3040 = vmatprep.subr.mxu0 0.0
    %3041 = vmatpush1.msra.mxu0 0.0
    %3042 = vmatprep.subr.mxu0 0.0
    %3043 = vmatpush1.msra.mxu0 0.0
    %3044 = vmatprep.subr.mxu0 0.0
    %3045 = vmatpush1.msra.mxu0 0.0
    %3046 = vmatprep.subr.mxu0 0.0
    %3047 = vmatpush1.msra.mxu0 0.0
    %3048 = vmatprep.subr.mxu0 0.0
    %3049 = vmatpush1.msra.mxu0 0.0
    %3050 = vmatprep.subr.mxu0 0.0
    %3051 = vmatpush1.msra.mxu0 0.0
    %3052 = vmatprep.subr.mxu0 0.0
    %3053 = vmatpush1.msra.mxu0 0.0
    %3054 = vmatprep.subr.mxu0 0.0
    %3055 = vmatpush1.msra.mxu0 0.0
    %3056 = vmatprep.subr.mxu0 0.0
    %3057 = vmatpush1.msra.mxu0 0.0
    %3058 = vmatprep.subr.mxu0 0.0
    %3059 = vmatpush1.msra.mxu0 0.0
    %3060 = vmatprep.subr.mxu0 0.0
    %3061 = vmatpush1.msra.mxu0 0.0
    %3062 = vmatprep.subr.mxu0 0.0
    %3063 = vmatpush1.msra.mxu0 0.0
    %3064 = vmatprep.subr.mxu0 0.0
    %3065 = vmatpush1.msra.mxu0 0.0
    %3066 = vmatprep.subr.mxu0 0.0
    %3067 = vmatpush1.msra.mxu0 0.0
    %3068 = vmatprep.subr.mxu0 0.0
    %3069 = vmatpush1.msra.mxu0 0.0
    %3070 = vmatprep.subr.mxu0 0.0
    %3071 = vmatpush1.msra.mxu0 0.0
    %3072 = vmatprep.subr.mxu0 0.0
    %3073 = vmatpush1.msra.mxu0 0.0
    %3074 = vmatprep.subr.mxu0 0.0
    %3075 = vmatpush1.msra.mxu0 0.0
    %3076 = vmatprep.subr.mxu0 0.0
    %3077 = vmatpush1.msra.mxu0 0.0
    %3078 = vmatprep.subr.mxu0 0.0
    %3079 = vmatpush1.msra.mxu0 0.0
    %3080 = vmatprep.subr.mxu0 0.0
    %3081 = vmatpush1.msra.mxu0 0.0
    %3082 = vmatprep.subr.mxu0 0.0
    %3083 = vmatpush1.msra.mxu0 0.0
    %3084 = vmatprep.mubr.f32.mxu0 0.0
    %3085 = vmatmul.mubr.f32.gmra.mrb[0].mxu0 %v3018
    %v3086 = vpop.f32.mrb[0].mxu0
    %v3087 = vadd.f32 0.0, %v3086
    %v3088 = vpop.f32.mrb[0].mxu0
    %3089 = vdwg.mxu0
    %v3090 = vadd.f32 %v3013, %v3087
    %v3091 = vld [vmem:[%s16] sm:$0xff]
    %v3092 = vld [vmem:[%s16 + $0x8] sm:$0xff]
    %v3095 = vsel %vm1252, %v2777, %v2776
    %v3096 = vsel %vm297, %v3095, 0
    %3098 = vmatprep.subr.mxu0 0.0
    %3099 = vmatpush1.msra.mxu0 %v3091
    %3100 = vmatprep.subr.mxu0 0.0
    %3101 = vmatpush1.msra.mxu0 %v3092
    %3102 = vmatprep.subr.mxu0 0.0
    %3103 = vmatpush1.msra.mxu0 0.0
    %3104 = vmatprep.subr.mxu0 0.0
    %3105 = vmatpush1.msra.mxu0 0.0
    %3106 = vmatprep.subr.mxu0 0.0
    %3107 = vmatpush1.msra.mxu0 0.0
    %3108 = vmatprep.subr.mxu0 0.0
    %3109 = vmatpush1.msra.mxu0 0.0
    %3110 = vmatprep.subr.mxu0 0.0
    %3111 = vmatpush1.msra.mxu0 0.0
    %3112 = vmatprep.subr.mxu0 0.0
    %3113 = vmatpush1.msra.mxu0 0.0
    %3114 = vmatprep.subr.mxu0 0.0
    %3115 = vmatpush1.msra.mxu0 0.0
    %3116 = vmatprep.subr.mxu0 0.0
    %3117 = vmatpush1.msra.mxu0 0.0
    %3118 = vmatprep.subr.mxu0 0.0
    %3119 = vmatpush1.msra.mxu0 0.0
    %3120 = vmatprep.subr.mxu0 0.0
    %3121 = vmatpush1.msra.mxu0 0.0
    %3122 = vmatprep.subr.mxu0 0.0
    %3123 = vmatpush1.msra.mxu0 0.0
    %3124 = vmatprep.subr.mxu0 0.0
    %3125 = vmatpush1.msra.mxu0 0.0
    %3126 = vmatprep.subr.mxu0 0.0
    %3127 = vmatpush1.msra.mxu0 0.0
    %3128 = vmatprep.subr.mxu0 0.0
    %3129 = vmatpush1.msra.mxu0 0.0
    %3130 = vmatprep.subr.mxu0 0.0
    %3131 = vmatpush1.msra.mxu0 0.0
    %3132 = vmatprep.subr.mxu0 0.0
    %3133 = vmatpush1.msra.mxu0 0.0
    %3134 = vmatprep.subr.mxu0 0.0
    %3135 = vmatpush1.msra.mxu0 0.0
    %3136 = vmatprep.subr.mxu0 0.0
    %3137 = vmatpush1.msra.mxu0 0.0
    %3138 = vmatprep.subr.mxu0 0.0
    %3139 = vmatpush1.msra.mxu0 0.0
    %3140 = vmatprep.subr.mxu0 0.0
    %3141 = vmatpush1.msra.mxu0 0.0
    %3142 = vmatprep.subr.mxu0 0.0
    %3143 = vmatpush1.msra.mxu0 0.0
    %3144 = vmatprep.subr.mxu0 0.0
    %3145 = vmatpush1.msra.mxu0 0.0
    %3146 = vmatprep.subr.mxu0 0.0
    %3147 = vmatpush1.msra.mxu0 0.0
    %3148 = vmatprep.subr.mxu0 0.0
    %3149 = vmatpush1.msra.mxu0 0.0
    %3150 = vmatprep.subr.mxu0 0.0
    %3151 = vmatpush1.msra.mxu0 0.0
    %3152 = vmatprep.subr.mxu0 0.0
    %3153 = vmatpush1.msra.mxu0 0.0
    %3154 = vmatprep.subr.mxu0 0.0
    %3155 = vmatpush1.msra.mxu0 0.0
    %3156 = vmatprep.subr.mxu0 0.0
    %3157 = vmatpush1.msra.mxu0 0.0
    %3158 = vmatprep.subr.mxu0 0.0
    %3159 = vmatpush1.msra.mxu0 0.0
    %3160 = vmatprep.subr.mxu0 0.0
    %3161 = vmatpush1.msra.mxu0 0.0
    %3162 = vmatprep.mubr.f32.mxu0 0.0
    %3163 = vmatmul.mubr.f32.gmra.mrb[0].mxu0 %v3096
    %v3164 = vpop.f32.mrb[0].mxu0
    %v3165 = vadd.f32 0.0, %v3164
    %v3166 = vpop.f32.mrb[0].mxu0
    %3167 = vdwg.mxu0
    %v3168 = vadd.f32 %v3090, %v3165
    %v3169 = vld [vmem:[%s17] sm:$0x1]
    %v3171 = vlaneseq
    %v3172 = vshrl.u32 %v3171, 7
    %v3173 = vsub.s32 0, %v3172
    %v3174 = vrot.slane %v3169, %v3173
    %v3176 = vadd.f32 %v3168, %v3174
    %v3177 = vmax.f32 %v3176, 0.0
    %v3178 = vmul.f32 %v3177, %v3177
    %vm3179 = vcmask 254976
    %v3180 = vsel %vm3179, %v3178, 0.0
    %3181 = vadd.xlane.f32.xlu0 %v3180
    %v3182 = vpop.xlane.xlu0 %3181
    %v3183 = vmax.f32 %v3182, 1e-12
    %v3184 = vrsqrt.pop %v3183
    %v3185 = vmul.f32 %v3177, %v3184
    %3186 = vst.msk [vmem:[#allocation11] sm:$0x3] %vm3179, %v3185
    // Predicated region
    $region90: #{tpu_custom_call.1} parent=1 // pred_check
      _
    $region91: #{tpu_custom_call.1} parent=1 // pred_check_branch
      %3188 = sbr.rel (0) target = $region93
    $region92: #{tpu_custom_call.1} parent=1 // pred_region
      %s3190 = ssub.s32 32, 32
      %3191 = vsyncadd [#allocation5], %s3190
      %s3193 = sshll.u32 [#allocation11], 4
      %s3194 = int_to_ptr.vmem [resolvable:$true] %s3193
      %3196 = dma.vmem_to_hbm [thread:$0]  %s3194, 32, %s18, [#allocation5]
    $region93: #{tpu_custom_call.1} parent=1 // pred_fallthru
      _
    // Predicated region
    $region94: #{tpu_custom_call.1} parent=1 // pred_check
      _
    $region95: #{tpu_custom_call.1} parent=1 // pred_check_branch
      %3198 = sbr.rel (0) target = $region97
    $region96: #{tpu_custom_call.1} parent=1 // pred_region
      %3199 = dma.done [#allocation5], 32
    $region97: #{tpu_custom_call.1} parent=1 // pred_fallthru
      _
    %3200 = vsyncpa [#allocation4], 1
    %3201 = vsyncpa [#allocation7], 1
    %3202 = vsyncpa [#allocation10], 1
    %3203 = vsyncpa [#allocation5], 1

</llo_original>
